<compile_context>
chip_gen: v7x
topology: tpu7x:2x2x1
jax: 0.10.0
libtpu: 0.0.40
codegen_flags: <defaults>
</compile_context>

<pallas_src>
import jax
import jax.numpy as jnp
from jax.experimental import pallas as pl
from jax.experimental.pallas import tpu as pltpu

EXPANSION = 4
EPS = 1e-5
LANE = 128


def _round_up(x, m):
    return ((x + m - 1) // m) * m


def _fold_bn(stats):
    gamma, beta, mean, var = stats
    scale = gamma / jnp.sqrt(var + EPS)
    bias = beta - mean * scale
    return scale, bias


# ------------------------------- kernel --------------------------------------
def bottleneck_kernel(x_ref,
                      w1_ref, b1_ref,
                      w2_ref, b2_ref,
                      wcat_ref, bcat_ref,
                      o_ref, pad_ref):
    # x_ref block: (NB, H, W, Cp) bf16, channels already lane-padded.
    NB, H, W, Cp = x_ref.shape
    Pp = w1_ref.shape[1]
    Coutp = wcat_ref.shape[1]
    M = NB * H * W

    xf = x_ref[...].reshape(M, Cp)                       # bf16, reused twice

    # --- conv1 (1x1) with folded bn1, + relu  (bf16 MXU, f32 accumulate) -----
    y1 = jnp.dot(xf, w1_ref[...], preferred_element_type=jnp.float32)
    y1 = jnp.maximum(y1 + b1_ref[...], 0.0)

    # --- conv2 (3x3, stride 1, pad 1) with folded bn2, + relu ----------------
    # Activation written once into a zero-padded f32 scratch, then ONE im2col
    # matmul with K = 9*Pp.  Taps are cast to bf16 before the concat so the
    # (M, 9*Pp) slab is built directly in bf16.
    pad_ref[...] = jnp.zeros_like(pad_ref)
    pad_ref[:, 1:H + 1, 1:W + 1, :] = y1.reshape(NB, H, W, Pp)
    taps = []
    for kh in range(3):
        for kw in range(3):
            taps.append(pad_ref[:, kh:kh + H, kw:kw + W, :]
                        .reshape(M, Pp).astype(jnp.bfloat16))
    col = jnp.concatenate(taps, axis=1)                  # (M, 9*Pp) bf16
    y2 = jnp.dot(col, w2_ref[...], preferred_element_type=jnp.float32)
    y2 = jnp.maximum(y2 + b2_ref[...], 0.0)

    # --- conv3 (1x1)+bn3 fused with projection shortcut (1x1)+bn_s -----------
    # Single matmul over the concatenated operand [y2 | x], K = Pp + Cp.
    xin = jnp.concatenate([y2.astype(jnp.bfloat16), xf], axis=1)
    y3 = jnp.dot(xin, wcat_ref[...], preferred_element_type=jnp.float32)
    out = jnp.maximum(y3 + bcat_ref[...], 0.0)
    o_ref[...] = out.reshape(NB, H, W, Coutp)


# ------------------------------- wrapper --------------------------------------
def bottleneck_forward(x_nchw, params):
    """x_nchw: (N, Cin, H, W) float32. Returns (N, EXPANSION*planes, H, W) f32."""
    N, Cin, H, W = x_nchw.shape
    w1, b1 = params["w1"], params["b1"]
    w2, b2 = params["w2"], params["b2"]
    wcat, bcat = params["wcat"], params["bcat"]
    Cp, Pp = w1.shape
    Coutp = wcat.shape[1]
    cout = params["cout"]

    # NCHW -> NHWC, zero-pad channels to the lane width, cast to bf16.
    # TODO(synk): keep NHWC (and lane-padded channels) end-to-end in the
    #             surrounding model to avoid these HBM layout round trips.
    x = jnp.transpose(x_nchw, (0, 2, 3, 1))
    x = jnp.pad(x, ((0, 0), (0, 0), (0, 0), (0, Cp - Cin))).astype(jnp.bfloat16)

    # Batch-tile size: whole batch per grid step while it fits a VMEM budget
    # derived from this generation's capacity (v7x has only 64 MiB per core).
    try:
        info = pltpu.get_tpu_info()
        vmem_cap = int(getattr(info, "vmem_capacity_bytes", 64 * 1024 * 1024))
    except Exception:
        vmem_cap = 64 * 1024 * 1024
    per_img = (H * W * Cp * 2                       # bf16 input block
               + (H + 2) * (W + 2) * Pp * 4         # f32 padded scratch
               + H * W * 9 * Pp * 2 * 2             # bf16 taps + im2col slab
               + H * W * (2 * Pp + Coutp) * 4       # y1 / y2 / pre-relu f32 temps
               + H * W * (Pp + Cp) * 2              # fused-matmul bf16 operand
               + H * W * Coutp * 4)                 # f32 output block
    budget = vmem_cap // 4                          # headroom: dbl-buffer + weights
    nb = max(1, min(N, budget // max(per_img, 1)))
    while N % nb:
        nb -= 1
    vmem_limit = int(max(32 << 20, min(vmem_cap - (16 << 20), 96 << 20)))

    def fixed(shape):
        nd = len(shape)
        return pl.BlockSpec(shape, lambda n, _nd=nd: (0,) * _nd)

    out_nhwc = pl.pallas_call(
        bottleneck_kernel,
        out_shape=jax.ShapeDtypeStruct((N, H, W, Coutp), jnp.float32),
        grid_spec=pltpu.PrefetchScalarGridSpec(
            num_scalar_prefetch=0,
            grid=(N // nb,),
            in_specs=[
                pl.BlockSpec((nb, H, W, Cp), lambda n: (n, 0, 0, 0)),
                fixed(w1.shape), fixed(b1.shape),
                fixed(w2.shape), fixed(b2.shape),
                fixed(wcat.shape), fixed(bcat.shape),
            ],
            out_specs=pl.BlockSpec((nb, H, W, Coutp), lambda n: (n, 0, 0, 0)),
            scratch_shapes=[pltpu.VMEM((nb, H + 2, W + 2, Pp), jnp.float32)],
        ),
        compiler_params=pltpu.CompilerParams(
            dimension_semantics=("parallel",),
            vmem_limit_bytes=vmem_limit),
    )(x, w1, b1, w2, b2, wcat, bcat)

    # Drop the channel padding, NHWC -> NCHW for the PyTorch-facing API.
    return jnp.transpose(out_nhwc[..., :cout], (0, 3, 1, 2))


# ------------------------------- params ---------------------------------------
def init_raw_params(key, in_planes, planes):
    cout = EXPANSION * planes
    ks = jax.random.split(key, 8)

    def bn_raw(k, c):
        k1, k2, k3, k4 = jax.random.split(k, 4)
        gamma = jax.random.uniform(k1, (c,), jnp.float32, 0.5, 1.5)
        beta = 0.1 * jax.random.normal(k2, (c,), jnp.float32)
        mean = 0.1 * jax.random.normal(k3, (c,), jnp.float32)
        var = jax.random.uniform(k4, (c,), jnp.float32, 0.5, 1.5)
        return gamma, beta, mean, var

    # weights in HWIO (kh, kw, in, out); PyTorch would be (out, in, kh, kw).
    w1 = 0.2 * jax.random.normal(ks[0], (1, 1, in_planes, planes), jnp.float32)
    w2 = 0.2 * jax.random.normal(ks[1], (3, 3, planes, planes), jnp.float32)
    w3 = 0.2 * jax.random.normal(ks[2], (1, 1, planes, cout), jnp.float32)
    ws = 0.2 * jax.random.normal(ks[3], (1, 1, in_planes, cout), jnp.float32)
    return {"w1_hwio": w1, "w2_hwio": w2, "w3_hwio": w3, "ws_hwio": ws,
            "bn1": bn_raw(ks[4], planes), "bn2": bn_raw(ks[5], planes),
            "bn3": bn_raw(ks[6], cout), "bns": bn_raw(ks[7], cout)}


def prepare_kernel_params(raw, in_planes, planes):
    """Fold BN scales into the conv weights (f32), pad channel dims to the
    128-lane width, fuse conv3+shortcut weights, cast weights to bf16."""
    cout = EXPANSION * planes
    Cp = _round_up(in_planes, LANE)
    Pp = _round_up(planes, LANE)
    Coutp = _round_up(cout, LANE)

    s1, b1 = _fold_bn(raw["bn1"])
    s2, b2 = _fold_bn(raw["bn2"])
    s3, b3 = _fold_bn(raw["bn3"])
    ss, bs = _fold_bn(raw["bns"])

    def pad2d(w, rows, cols):
        return jnp.pad(w, ((0, rows - w.shape[0]), (0, cols - w.shape[1])))

    # scale broadcasts over the output-channel (last) axis of HWIO weights.
    w1 = pad2d(raw["w1_hwio"].reshape(in_planes, planes) * s1, Cp, Pp)
    w2 = jnp.pad(raw["w2_hwio"] * s2,
                 ((0, 0), (0, 0), (0, Pp - planes), (0, Pp - planes)))
    w2 = w2.reshape(9 * Pp, Pp)                       # tap-major (kh*3+kw), HWIO
    w3 = pad2d(raw["w3_hwio"].reshape(planes, cout) * s3, Pp, Coutp)
    ws = pad2d(raw["ws_hwio"].reshape(in_planes, cout) * ss, Cp, Coutp)
    wcat = jnp.concatenate([w3, ws], axis=0)          # (Pp + Cp, Coutp)

    def padb(b, c):
        return jnp.pad(b, (0, c - b.shape[0])).reshape(1, c).astype(jnp.float32)

    return {"w1": w1.astype(jnp.bfloat16), "b1": padb(b1, Pp),
            "w2": w2.astype(jnp.bfloat16), "b2": padb(b2, Pp),
            "wcat": wcat.astype(jnp.bfloat16),
            "bcat": padb(b3, Coutp) + padb(bs, Coutp),
            "cout": cout}


# ---------------------------- pure-JAX reference ------------------------------
def _conv_folded(x_nhwc, w_hwio, scale, bias, pad):
    # Mirrors the kernel numerics: BN scale folded into the weight in f32,
    # bf16 conv inputs/weights, f32 accumulation, f32 bias add.
    wf = (w_hwio * scale).astype(jnp.bfloat16)
    y = jax.lax.conv_general_dilated(
        x_nhwc.astype(jnp.bfloat16), wf, window_strides=(1, 1), padding=pad,
        dimension_numbers=("NHWC", "HWIO", "NHWC"),
        preferred_element_type=jnp.float32)
    return y + bias


def bottleneck_reference(x_nchw, raw):
    x = jnp.transpose(x_nchw, (0, 2, 3, 1))
    s1, b1 = _fold_bn(raw["bn1"])
    s2, b2 = _fold_bn(raw["bn2"])
    s3, b3 = _fold_bn(raw["bn3"])
    ss, bs = _fold_bn(raw["bns"])
    y = jax.nn.relu(_conv_folded(x, raw["w1_hwio"], s1, b1, [(0, 0), (0, 0)]))
    y = jax.nn.relu(_conv_folded(y, raw["w2_hwio"], s2, b2, [(1, 1), (1, 1)]))
    y = _conv_folded(y, raw["w3_hwio"], s3, b3, [(0, 0), (0, 0)])
    sc = _conv_folded(x, raw["ws_hwio"], ss, bs, [(0, 0), (0, 0)])
    return jnp.transpose(jax.nn.relu(y + sc), (0, 3, 1, 2))


# --------------------------------- main ---------------------------------------
if __name__ == "__main__":
    key = jax.random.PRNGKey(0)
    kx, kp = jax.random.split(key)

    N, in_planes, planes, H, W = 2, 4, 4, 16, 16
    x = jax.random.normal(kx, (N, in_planes, H, W), jnp.float32)   # NCHW input

    raw = init_raw_params(kp, in_planes, planes)
    params = prepare_kernel_params(raw, in_planes, planes)

    out = bottleneck_forward(x, params)
    out = jax.block_until_ready(out)

    ref = bottleneck_reference(x, raw)
    assert out.shape == (N, EXPANSION * planes, H, W), out.shape
    assert jnp.allclose(out, ref, atol=2e-3, rtol=2e-3), float(
        jnp.max(jnp.abs(out - ref)))

    print("KERNEL_OK")
</pallas_src>

<mosaic_0001>
module attributes {stable_mosaic.version = 11 : i64} {
  func.func @bottleneck_kernel(%arg0: i32, %arg1: memref<2x16x16x128xbf16, #tpu.memory_space<vmem>>, %arg2: memref<128x128xbf16, #tpu.memory_space<vmem>>, %arg3: memref<1x128xf32, #tpu.memory_space<vmem>>, %arg4: memref<1152x128xbf16, #tpu.memory_space<vmem>>, %arg5: memref<1x128xf32, #tpu.memory_space<vmem>>, %arg6: memref<256x128xbf16, #tpu.memory_space<vmem>>, %arg7: memref<1x128xf32, #tpu.memory_space<vmem>>, %arg8: memref<2x16x16x128xf32, #tpu.memory_space<vmem>>, %arg9: memref<2x18x18x128xf32, #tpu.memory_space<vmem>>) attributes {dimension_semantics = [#tpu.dimension_semantics<parallel>], iteration_bounds = array<i64: 1>, scalar_prefetch = 0 : i64, scratch_operands = 1 : i64, tpu.core_type = #tpu.core_type<tc>, window_params = [{transform_indices = @transform_0, window_bounds = array<i64: 2, 16, 16, 128>}, {pipeline_mode = #tpu.pipeline_mode<synchronous>, transform_indices = @transform_1, window_bounds = array<i64: 128, 128>}, {pipeline_mode = #tpu.pipeline_mode<synchronous>, transform_indices = @transform_2, window_bounds = array<i64: 1, 128>}, {pipeline_mode = #tpu.pipeline_mode<synchronous>, transform_indices = @transform_3, window_bounds = array<i64: 1152, 128>}, {pipeline_mode = #tpu.pipeline_mode<synchronous>, transform_indices = @transform_4, window_bounds = array<i64: 1, 128>}, {pipeline_mode = #tpu.pipeline_mode<synchronous>, transform_indices = @transform_5, window_bounds = array<i64: 256, 128>}, {pipeline_mode = #tpu.pipeline_mode<synchronous>, transform_indices = @transform_6, window_bounds = array<i64: 1, 128>}, {transform_indices = @transform_7, window_bounds = array<i64: 2, 16, 16, 128>}]} {
    %c0 = arith.constant 0 : index
    %c0_0 = arith.constant 0 : index
    %c0_1 = arith.constant 0 : index
    %c0_2 = arith.constant 0 : index
    %0 = vector.load %arg1[%c0, %c0_0, %c0_1, %c0_2] : memref<2x16x16x128xbf16, #tpu.memory_space<vmem>>, vector<2x16x16x128xbf16>
    %1 = vector.shape_cast %0 : vector<2x16x16x128xbf16> to vector<512x128xbf16>
    %c0_3 = arith.constant 0 : index
    %c0_4 = arith.constant 0 : index
    %2 = vector.load %arg2[%c0_3, %c0_4] : memref<128x128xbf16, #tpu.memory_space<vmem>>, vector<128x128xbf16>
    %cst = arith.constant dense<0.000000e+00> : vector<512x128xf32>
    %3 = tpu.matmul %1, %2, %cst {dimension_numbers = #tpu.dot_dimension_numbers<[1], [0], [0], [1], [0, 0, 1, 1], [], []>} : vector<512x128xbf16>, vector<128x128xbf16>, vector<512x128xf32> -> vector<512x128xf32>
    %c0_5 = arith.constant 0 : index
    %c0_6 = arith.constant 0 : index
    %4 = vector.load %arg3[%c0_5, %c0_6] : memref<1x128xf32, #tpu.memory_space<vmem>>, vector<1x128xf32>
    %5 = vector.broadcast %4 : vector<1x128xf32> to vector<512x128xf32>
    %6 = arith.addf %3, %5 : vector<512x128xf32>
    %cst_7 = arith.constant 0.000000e+00 : f32
    %7 = vector.broadcast %cst_7 : f32 to vector<512x128xf32>
    %8 = arith.maximumf %6, %7 : vector<512x128xf32>
    %cst_8 = arith.constant 0.000000e+00 : f32
    %9 = vector.broadcast %cst_8 : f32 to vector<2x18x18x128xf32>
    %c0_9 = arith.constant 0 : index
    %c0_10 = arith.constant 0 : index
    %c0_11 = arith.constant 0 : index
    %c0_12 = arith.constant 0 : index
    %10 = vector.load %arg9[%c0_9, %c0_10, %c0_11, %c0_12] : memref<2x18x18x128xf32, #tpu.memory_space<vmem>>, vector<2x18x18x128xf32>
    tpu.vector_store %arg9[%c0_9, %c0_10, %c0_11, %c0_12], %9 {strides = array<i32>} : memref<2x18x18x128xf32, #tpu.memory_space<vmem>>, vector<2x18x18x128xf32>,
    %11 = vector.shape_cast %8 : vector<512x128xf32> to vector<2x16x16x128xf32>
    %c0_13 = arith.constant 0 : index
    %c1 = arith.constant 1 : index
    %c1_14 = arith.constant 1 : index
    %c0_15 = arith.constant 0 : index
    %12 = vector.load %arg9[%c0_13, %c1, %c1_14, %c0_15] : memref<2x18x18x128xf32, #tpu.memory_space<vmem>>, vector<2x16x16x128xf32>
    tpu.vector_store %arg9[%c0_13, %c1, %c1_14, %c0_15], %11 {strides = array<i32>} : memref<2x18x18x128xf32, #tpu.memory_space<vmem>>, vector<2x16x16x128xf32>,
    %c0_16 = arith.constant 0 : index
    %c0_17 = arith.constant 0 : index
    %c0_18 = arith.constant 0 : index
    %c0_19 = arith.constant 0 : index
    %13 = vector.load %arg9[%c0_16, %c0_17, %c0_18, %c0_19] : memref<2x18x18x128xf32, #tpu.memory_space<vmem>>, vector<2x16x16x128xf32>
    %14 = vector.shape_cast %13 : vector<2x16x16x128xf32> to vector<512x128xf32>
    %15 = arith.truncf %14 : vector<512x128xf32> to vector<512x128xbf16>
    %c0_20 = arith.constant 0 : index
    %c0_21 = arith.constant 0 : index
    %c1_22 = arith.constant 1 : index
    %c0_23 = arith.constant 0 : index
    %16 = vector.load %arg9[%c0_20, %c0_21, %c1_22, %c0_23] : memref<2x18x18x128xf32, #tpu.memory_space<vmem>>, vector<2x16x16x128xf32>
    %17 = vector.shape_cast %16 : vector<2x16x16x128xf32> to vector<512x128xf32>
    %18 = arith.truncf %17 : vector<512x128xf32> to vector<512x128xbf16>
    %c0_24 = arith.constant 0 : index
    %c0_25 = arith.constant 0 : index
    %c2 = arith.constant 2 : index
    %c0_26 = arith.constant 0 : index
    %19 = vector.load %arg9[%c0_24, %c0_25, %c2, %c0_26] : memref<2x18x18x128xf32, #tpu.memory_space<vmem>>, vector<2x16x16x128xf32>
    %20 = vector.shape_cast %19 : vector<2x16x16x128xf32> to vector<512x128xf32>
    %21 = arith.truncf %20 : vector<512x128xf32> to vector<512x128xbf16>
    %c0_27 = arith.constant 0 : index
    %c1_28 = arith.constant 1 : index
    %c0_29 = arith.constant 0 : index
    %c0_30 = arith.constant 0 : index
    %22 = vector.load %arg9[%c0_27, %c1_28, %c0_29, %c0_30] : memref<2x18x18x128xf32, #tpu.memory_space<vmem>>, vector<2x16x16x128xf32>
    %23 = vector.shape_cast %22 : vector<2x16x16x128xf32> to vector<512x128xf32>
    %24 = arith.truncf %23 : vector<512x128xf32> to vector<512x128xbf16>
    %c0_31 = arith.constant 0 : index
    %c1_32 = arith.constant 1 : index
    %c1_33 = arith.constant 1 : index
    %c0_34 = arith.constant 0 : index
    %25 = vector.load %arg9[%c0_31, %c1_32, %c1_33, %c0_34] : memref<2x18x18x128xf32, #tpu.memory_space<vmem>>, vector<2x16x16x128xf32>
    %26 = vector.shape_cast %25 : vector<2x16x16x128xf32> to vector<512x128xf32>
    %27 = arith.truncf %26 : vector<512x128xf32> to vector<512x128xbf16>
    %c0_35 = arith.constant 0 : index
    %c1_36 = arith.constant 1 : index
    %c2_37 = arith.constant 2 : index
    %c0_38 = arith.constant 0 : index
    %28 = vector.load %arg9[%c0_35, %c1_36, %c2_37, %c0_38] : memref<2x18x18x128xf32, #tpu.memory_space<vmem>>, vector<2x16x16x128xf32>
    %29 = vector.shape_cast %28 : vector<2x16x16x128xf32> to vector<512x128xf32>
    %30 = arith.truncf %29 : vector<512x128xf32> to vector<512x128xbf16>
    %c0_39 = arith.constant 0 : index
    %c2_40 = arith.constant 2 : index
    %c0_41 = arith.constant 0 : index
    %c0_42 = arith.constant 0 : index
    %31 = vector.load %arg9[%c0_39, %c2_40, %c0_41, %c0_42] : memref<2x18x18x128xf32, #tpu.memory_space<vmem>>, vector<2x16x16x128xf32>
    %32 = vector.shape_cast %31 : vector<2x16x16x128xf32> to vector<512x128xf32>
    %33 = arith.truncf %32 : vector<512x128xf32> to vector<512x128xbf16>
    %c0_43 = arith.constant 0 : index
    %c2_44 = arith.constant 2 : index
    %c1_45 = arith.constant 1 : index
    %c0_46 = arith.constant 0 : index
    %34 = vector.load %arg9[%c0_43, %c2_44, %c1_45, %c0_46] : memref<2x18x18x128xf32, #tpu.memory_space<vmem>>, vector<2x16x16x128xf32>
    %35 = vector.shape_cast %34 : vector<2x16x16x128xf32> to vector<512x128xf32>
    %36 = arith.truncf %35 : vector<512x128xf32> to vector<512x128xbf16>
    %c0_47 = arith.constant 0 : index
    %c2_48 = arith.constant 2 : index
    %c2_49 = arith.constant 2 : index
    %c0_50 = arith.constant 0 : index
    %37 = vector.load %arg9[%c0_47, %c2_48, %c2_49, %c0_50] : memref<2x18x18x128xf32, #tpu.memory_space<vmem>>, vector<2x16x16x128xf32>
    %38 = vector.shape_cast %37 : vector<2x16x16x128xf32> to vector<512x128xf32>
    %39 = arith.truncf %38 : vector<512x128xf32> to vector<512x128xbf16>
    %40 = tpu.concatenate %15, %18, %21, %24, %27, %30, %33, %36, %39 in 1 : vector<512x128xbf16>, vector<512x128xbf16>, vector<512x128xbf16>, vector<512x128xbf16>, vector<512x128xbf16>, vector<512x128xbf16>, vector<512x128xbf16>, vector<512x128xbf16>, vector<512x128xbf16> -> vector<512x1152xbf16>
    %c0_51 = arith.constant 0 : index
    %c0_52 = arith.constant 0 : index
    %41 = vector.load %arg4[%c0_51, %c0_52] : memref<1152x128xbf16, #tpu.memory_space<vmem>>, vector<1152x128xbf16>
    %cst_53 = arith.constant dense<0.000000e+00> : vector<512x128xf32>
    %42 = tpu.matmul %40, %41, %cst_53 {dimension_numbers = #tpu.dot_dimension_numbers<[1], [0], [0], [1], [0, 0, 1, 1], [], []>} : vector<512x1152xbf16>, vector<1152x128xbf16>, vector<512x128xf32> -> vector<512x128xf32>
    %c0_54 = arith.constant 0 : index
    %c0_55 = arith.constant 0 : index
    %43 = vector.load %arg5[%c0_54, %c0_55] : memref<1x128xf32, #tpu.memory_space<vmem>>, vector<1x128xf32>
    %44 = vector.broadcast %43 : vector<1x128xf32> to vector<512x128xf32>
    %45 = arith.addf %42, %44 : vector<512x128xf32>
    %cst_56 = arith.constant 0.000000e+00 : f32
    %46 = vector.broadcast %cst_56 : f32 to vector<512x128xf32>
    %47 = arith.maximumf %45, %46 : vector<512x128xf32>
    %48 = arith.truncf %47 : vector<512x128xf32> to vector<512x128xbf16>
    %49 = tpu.concatenate %48, %1 in 1 : vector<512x128xbf16>, vector<512x128xbf16> -> vector<512x256xbf16>
    %c0_57 = arith.constant 0 : index
    %c0_58 = arith.constant 0 : index
    %50 = vector.load %arg6[%c0_57, %c0_58] : memref<256x128xbf16, #tpu.memory_space<vmem>>, vector<256x128xbf16>
    %cst_59 = arith.constant dense<0.000000e+00> : vector<512x128xf32>
    %51 = tpu.matmul %49, %50, %cst_59 {dimension_numbers = #tpu.dot_dimension_numbers<[1], [0], [0], [1], [0, 0, 1, 1], [], []>} : vector<512x256xbf16>, vector<256x128xbf16>, vector<512x128xf32> -> vector<512x128xf32>
    %c0_60 = arith.constant 0 : index
    %c0_61 = arith.constant 0 : index
    %52 = vector.load %arg7[%c0_60, %c0_61] : memref<1x128xf32, #tpu.memory_space<vmem>>, vector<1x128xf32>
    %53 = vector.broadcast %52 : vector<1x128xf32> to vector<512x128xf32>
    %54 = arith.addf %51, %53 : vector<512x128xf32>
    %cst_62 = arith.constant 0.000000e+00 : f32
    %55 = vector.broadcast %cst_62 : f32 to vector<512x128xf32>
    %56 = arith.maximumf %54, %55 : vector<512x128xf32>
    %57 = vector.shape_cast %56 : vector<512x128xf32> to vector<2x16x16x128xf32>
    %c0_63 = arith.constant 0 : index
    %c0_64 = arith.constant 0 : index
    %c0_65 = arith.constant 0 : index
    %c0_66 = arith.constant 0 : index
    %58 = vector.load %arg8[%c0_63, %c0_64, %c0_65, %c0_66] : memref<2x16x16x128xf32, #tpu.memory_space<vmem>>, vector<2x16x16x128xf32>
    tpu.vector_store %arg8[%c0_63, %c0_64, %c0_65, %c0_66], %57 {strides = array<i32>} : memref<2x16x16x128xf32, #tpu.memory_space<vmem>>, vector<2x16x16x128xf32>,
    return
  }
  func.func @transform_0(%arg0: i32) -> (i32, i32, i32, i32) {
    %c0_i32 = arith.constant 0 : i32
    %c0_i32_0 = arith.constant 0 : i32
    %c0_i32_1 = arith.constant 0 : i32
    %c0_i32_2 = arith.constant 0 : i32
    return %arg0, %c0_i32, %c0_i32_0, %c0_i32_1 : i32, i32, i32, i32
  }
  func.func @transform_1(%arg0: i32) -> (i32, i32) {
    %c0_i32 = arith.constant 0 : i32
    %c0_i32_0 = arith.constant 0 : i32
    %c0_i32_1 = arith.constant 0 : i32
    return %c0_i32, %c0_i32_0 : i32, i32
  }
  func.func @transform_2(%arg0: i32) -> (i32, i32) {
    %c0_i32 = arith.constant 0 : i32
    %c0_i32_0 = arith.constant 0 : i32
    %c0_i32_1 = arith.constant 0 : i32
    return %c0_i32, %c0_i32_0 : i32, i32
  }
  func.func @transform_3(%arg0: i32) -> (i32, i32) {
    %c0_i32 = arith.constant 0 : i32
    %c0_i32_0 = arith.constant 0 : i32
    %c0_i32_1 = arith.constant 0 : i32
    return %c0_i32, %c0_i32_0 : i32, i32
  }
  func.func @transform_4(%arg0: i32) -> (i32, i32) {
    %c0_i32 = arith.constant 0 : i32
    %c0_i32_0 = arith.constant 0 : i32
    %c0_i32_1 = arith.constant 0 : i32
    return %c0_i32, %c0_i32_0 : i32, i32
  }
  func.func @transform_5(%arg0: i32) -> (i32, i32) {
    %c0_i32 = arith.constant 0 : i32
    %c0_i32_0 = arith.constant 0 : i32
    %c0_i32_1 = arith.constant 0 : i32
    return %c0_i32, %c0_i32_0 : i32, i32
  }
  func.func @transform_6(%arg0: i32) -> (i32, i32) {
    %c0_i32 = arith.constant 0 : i32
    %c0_i32_0 = arith.constant 0 : i32
    %c0_i32_1 = arith.constant 0 : i32
    return %c0_i32, %c0_i32_0 : i32, i32
  }
  func.func @transform_7(%arg0: i32) -> (i32, i32, i32, i32) {
    %c0_i32 = arith.constant 0 : i32
    %c0_i32_0 = arith.constant 0 : i32
    %c0_i32_1 = arith.constant 0 : i32
    %c0_i32_2 = arith.constant 0 : i32
    return %arg0, %c0_i32, %c0_i32_0, %c0_i32_1 : i32, i32, i32, i32
  }
}

</mosaic_0001>

<llo_original>
// kernel: tpu_custom_call.1
$region0: #{tpu_custom_call.1}
  #allocation0 [shape = 'u32[]', space=smem, size = 0x4, offset = 0x4, fixed_abs, tag = 'smem constant byte address 0x4 - core index']
  #allocation1 [shape = 'u32[144,128]{1,0:T(1,128)}', space=vmem, size = 0x12000, scoped, tag = 'internal scratch']
  #allocation2 [shape = 'f32[2,18,18,128]{3,2,1,0:T(8,128)}', space=vmem, size = 0x6c000, scoped, tag = 'scratch operand']
  %s0 = inlined_call_operand.hbm [shape: bf16[2,16,16,128], index: 0, kind: input, shape index: {}]
  %s1 = inlined_call_operand.hbm [shape: bf16[128,128], index: 1, kind: input, shape index: {}]
  %s2 = inlined_call_operand.vmem [shape: f32[1,128], index: 2, kind: input, shape index: {}]
  %s3 = inlined_call_operand.hbm [shape: bf16[1152,128], index: 3, kind: input, shape index: {}]
  %s4 = inlined_call_operand.vmem [shape: f32[1,128], index: 4, kind: input, shape index: {}]
  %s5 = inlined_call_operand.hbm [shape: bf16[256,128], index: 5, kind: input, shape index: {}]
  %s6 = inlined_call_operand.vmem [shape: f32[1,128], index: 6, kind: input, shape index: {}]
  %s7 = inlined_call_operand.hbm [shape: f32[2,16,16,128], index: 7, kind: output, shape index: {}]
  %s8 = sld [smem:[#allocation0]]
  $region54: #{tpu_custom_call.1} parent=0
    _
  %s10 = ssub.s32 1, %s8
  %s11 = scalar_select 0, %s10, %s8
  $region1: #{tpu_custom_call.1} parent=0
    #allocation3 [shape = 'u8[131072]{0}', space=vmem, size = 0x20000, scoped, tag = 'input window, operand 0, single buffered']
    #allocation4 [shape = 's32[1]{0}', space=sflag, size = 0x4, scoped, tag = 'scoped memory for tpu_custom_call.1']
    #allocation5 [shape = 's32[1]{0}', space=sflag, size = 0x4, scoped, tag = 'scoped memory for tpu_custom_call.1']
    #allocation6 [shape = 'u8[32768]{0}', space=vmem, size = 0x8000, scoped, tag = 'input window, operand 1, single buffered']
    #allocation7 [shape = 's32[1]{0}', space=sflag, size = 0x4, scoped, tag = 'scoped memory for tpu_custom_call.1']
    #allocation8 [shape = 'u8[294912]{0}', space=vmem, size = 0x48000, scoped, tag = 'input window, operand 3, single buffered']
    #allocation9 [shape = 'u8[65536]{0}', space=vmem, size = 0x10000, scoped, tag = 'input window, operand 5, single buffered']
    #allocation10 [shape = 's32[1]{0}', space=sflag, size = 0x4, scoped, tag = 'scoped memory for tpu_custom_call.1']
    #allocation11 [shape = 'u8[262144]{0}', space=vmem, size = 0x40000, scoped, tag = 'output window, operand 0, single buffered']
    %12 = vsyncpa [#allocation4], 0
    %13 = vsyncpa [#allocation7], 0
    %14 = vsyncpa [#allocation10], 0
    %15 = vsyncpa [#allocation5], 0
    // Predicated region
    $region2: #{tpu_custom_call.1} parent=1 // pred_check
      _
    $region3: #{tpu_custom_call.1} parent=1 // pred_check_branch
      %17 = sbr.rel (0) target = $region5
    $region4: #{tpu_custom_call.1} parent=1 // pred_region
      %s19 = ssub.s32 4096, 4096
      %20 = vsyncadd [#allocation4], %s19
      %s21 = sshll.u32 [#allocation3], 4
      %s22 = int_to_ptr.vmem [resolvable:$true] %s21
      %27 = dma.hbm_to_vmem [thread:$0]  %s0, 4096, %s22, [#allocation4], 64, 64, 4
    $region5: #{tpu_custom_call.1} parent=1 // pred_fallthru
      _
    // Predicated region
    $region6: #{tpu_custom_call.1} parent=1 // pred_check
      _
    $region7: #{tpu_custom_call.1} parent=1 // pred_check_branch
      %29 = sbr.rel (0) target = $region9
    $region8: #{tpu_custom_call.1} parent=1 // pred_region
      %s31 = ssub.s32 1024, 1024
      %32 = vsyncadd [#allocation7], %s31
      %s33 = sshll.u32 [#allocation6], 4
      %s34 = int_to_ptr.vmem [resolvable:$true] %s33
      %39 = dma.hbm_to_vmem [thread:$0]  %s1, 1024, %s34, [#allocation7], 64, 64, 4
    $region9: #{tpu_custom_call.1} parent=1 // pred_fallthru
      _
    // Predicated region
    $region10: #{tpu_custom_call.1} parent=1 // pred_check
      _
    $region11: #{tpu_custom_call.1} parent=1 // pred_check_branch
      %41 = sbr.rel (0) target = $region13
    $region12: #{tpu_custom_call.1} parent=1 // pred_region
      _
    $region13: #{tpu_custom_call.1} parent=1 // pred_fallthru
      _
    // Predicated region
    $region14: #{tpu_custom_call.1} parent=1 // pred_check
      _
    $region15: #{tpu_custom_call.1} parent=1 // pred_check_branch
      %43 = sbr.rel (0) target = $region17
    $region16: #{tpu_custom_call.1} parent=1 // pred_region
      %s45 = ssub.s32 9216, 9216
      %46 = vsyncadd [#allocation7], %s45
      %s47 = sshll.u32 [#allocation8], 4
      %s48 = int_to_ptr.vmem [resolvable:$true] %s47
      %53 = dma.hbm_to_vmem [thread:$0]  %s3, 9216, %s48, [#allocation7], 64, 64, 4
    $region17: #{tpu_custom_call.1} parent=1 // pred_fallthru
      _
    // Predicated region
    $region18: #{tpu_custom_call.1} parent=1 // pred_check
      _
    $region19: #{tpu_custom_call.1} parent=1 // pred_check_branch
      %55 = sbr.rel (0) target = $region21
    $region20: #{tpu_custom_call.1} parent=1 // pred_region
      _
    $region21: #{tpu_custom_call.1} parent=1 // pred_fallthru
      _
    // Predicated region
    $region22: #{tpu_custom_call.1} parent=1 // pred_check
      _
    $region23: #{tpu_custom_call.1} parent=1 // pred_check_branch
      %57 = sbr.rel (0) target = $region25
    $region24: #{tpu_custom_call.1} parent=1 // pred_region
      %s59 = ssub.s32 2048, 2048
      %60 = vsyncadd [#allocation10], %s59
      %s61 = sshll.u32 [#allocation9], 4
      %s62 = int_to_ptr.vmem [resolvable:$true] %s61
      %67 = dma.hbm_to_vmem [thread:$0]  %s5, 2048, %s62, [#allocation10], 64, 64, 4
    $region25: #{tpu_custom_call.1} parent=1 // pred_fallthru
      _
    // Predicated region
    $region26: #{tpu_custom_call.1} parent=1 // pred_check
      _
    $region27: #{tpu_custom_call.1} parent=1 // pred_check_branch
      %69 = sbr.rel (0) target = $region29
    $region28: #{tpu_custom_call.1} parent=1 // pred_region
      _
    $region29: #{tpu_custom_call.1} parent=1 // pred_fallthru
      _
    // Predicated region
    $region30: #{tpu_custom_call.1} parent=1 // pred_check
      _
    $region31: #{tpu_custom_call.1} parent=1 // pred_check_branch
      %71 = sbr.rel (0) target = $region33
    $region32: #{tpu_custom_call.1} parent=1 // pred_region
      %72 = dma.done [#allocation4], 4096
    $region33: #{tpu_custom_call.1} parent=1 // pred_fallthru
      _
    // Predicated region
    $region34: #{tpu_custom_call.1} parent=1 // pred_check
      _
    $region35: #{tpu_custom_call.1} parent=1 // pred_check_branch
      %74 = sbr.rel (0) target = $region37
    $region36: #{tpu_custom_call.1} parent=1 // pred_region
      %75 = dma.done [#allocation7], 1024
    $region37: #{tpu_custom_call.1} parent=1 // pred_fallthru
      _
    // Predicated region
    $region38: #{tpu_custom_call.1} parent=1 // pred_check
      _
    $region39: #{tpu_custom_call.1} parent=1 // pred_check_branch
      %77 = sbr.rel (0) target = $region41
    $region40: #{tpu_custom_call.1} parent=1 // pred_region
      %78 = dma.done [#allocation7], 9216
    $region41: #{tpu_custom_call.1} parent=1 // pred_fallthru
      _
    // Predicated region
    $region42: #{tpu_custom_call.1} parent=1 // pred_check
      _
    $region43: #{tpu_custom_call.1} parent=1 // pred_check_branch
      %80 = sbr.rel (0) target = $region45
    $region44: #{tpu_custom_call.1} parent=1 // pred_region
      %81 = dma.done [#allocation10], 2048
    $region45: #{tpu_custom_call.1} parent=1 // pred_fallthru
      _
    %v83 = vld [vmem:[#allocation3] sm:$0xf]
    %v84 = vld [vmem:[#allocation3 + $0x4] sm:$0xf]
    %v85 = vld [vmem:[#allocation3 + $0x8] sm:$0xf]
    %v86 = vld [vmem:[#allocation3 + $0xc] sm:$0xf]
    %v87 = vld [vmem:[#allocation3 + $0x10] sm:$0xf]
    %v88 = vld [vmem:[#allocation3 + $0x14] sm:$0xf]
    %v89 = vld [vmem:[#allocation3 + $0x18] sm:$0xf]
    %v90 = vld [vmem:[#allocation3 + $0x1c] sm:$0xf]
    %v91 = vld [vmem:[#allocation3 + $0x20] sm:$0xf]
    %v92 = vld [vmem:[#allocation3 + $0x24] sm:$0xf]
    %v93 = vld [vmem:[#allocation3 + $0x28] sm:$0xf]
    %v94 = vld [vmem:[#allocation3 + $0x2c] sm:$0xf]
    %v95 = vld [vmem:[#allocation3 + $0x30] sm:$0xf]
    %v96 = vld [vmem:[#allocation3 + $0x34] sm:$0xf]
    %v97 = vld [vmem:[#allocation3 + $0x38] sm:$0xf]
    %v98 = vld [vmem:[#allocation3 + $0x3c] sm:$0xf]
    %v99 = vld [vmem:[#allocation3 + $0x40] sm:$0xf]
    %v100 = vld [vmem:[#allocation3 + $0x44] sm:$0xf]
    %v101 = vld [vmem:[#allocation3 + $0x48] sm:$0xf]
    %v102 = vld [vmem:[#allocation3 + $0x4c] sm:$0xf]
    %v103 = vld [vmem:[#allocation3 + $0x50] sm:$0xf]
    %v104 = vld [vmem:[#allocation3 + $0x54] sm:$0xf]
    %v105 = vld [vmem:[#allocation3 + $0x58] sm:$0xf]
    %v106 = vld [vmem:[#allocation3 + $0x5c] sm:$0xf]
    %v107 = vld [vmem:[#allocation3 + $0x60] sm:$0xf]
    %v108 = vld [vmem:[#allocation3 + $0x64] sm:$0xf]
    %v109 = vld [vmem:[#allocation3 + $0x68] sm:$0xf]
    %v110 = vld [vmem:[#allocation3 + $0x6c] sm:$0xf]
    %v111 = vld [vmem:[#allocation3 + $0x70] sm:$0xf]
    %v112 = vld [vmem:[#allocation3 + $0x74] sm:$0xf]
    %v113 = vld [vmem:[#allocation3 + $0x78] sm:$0xf]
    %v114 = vld [vmem:[#allocation3 + $0x7c] sm:$0xf]
    %v115 = vld [vmem:[#allocation3 + $0x80] sm:$0xf]
    %v116 = vld [vmem:[#allocation3 + $0x84] sm:$0xf]
    %v117 = vld [vmem:[#allocation3 + $0x88] sm:$0xf]
    %v118 = vld [vmem:[#allocation3 + $0x8c] sm:$0xf]
    %v119 = vld [vmem:[#allocation3 + $0x90] sm:$0xf]
    %v120 = vld [vmem:[#allocation3 + $0x94] sm:$0xf]
    %v121 = vld [vmem:[#allocation3 + $0x98] sm:$0xf]
    %v122 = vld [vmem:[#allocation3 + $0x9c] sm:$0xf]
    %v123 = vld [vmem:[#allocation3 + $0xa0] sm:$0xf]
    %v124 = vld [vmem:[#allocation3 + $0xa4] sm:$0xf]
    %v125 = vld [vmem:[#allocation3 + $0xa8] sm:$0xf]
    %v126 = vld [vmem:[#allocation3 + $0xac] sm:$0xf]
    %v127 = vld [vmem:[#allocation3 + $0xb0] sm:$0xf]
    %v128 = vld [vmem:[#allocation3 + $0xb4] sm:$0xf]
    %v129 = vld [vmem:[#allocation3 + $0xb8] sm:$0xf]
    %v130 = vld [vmem:[#allocation3 + $0xbc] sm:$0xf]
    %v131 = vld [vmem:[#allocation3 + $0xc0] sm:$0xf]
    %v132 = vld [vmem:[#allocation3 + $0xc4] sm:$0xf]
    %v133 = vld [vmem:[#allocation3 + $0xc8] sm:$0xf]
    %v134 = vld [vmem:[#allocation3 + $0xcc] sm:$0xf]
    %v135 = vld [vmem:[#allocation3 + $0xd0] sm:$0xf]
    %v136 = vld [vmem:[#allocation3 + $0xd4] sm:$0xf]
    %v137 = vld [vmem:[#allocation3 + $0xd8] sm:$0xf]
    %v138 = vld [vmem:[#allocation3 + $0xdc] sm:$0xf]
    %v139 = vld [vmem:[#allocation3 + $0xe0] sm:$0xf]
    %v140 = vld [vmem:[#allocation3 + $0xe4] sm:$0xf]
    %v141 = vld [vmem:[#allocation3 + $0xe8] sm:$0xf]
    %v142 = vld [vmem:[#allocation3 + $0xec] sm:$0xf]
    %v143 = vld [vmem:[#allocation3 + $0xf0] sm:$0xf]
    %v144 = vld [vmem:[#allocation3 + $0xf4] sm:$0xf]
    %v145 = vld [vmem:[#allocation3 + $0xf8] sm:$0xf]
    %v146 = vld [vmem:[#allocation3 + $0xfc] sm:$0xf]
    %v147 = vld [vmem:[#allocation6] sm:$0xf]
    %v148 = vld [vmem:[#allocation6 + $0x4] sm:$0xf]
    %v149 = vld [vmem:[#allocation6 + $0x8] sm:$0xf]
    %v150 = vld [vmem:[#allocation6 + $0xc] sm:$0xf]
    %v151 = vld [vmem:[#allocation6 + $0x10] sm:$0xf]
    %v152 = vld [vmem:[#allocation6 + $0x14] sm:$0xf]
    %v153 = vld [vmem:[#allocation6 + $0x18] sm:$0xf]
    %v154 = vld [vmem:[#allocation6 + $0x1c] sm:$0xf]
    %v155 = vld [vmem:[#allocation6 + $0x20] sm:$0xf]
    %v156 = vld [vmem:[#allocation6 + $0x24] sm:$0xf]
    %v157 = vld [vmem:[#allocation6 + $0x28] sm:$0xf]
    %v158 = vld [vmem:[#allocation6 + $0x2c] sm:$0xf]
    %v159 = vld [vmem:[#allocation6 + $0x30] sm:$0xf]
    %v160 = vld [vmem:[#allocation6 + $0x34] sm:$0xf]
    %v161 = vld [vmem:[#allocation6 + $0x38] sm:$0xf]
    %v162 = vld [vmem:[#allocation6 + $0x3c] sm:$0xf]
    %v163 = vld [vmem:[%s2] sm:$0x1]
    %v165 = vlaneseq
    %v166 = vshrl.u32 %v165, 7
    %v167 = vsub.s32 0, %v166
    %v168 = vrot.slane %v163, %v167
    %v234 = vunpack.c.l.b16 %v83
    %v235 = vunpack.c.l.b16 %v84
    %v236 = vunpack.c.l.b16 %v85
    %v237 = vunpack.c.l.b16 %v86
    %v238 = vunpack.c.l.b16 %v87
    %v239 = vunpack.c.l.b16 %v88
    %v240 = vunpack.c.l.b16 %v89
    %v241 = vunpack.c.l.b16 %v90
    %v242 = vunpack.c.l.b16 %v91
    %v243 = vunpack.c.l.b16 %v92
    %v244 = vunpack.c.l.b16 %v93
    %v245 = vunpack.c.l.b16 %v94
    %v246 = vunpack.c.l.b16 %v95
    %v247 = vunpack.c.l.b16 %v96
    %v248 = vunpack.c.l.b16 %v97
    %v249 = vunpack.c.l.b16 %v98
    %v250 = vunpack.c.l.b16 %v99
    %v251 = vunpack.c.l.b16 %v100
    %v252 = vunpack.c.l.b16 %v101
    %v253 = vunpack.c.l.b16 %v102
    %v254 = vunpack.c.l.b16 %v103
    %v255 = vunpack.c.l.b16 %v104
    %v256 = vunpack.c.l.b16 %v105
    %v257 = vunpack.c.l.b16 %v106
    %v258 = vunpack.c.l.b16 %v107
    %v259 = vunpack.c.l.b16 %v108
    %v260 = vunpack.c.l.b16 %v109
    %v261 = vunpack.c.l.b16 %v110
    %v262 = vunpack.c.l.b16 %v111
    %v263 = vunpack.c.l.b16 %v112
    %v264 = vunpack.c.l.b16 %v113
    %v265 = vunpack.c.l.b16 %v114
    %v266 = vunpack.c.l.b16 %v115
    %v267 = vunpack.c.l.b16 %v116
    %v268 = vunpack.c.l.b16 %v117
    %v269 = vunpack.c.l.b16 %v118
    %v270 = vunpack.c.l.b16 %v119
    %v271 = vunpack.c.l.b16 %v120
    %v272 = vunpack.c.l.b16 %v121
    %v273 = vunpack.c.l.b16 %v122
    %v274 = vunpack.c.l.b16 %v123
    %v275 = vunpack.c.l.b16 %v124
    %v276 = vunpack.c.l.b16 %v125
    %v277 = vunpack.c.l.b16 %v126
    %v278 = vunpack.c.l.b16 %v127
    %v279 = vunpack.c.l.b16 %v128
    %v280 = vunpack.c.l.b16 %v129
    %v281 = vunpack.c.l.b16 %v130
    %v282 = vunpack.c.l.b16 %v131
    %v283 = vunpack.c.l.b16 %v132
    %v284 = vunpack.c.l.b16 %v133
    %v285 = vunpack.c.l.b16 %v134
    %v286 = vunpack.c.l.b16 %v135
    %v287 = vunpack.c.l.b16 %v136
    %v288 = vunpack.c.l.b16 %v137
    %v289 = vunpack.c.l.b16 %v138
    %v290 = vunpack.c.l.b16 %v139
    %v291 = vunpack.c.l.b16 %v140
    %v292 = vunpack.c.l.b16 %v141
    %v293 = vunpack.c.l.b16 %v142
    %v294 = vunpack.c.l.b16 %v143
    %v295 = vunpack.c.l.b16 %v144
    %v296 = vunpack.c.l.b16 %v145
    %v297 = vunpack.c.l.b16 %v146
    %v298 = vpack.c.b16 %v235, %v234
    %v299 = vpack.c.b16 %v237, %v236
    %v300 = vpack.c.b16 %v239, %v238
    %v301 = vpack.c.b16 %v241, %v240
    %v302 = vpack.c.b16 %v243, %v242
    %v303 = vpack.c.b16 %v245, %v244
    %v304 = vpack.c.b16 %v247, %v246
    %v305 = vpack.c.b16 %v249, %v248
    %v306 = vpack.c.b16 %v251, %v250
    %v307 = vpack.c.b16 %v253, %v252
    %v308 = vpack.c.b16 %v255, %v254
    %v309 = vpack.c.b16 %v257, %v256
    %v310 = vpack.c.b16 %v259, %v258
    %v311 = vpack.c.b16 %v261, %v260
    %v312 = vpack.c.b16 %v263, %v262
    %v313 = vpack.c.b16 %v265, %v264
    %v314 = vpack.c.b16 %v267, %v266
    %v315 = vpack.c.b16 %v269, %v268
    %v316 = vpack.c.b16 %v271, %v270
    %v317 = vpack.c.b16 %v273, %v272
    %v318 = vpack.c.b16 %v275, %v274
    %v319 = vpack.c.b16 %v277, %v276
    %v320 = vpack.c.b16 %v279, %v278
    %v321 = vpack.c.b16 %v281, %v280
    %v322 = vpack.c.b16 %v283, %v282
    %v323 = vpack.c.b16 %v285, %v284
    %v324 = vpack.c.b16 %v287, %v286
    %v325 = vpack.c.b16 %v289, %v288
    %v326 = vpack.c.b16 %v291, %v290
    %v327 = vpack.c.b16 %v293, %v292
    %v328 = vpack.c.b16 %v295, %v294
    %v329 = vpack.c.b16 %v297, %v296
    %v378 = vunpack.c.l.b16 %v147
    %v379 = vunpack.c.l.b16 %v148
    %v380 = vunpack.c.l.b16 %v149
    %v381 = vunpack.c.l.b16 %v150
    %v382 = vunpack.c.l.b16 %v151
    %v383 = vunpack.c.l.b16 %v152
    %v384 = vunpack.c.l.b16 %v153
    %v385 = vunpack.c.l.b16 %v154
    %v386 = vunpack.c.l.b16 %v155
    %v387 = vunpack.c.l.b16 %v156
    %v388 = vunpack.c.l.b16 %v157
    %v389 = vunpack.c.l.b16 %v158
    %v390 = vunpack.c.l.b16 %v159
    %v391 = vunpack.c.l.b16 %v160
    %v392 = vunpack.c.l.b16 %v161
    %v393 = vunpack.c.l.b16 %v162
    %v394 = vpack.c.b16 %v379, %v378
    %v395 = vpack.c.b16 %v381, %v380
    %v396 = vpack.c.b16 %v383, %v382
    %v397 = vpack.c.b16 %v385, %v384
    %v398 = vpack.c.b16 %v387, %v386
    %v399 = vpack.c.b16 %v389, %v388
    %v400 = vpack.c.b16 %v391, %v390
    %v401 = vpack.c.b16 %v393, %v392
    %410 = vmatprep.subr.bf16.mxu0 0
    %411 = vmatpush1.bf16.msra.mxu0 %v394
    %412 = vmatprep.subr.bf16.mxu0 0
    %413 = vmatpush1.bf16.msra.mxu0 %v395
    %414 = vmatprep.subr.bf16.mxu0 0
    %415 = vmatpush1.bf16.msra.mxu0 %v396
    %416 = vmatprep.subr.bf16.mxu0 0
    %417 = vmatpush1.bf16.msra.mxu0 %v397
    %418 = vmatprep.subr.bf16.mxu0 0
    %419 = vmatpush1.bf16.msra.mxu0 %v398
    %420 = vmatprep.subr.bf16.mxu0 0
    %421 = vmatpush1.bf16.msra.mxu0 %v399
    %422 = vmatprep.subr.bf16.mxu0 0
    %423 = vmatpush1.bf16.msra.mxu0 %v400
    %424 = vmatprep.subr.bf16.mxu0 0
    %425 = vmatpush1.bf16.msra.mxu0 %v401
    %426 = vmatprep.subr.bf16.mxu0 0
    %427 = vmatpush1.bf16.msra.mxu0 0
    %428 = vmatprep.subr.bf16.mxu0 0
    %429 = vmatpush1.bf16.msra.mxu0 0
    %430 = vmatprep.subr.bf16.mxu0 0
    %431 = vmatpush1.bf16.msra.mxu0 0
    %432 = vmatprep.subr.bf16.mxu0 0
    %433 = vmatpush1.bf16.msra.mxu0 0
    %434 = vmatprep.subr.bf16.mxu0 0
    %435 = vmatpush1.bf16.msra.mxu0 0
    %436 = vmatprep.subr.bf16.mxu0 0
    %437 = vmatpush1.bf16.msra.mxu0 0
    %438 = vmatprep.subr.bf16.mxu0 0
    %439 = vmatpush1.bf16.msra.mxu0 0
    %440 = vmatprep.subr.bf16.mxu0 0
    %441 = vmatpush1.bf16.msra.mxu0 0
    %442 = vmatprep.mubr.bf16.mxu0 0
    %443 = vmatmul.mubr.bf16.gmra.mrb[0].mxu0 %v298
    %v444 = vpop.f32.mrb[0].mxu0
    %v445 = vadd.f32 %v168, %v444
    %v446 = vpop.f32.mrb[0].mxu0
    %v447 = vpop.f32.mrb[0].mxu0
    %v448 = vadd.f32 %v168, %v447
    %v449 = vpop.f32.mrb[0].mxu0
    %450 = vmatprep.mubr.bf16.mxu0 0
    %451 = vmatmul.mubr.bf16.gmra.mrb[0].mxu0 %v299
    %v452 = vpop.f32.mrb[0].mxu0
    %v453 = vadd.f32 %v168, %v452
    %v454 = vpop.f32.mrb[0].mxu0
    %v455 = vpop.f32.mrb[0].mxu0
    %v456 = vadd.f32 %v168, %v455
    %v457 = vpop.f32.mrb[0].mxu0
    %458 = vmatprep.mubr.bf16.mxu0 0
    %459 = vmatmul.mubr.bf16.gmra.mrb[0].mxu0 %v300
    %v460 = vpop.f32.mrb[0].mxu0
    %v461 = vadd.f32 %v168, %v460
    %v462 = vpop.f32.mrb[0].mxu0
    %v463 = vpop.f32.mrb[0].mxu0
    %v464 = vadd.f32 %v168, %v463
    %v465 = vpop.f32.mrb[0].mxu0
    %466 = vmatprep.mubr.bf16.mxu0 0
    %467 = vmatmul.mubr.bf16.gmra.mrb[0].mxu0 %v301
    %v468 = vpop.f32.mrb[0].mxu0
    %v469 = vadd.f32 %v168, %v468
    %v470 = vpop.f32.mrb[0].mxu0
    %v471 = vpop.f32.mrb[0].mxu0
    %v472 = vadd.f32 %v168, %v471
    %v473 = vpop.f32.mrb[0].mxu0
    %474 = vmatprep.mubr.bf16.mxu0 0
    %475 = vmatmul.mubr.bf16.gmra.mrb[0].mxu0 %v302
    %v476 = vpop.f32.mrb[0].mxu0
    %v477 = vadd.f32 %v168, %v476
    %v478 = vpop.f32.mrb[0].mxu0
    %v479 = vpop.f32.mrb[0].mxu0
    %v480 = vadd.f32 %v168, %v479
    %v481 = vpop.f32.mrb[0].mxu0
    %482 = vmatprep.mubr.bf16.mxu0 0
    %483 = vmatmul.mubr.bf16.gmra.mrb[0].mxu0 %v303
    %v484 = vpop.f32.mrb[0].mxu0
    %v485 = vadd.f32 %v168, %v484
    %v486 = vpop.f32.mrb[0].mxu0
    %v487 = vpop.f32.mrb[0].mxu0
    %v488 = vadd.f32 %v168, %v487
    %v489 = vpop.f32.mrb[0].mxu0
    %490 = vmatprep.mubr.bf16.mxu0 0
    %491 = vmatmul.mubr.bf16.gmra.mrb[0].mxu0 %v304
    %v492 = vpop.f32.mrb[0].mxu0
    %v493 = vadd.f32 %v168, %v492
    %v494 = vpop.f32.mrb[0].mxu0
    %v495 = vpop.f32.mrb[0].mxu0
    %v496 = vadd.f32 %v168, %v495
    %v497 = vpop.f32.mrb[0].mxu0
    %498 = vmatprep.mubr.bf16.mxu0 0
    %499 = vmatmul.mubr.bf16.gmra.mrb[0].mxu0 %v305
    %v500 = vpop.f32.mrb[0].mxu0
    %v501 = vadd.f32 %v168, %v500
    %v502 = vpop.f32.mrb[0].mxu0
    %v503 = vpop.f32.mrb[0].mxu0
    %v504 = vadd.f32 %v168, %v503
    %v505 = vpop.f32.mrb[0].mxu0
    %506 = vmatprep.mubr.bf16.mxu0 0
    %507 = vmatmul.mubr.bf16.gmra.mrb[0].mxu0 %v306
    %v508 = vpop.f32.mrb[0].mxu0
    %v509 = vadd.f32 %v168, %v508
    %v510 = vpop.f32.mrb[0].mxu0
    %v511 = vpop.f32.mrb[0].mxu0
    %v512 = vadd.f32 %v168, %v511
    %v513 = vpop.f32.mrb[0].mxu0
    %514 = vmatprep.mubr.bf16.mxu0 0
    %515 = vmatmul.mubr.bf16.gmra.mrb[0].mxu0 %v307
    %v516 = vpop.f32.mrb[0].mxu0
    %v517 = vadd.f32 %v168, %v516
    %v518 = vpop.f32.mrb[0].mxu0
    %v519 = vpop.f32.mrb[0].mxu0
    %v520 = vadd.f32 %v168, %v519
    %v521 = vpop.f32.mrb[0].mxu0
    %522 = vmatprep.mubr.bf16.mxu0 0
    %523 = vmatmul.mubr.bf16.gmra.mrb[0].mxu0 %v308
    %v524 = vpop.f32.mrb[0].mxu0
    %v525 = vadd.f32 %v168, %v524
    %v526 = vpop.f32.mrb[0].mxu0
    %v527 = vpop.f32.mrb[0].mxu0
    %v528 = vadd.f32 %v168, %v527
    %v529 = vpop.f32.mrb[0].mxu0
    %530 = vmatprep.mubr.bf16.mxu0 0
    %531 = vmatmul.mubr.bf16.gmra.mrb[0].mxu0 %v309
    %v532 = vpop.f32.mrb[0].mxu0
    %v533 = vadd.f32 %v168, %v532
    %v534 = vpop.f32.mrb[0].mxu0
    %v535 = vpop.f32.mrb[0].mxu0
    %v536 = vadd.f32 %v168, %v535
    %v537 = vpop.f32.mrb[0].mxu0
    %538 = vmatprep.mubr.bf16.mxu0 0
    %539 = vmatmul.mubr.bf16.gmra.mrb[0].mxu0 %v310
    %v540 = vpop.f32.mrb[0].mxu0
    %v541 = vadd.f32 %v168, %v540
    %v542 = vpop.f32.mrb[0].mxu0
    %v543 = vpop.f32.mrb[0].mxu0
    %v544 = vadd.f32 %v168, %v543
    %v545 = vpop.f32.mrb[0].mxu0
    %546 = vmatprep.mubr.bf16.mxu0 0
    %547 = vmatmul.mubr.bf16.gmra.mrb[0].mxu0 %v311
    %v548 = vpop.f32.mrb[0].mxu0
    %v549 = vadd.f32 %v168, %v548
    %v550 = vpop.f32.mrb[0].mxu0
    %v551 = vpop.f32.mrb[0].mxu0
    %v552 = vadd.f32 %v168, %v551
    %v553 = vpop.f32.mrb[0].mxu0
    %554 = vmatprep.mubr.bf16.mxu0 0
    %555 = vmatmul.mubr.bf16.gmra.mrb[0].mxu0 %v312
    %v556 = vpop.f32.mrb[0].mxu0
    %v557 = vadd.f32 %v168, %v556
    %v558 = vpop.f32.mrb[0].mxu0
    %v559 = vpop.f32.mrb[0].mxu0
    %v560 = vadd.f32 %v168, %v559
    %v561 = vpop.f32.mrb[0].mxu0
    %562 = vmatprep.mubr.bf16.mxu0 0
    %563 = vmatmul.mubr.bf16.gmra.mrb[0].mxu0 %v313
    %v564 = vpop.f32.mrb[0].mxu0
    %v565 = vadd.f32 %v168, %v564
    %v566 = vpop.f32.mrb[0].mxu0
    %v567 = vpop.f32.mrb[0].mxu0
    %v568 = vadd.f32 %v168, %v567
    %v569 = vpop.f32.mrb[0].mxu0
    %570 = vmatprep.mubr.bf16.mxu0 0
    %571 = vmatmul.mubr.bf16.gmra.mrb[0].mxu0 %v314
    %v572 = vpop.f32.mrb[0].mxu0
    %v573 = vadd.f32 %v168, %v572
    %v574 = vpop.f32.mrb[0].mxu0
    %v575 = vpop.f32.mrb[0].mxu0
    %v576 = vadd.f32 %v168, %v575
    %v577 = vpop.f32.mrb[0].mxu0
    %578 = vmatprep.mubr.bf16.mxu0 0
    %579 = vmatmul.mubr.bf16.gmra.mrb[0].mxu0 %v315
    %v580 = vpop.f32.mrb[0].mxu0
    %v581 = vadd.f32 %v168, %v580
    %v582 = vpop.f32.mrb[0].mxu0
    %v583 = vpop.f32.mrb[0].mxu0
    %v584 = vadd.f32 %v168, %v583
    %v585 = vpop.f32.mrb[0].mxu0
    %586 = vmatprep.mubr.bf16.mxu0 0
    %587 = vmatmul.mubr.bf16.gmra.mrb[0].mxu0 %v316
    %v588 = vpop.f32.mrb[0].mxu0
    %v589 = vadd.f32 %v168, %v588
    %v590 = vpop.f32.mrb[0].mxu0
    %v591 = vpop.f32.mrb[0].mxu0
    %v592 = vadd.f32 %v168, %v591
    %v593 = vpop.f32.mrb[0].mxu0
    %594 = vmatprep.mubr.bf16.mxu0 0
    %595 = vmatmul.mubr.bf16.gmra.mrb[0].mxu0 %v317
    %v596 = vpop.f32.mrb[0].mxu0
    %v597 = vadd.f32 %v168, %v596
    %v598 = vpop.f32.mrb[0].mxu0
    %v599 = vpop.f32.mrb[0].mxu0
    %v600 = vadd.f32 %v168, %v599
    %v601 = vpop.f32.mrb[0].mxu0
    %602 = vmatprep.mubr.bf16.mxu0 0
    %603 = vmatmul.mubr.bf16.gmra.mrb[0].mxu0 %v318
    %v604 = vpop.f32.mrb[0].mxu0
    %v605 = vadd.f32 %v168, %v604
    %v606 = vpop.f32.mrb[0].mxu0
    %v607 = vpop.f32.mrb[0].mxu0
    %v608 = vadd.f32 %v168, %v607
    %v609 = vpop.f32.mrb[0].mxu0
    %610 = vmatprep.mubr.bf16.mxu0 0
    %611 = vmatmul.mubr.bf16.gmra.mrb[0].mxu0 %v319
    %v612 = vpop.f32.mrb[0].mxu0
    %v613 = vadd.f32 %v168, %v612
    %v614 = vpop.f32.mrb[0].mxu0
    %v615 = vpop.f32.mrb[0].mxu0
    %v616 = vadd.f32 %v168, %v615
    %v617 = vpop.f32.mrb[0].mxu0
    %618 = vmatprep.mubr.bf16.mxu0 0
    %619 = vmatmul.mubr.bf16.gmra.mrb[0].mxu0 %v320
    %v620 = vpop.f32.mrb[0].mxu0
    %v621 = vadd.f32 %v168, %v620
    %v622 = vpop.f32.mrb[0].mxu0
    %v623 = vpop.f32.mrb[0].mxu0
    %v624 = vadd.f32 %v168, %v623
    %v625 = vpop.f32.mrb[0].mxu0
    %626 = vmatprep.mubr.bf16.mxu0 0
    %627 = vmatmul.mubr.bf16.gmra.mrb[0].mxu0 %v321
    %v628 = vpop.f32.mrb[0].mxu0
    %v629 = vadd.f32 %v168, %v628
    %v630 = vpop.f32.mrb[0].mxu0
    %v631 = vpop.f32.mrb[0].mxu0
    %v632 = vadd.f32 %v168, %v631
    %v633 = vpop.f32.mrb[0].mxu0
    %634 = vmatprep.mubr.bf16.mxu0 0
    %635 = vmatmul.mubr.bf16.gmra.mrb[0].mxu0 %v322
    %v636 = vpop.f32.mrb[0].mxu0
    %v637 = vadd.f32 %v168, %v636
    %v638 = vpop.f32.mrb[0].mxu0
    %v639 = vpop.f32.mrb[0].mxu0
    %v640 = vadd.f32 %v168, %v639
    %v641 = vpop.f32.mrb[0].mxu0
    %642 = vmatprep.mubr.bf16.mxu0 0
    %643 = vmatmul.mubr.bf16.gmra.mrb[0].mxu0 %v323
    %v644 = vpop.f32.mrb[0].mxu0
    %v645 = vadd.f32 %v168, %v644
    %v646 = vpop.f32.mrb[0].mxu0
    %v647 = vpop.f32.mrb[0].mxu0
    %v648 = vadd.f32 %v168, %v647
    %v649 = vpop.f32.mrb[0].mxu0
    %650 = vmatprep.mubr.bf16.mxu0 0
    %651 = vmatmul.mubr.bf16.gmra.mrb[0].mxu0 %v324
    %v652 = vpop.f32.mrb[0].mxu0
    %v653 = vadd.f32 %v168, %v652
    %v654 = vpop.f32.mrb[0].mxu0
    %v655 = vpop.f32.mrb[0].mxu0
    %v656 = vadd.f32 %v168, %v655
    %v657 = vpop.f32.mrb[0].mxu0
    %658 = vmatprep.mubr.bf16.mxu0 0
    %659 = vmatmul.mubr.bf16.gmra.mrb[0].mxu0 %v325
    %v660 = vpop.f32.mrb[0].mxu0
    %v661 = vadd.f32 %v168, %v660
    %v662 = vpop.f32.mrb[0].mxu0
    %v663 = vpop.f32.mrb[0].mxu0
    %v664 = vadd.f32 %v168, %v663
    %v665 = vpop.f32.mrb[0].mxu0
    %666 = vmatprep.mubr.bf16.mxu0 0
    %667 = vmatmul.mubr.bf16.gmra.mrb[0].mxu0 %v326
    %v668 = vpop.f32.mrb[0].mxu0
    %v669 = vadd.f32 %v168, %v668
    %v670 = vpop.f32.mrb[0].mxu0
    %v671 = vpop.f32.mrb[0].mxu0
    %v672 = vadd.f32 %v168, %v671
    %v673 = vpop.f32.mrb[0].mxu0
    %674 = vmatprep.mubr.bf16.mxu0 0
    %675 = vmatmul.mubr.bf16.gmra.mrb[0].mxu0 %v327
    %v676 = vpop.f32.mrb[0].mxu0
    %v677 = vadd.f32 %v168, %v676
    %v678 = vpop.f32.mrb[0].mxu0
    %v679 = vpop.f32.mrb[0].mxu0
    %v680 = vadd.f32 %v168, %v679
    %v681 = vpop.f32.mrb[0].mxu0
    %682 = vmatprep.mubr.bf16.mxu0 0
    %683 = vmatmul.mubr.bf16.gmra.mrb[0].mxu0 %v328
    %v684 = vpop.f32.mrb[0].mxu0
    %v685 = vadd.f32 %v168, %v684
    %v686 = vpop.f32.mrb[0].mxu0
    %v687 = vpop.f32.mrb[0].mxu0
    %v688 = vadd.f32 %v168, %v687
    %v689 = vpop.f32.mrb[0].mxu0
    %690 = vmatprep.mubr.bf16.mxu0 0
    %691 = vmatmul.mubr.bf16.gmra.mrb[0].mxu0 %v329
    %v692 = vpop.f32.mrb[0].mxu0
    %v693 = vadd.f32 %v168, %v692
    %v694 = vpop.f32.mrb[0].mxu0
    %v695 = vpop.f32.mrb[0].mxu0
    %v696 = vadd.f32 %v168, %v695
    %v697 = vpop.f32.mrb[0].mxu0
    %698 = vdwg.mxu0
    %v699 = vmax.f32 %v445, 0.0
    %v700 = vmax.f32 %v448, 0.0
    %v701 = vmax.f32 %v453, 0.0
    %v702 = vmax.f32 %v456, 0.0
    %v703 = vmax.f32 %v461, 0.0
    %v704 = vmax.f32 %v464, 0.0
    %v705 = vmax.f32 %v469, 0.0
    %v706 = vmax.f32 %v472, 0.0
    %v707 = vmax.f32 %v477, 0.0
    %v708 = vmax.f32 %v480, 0.0
    %v709 = vmax.f32 %v485, 0.0
    %v710 = vmax.f32 %v488, 0.0
    %v711 = vmax.f32 %v493, 0.0
    %v712 = vmax.f32 %v496, 0.0
    %v713 = vmax.f32 %v501, 0.0
    %v714 = vmax.f32 %v504, 0.0
    %v715 = vmax.f32 %v509, 0.0
    %v716 = vmax.f32 %v512, 0.0
    %v717 = vmax.f32 %v517, 0.0
    %v718 = vmax.f32 %v520, 0.0
    %v719 = vmax.f32 %v525, 0.0
    %v720 = vmax.f32 %v528, 0.0
    %v721 = vmax.f32 %v533, 0.0
    %v722 = vmax.f32 %v536, 0.0
    %v723 = vmax.f32 %v541, 0.0
    %v724 = vmax.f32 %v544, 0.0
    %v725 = vmax.f32 %v549, 0.0
    %v726 = vmax.f32 %v552, 0.0
    %v727 = vmax.f32 %v557, 0.0
    %v728 = vmax.f32 %v560, 0.0
    %v729 = vmax.f32 %v565, 0.0
    %v730 = vmax.f32 %v568, 0.0
    %v731 = vmax.f32 %v573, 0.0
    %v732 = vmax.f32 %v576, 0.0
    %v733 = vmax.f32 %v581, 0.0
    %v734 = vmax.f32 %v584, 0.0
    %v735 = vmax.f32 %v589, 0.0
    %v736 = vmax.f32 %v592, 0.0
    %v737 = vmax.f32 %v597, 0.0
    %v738 = vmax.f32 %v600, 0.0
    %v739 = vmax.f32 %v605, 0.0
    %v740 = vmax.f32 %v608, 0.0
    %v741 = vmax.f32 %v613, 0.0
    %v742 = vmax.f32 %v616, 0.0
    %v743 = vmax.f32 %v621, 0.0
    %v744 = vmax.f32 %v624, 0.0
    %v745 = vmax.f32 %v629, 0.0
    %v746 = vmax.f32 %v632, 0.0
    %v747 = vmax.f32 %v637, 0.0
    %v748 = vmax.f32 %v640, 0.0
    %v749 = vmax.f32 %v645, 0.0
    %v750 = vmax.f32 %v648, 0.0
    %v751 = vmax.f32 %v653, 0.0
    %v752 = vmax.f32 %v656, 0.0
    %v753 = vmax.f32 %v661, 0.0
    %v754 = vmax.f32 %v664, 0.0
    %v755 = vmax.f32 %v669, 0.0
    %v756 = vmax.f32 %v672, 0.0
    %v757 = vmax.f32 %v677, 0.0
    %v758 = vmax.f32 %v680, 0.0
    %v759 = vmax.f32 %v685, 0.0
    %v760 = vmax.f32 %v688, 0.0
    %v761 = vmax.f32 %v693, 0.0
    %v762 = vmax.f32 %v696, 0.0
    %763 = vst [vmem:[#allocation2] sm:$0xff] 0.0
    %764 = vst [vmem:[#allocation2 + $0x8] sm:$0xff] 0.0
    %765 = vst [vmem:[#allocation2 + $0x10] sm:$0x3] 0.0
    %766 = vst [vmem:[#allocation2 + $0x18] sm:$0xff] 0.0
    %767 = vst [vmem:[#allocation2 + $0x20] sm:$0xff] 0.0
    %768 = vst [vmem:[#allocation2 + $0x28] sm:$0x3] 0.0
    %769 = vst [vmem:[#allocation2 + $0x30] sm:$0xff] 0.0
    %770 = vst [vmem:[#allocation2 + $0x38] sm:$0xff] 0.0
    %771 = vst [vmem:[#allocation2 + $0x40] sm:$0x3] 0.0
    %772 = vst [vmem:[#allocation2 + $0x48] sm:$0xff] 0.0
    %773 = vst [vmem:[#allocation2 + $0x50] sm:$0xff] 0.0
    %774 = vst [vmem:[#allocation2 + $0x58] sm:$0x3] 0.0
    %775 = vst [vmem:[#allocation2 + $0x60] sm:$0xff] 0.0
    %776 = vst [vmem:[#allocation2 + $0x68] sm:$0xff] 0.0
    %777 = vst [vmem:[#allocation2 + $0x70] sm:$0x3] 0.0
    %778 = vst [vmem:[#allocation2 + $0x78] sm:$0xff] 0.0
    %779 = vst [vmem:[#allocation2 + $0x80] sm:$0xff] 0.0
    %780 = vst [vmem:[#allocation2 + $0x88] sm:$0x3] 0.0
    %781 = vst [vmem:[#allocation2 + $0x90] sm:$0xff] 0.0
    %782 = vst [vmem:[#allocation2 + $0x98] sm:$0xff] 0.0
    %783 = vst [vmem:[#allocation2 + $0xa0] sm:$0x3] 0.0
    %784 = vst [vmem:[#allocation2 + $0xa8] sm:$0xff] 0.0
    %785 = vst [vmem:[#allocation2 + $0xb0] sm:$0xff] 0.0
    %786 = vst [vmem:[#allocation2 + $0xb8] sm:$0x3] 0.0
    %787 = vst [vmem:[#allocation2 + $0xc0] sm:$0xff] 0.0
    %788 = vst [vmem:[#allocation2 + $0xc8] sm:$0xff] 0.0
    %789 = vst [vmem:[#allocation2 + $0xd0] sm:$0x3] 0.0
    %790 = vst [vmem:[#allocation2 + $0xd8] sm:$0xff] 0.0
    %791 = vst [vmem:[#allocation2 + $0xe0] sm:$0xff] 0.0
    %792 = vst [vmem:[#allocation2 + $0xe8] sm:$0x3] 0.0
    %793 = vst [vmem:[#allocation2 + $0xf0] sm:$0xff] 0.0
    %794 = vst [vmem:[#allocation2 + $0xf8] sm:$0xff] 0.0
    %795 = vst [vmem:[#allocation2 + $0x100] sm:$0x3] 0.0
    %796 = vst [vmem:[#allocation2 + $0x108] sm:$0xff] 0.0
    %797 = vst [vmem:[#allocation2 + $0x110] sm:$0xff] 0.0
    %798 = vst [vmem:[#allocation2 + $0x118] sm:$0x3] 0.0
    %799 = vst [vmem:[#allocation2 + $0x120] sm:$0xff] 0.0
    %800 = vst [vmem:[#allocation2 + $0x128] sm:$0xff] 0.0
    %801 = vst [vmem:[#allocation2 + $0x130] sm:$0x3] 0.0
    %802 = vst [vmem:[#allocation2 + $0x138] sm:$0xff] 0.0
    %803 = vst [vmem:[#allocation2 + $0x140] sm:$0xff] 0.0
    %804 = vst [vmem:[#allocation2 + $0x148] sm:$0x3] 0.0
    %805 = vst [vmem:[#allocation2 + $0x150] sm:$0xff] 0.0
    %806 = vst [vmem:[#allocation2 + $0x158] sm:$0xff] 0.0
    %807 = vst [vmem:[#allocation2 + $0x160] sm:$0x3] 0.0
    %808 = vst [vmem:[#allocation2 + $0x168] sm:$0xff] 0.0
    %809 = vst [vmem:[#allocation2 + $0x170] sm:$0xff] 0.0
    %810 = vst [vmem:[#allocation2 + $0x178] sm:$0x3] 0.0
    %811 = vst [vmem:[#allocation2 + $0x180] sm:$0xff] 0.0
    %812 = vst [vmem:[#allocation2 + $0x188] sm:$0xff] 0.0
    %813 = vst [vmem:[#allocation2 + $0x190] sm:$0x3] 0.0
    %814 = vst [vmem:[#allocation2 + $0x198] sm:$0xff] 0.0
    %815 = vst [vmem:[#allocation2 + $0x1a0] sm:$0xff] 0.0
    %816 = vst [vmem:[#allocation2 + $0x1a8] sm:$0x3] 0.0
    %817 = vst [vmem:[#allocation2 + $0x1b0] sm:$0xff] 0.0
    %818 = vst [vmem:[#allocation2 + $0x1b8] sm:$0xff] 0.0
    %819 = vst [vmem:[#allocation2 + $0x1c0] sm:$0x3] 0.0
    %820 = vst [vmem:[#allocation2 + $0x1c8] sm:$0xff] 0.0
    %821 = vst [vmem:[#allocation2 + $0x1d0] sm:$0xff] 0.0
    %822 = vst [vmem:[#allocation2 + $0x1d8] sm:$0x3] 0.0
    %823 = vst [vmem:[#allocation2 + $0x1e0] sm:$0xff] 0.0
    %824 = vst [vmem:[#allocation2 + $0x1e8] sm:$0xff] 0.0
    %825 = vst [vmem:[#allocation2 + $0x1f0] sm:$0x3] 0.0
    %826 = vst [vmem:[#allocation2 + $0x1f8] sm:$0xff] 0.0
    %827 = vst [vmem:[#allocation2 + $0x200] sm:$0xff] 0.0
    %828 = vst [vmem:[#allocation2 + $0x208] sm:$0x3] 0.0
    %829 = vst [vmem:[#allocation2 + $0x210] sm:$0xff] 0.0
    %830 = vst [vmem:[#allocation2 + $0x218] sm:$0xff] 0.0
    %831 = vst [vmem:[#allocation2 + $0x220] sm:$0x3] 0.0
    %832 = vst [vmem:[#allocation2 + $0x228] sm:$0xff] 0.0
    %833 = vst [vmem:[#allocation2 + $0x230] sm:$0xff] 0.0
    %834 = vst [vmem:[#allocation2 + $0x238] sm:$0x3] 0.0
    %835 = vst [vmem:[#allocation2 + $0x240] sm:$0xff] 0.0
    %836 = vst [vmem:[#allocation2 + $0x248] sm:$0xff] 0.0
    %837 = vst [vmem:[#allocation2 + $0x250] sm:$0x3] 0.0
    %838 = vst [vmem:[#allocation2 + $0x258] sm:$0xff] 0.0
    %839 = vst [vmem:[#allocation2 + $0x260] sm:$0xff] 0.0
    %840 = vst [vmem:[#allocation2 + $0x268] sm:$0x3] 0.0
    %841 = vst [vmem:[#allocation2 + $0x270] sm:$0xff] 0.0
    %842 = vst [vmem:[#allocation2 + $0x278] sm:$0xff] 0.0
    %843 = vst [vmem:[#allocation2 + $0x280] sm:$0x3] 0.0
    %844 = vst [vmem:[#allocation2 + $0x288] sm:$0xff] 0.0
    %845 = vst [vmem:[#allocation2 + $0x290] sm:$0xff] 0.0
    %846 = vst [vmem:[#allocation2 + $0x298] sm:$0x3] 0.0
    %847 = vst [vmem:[#allocation2 + $0x2a0] sm:$0xff] 0.0
    %848 = vst [vmem:[#allocation2 + $0x2a8] sm:$0xff] 0.0
    %849 = vst [vmem:[#allocation2 + $0x2b0] sm:$0x3] 0.0
    %850 = vst [vmem:[#allocation2 + $0x2b8] sm:$0xff] 0.0
    %851 = vst [vmem:[#allocation2 + $0x2c0] sm:$0xff] 0.0
    %852 = vst [vmem:[#allocation2 + $0x2c8] sm:$0x3] 0.0
    %853 = vst [vmem:[#allocation2 + $0x2d0] sm:$0xff] 0.0
    %854 = vst [vmem:[#allocation2 + $0x2d8] sm:$0xff] 0.0
    %855 = vst [vmem:[#allocation2 + $0x2e0] sm:$0x3] 0.0
    %856 = vst [vmem:[#allocation2 + $0x2e8] sm:$0xff] 0.0
    %857 = vst [vmem:[#allocation2 + $0x2f0] sm:$0xff] 0.0
    %858 = vst [vmem:[#allocation2 + $0x2f8] sm:$0x3] 0.0
    %859 = vst [vmem:[#allocation2 + $0x300] sm:$0xff] 0.0
    %860 = vst [vmem:[#allocation2 + $0x308] sm:$0xff] 0.0
    %861 = vst [vmem:[#allocation2 + $0x310] sm:$0x3] 0.0
    %862 = vst [vmem:[#allocation2 + $0x318] sm:$0xff] 0.0
    %863 = vst [vmem:[#allocation2 + $0x320] sm:$0xff] 0.0
    %864 = vst [vmem:[#allocation2 + $0x328] sm:$0x3] 0.0
    %865 = vst [vmem:[#allocation2 + $0x330] sm:$0xff] 0.0
    %866 = vst [vmem:[#allocation2 + $0x338] sm:$0xff] 0.0
    %867 = vst [vmem:[#allocation2 + $0x340] sm:$0x3] 0.0
    %868 = vst [vmem:[#allocation2 + $0x348] sm:$0xff] 0.0
    %869 = vst [vmem:[#allocation2 + $0x350] sm:$0xff] 0.0
    %870 = vst [vmem:[#allocation2 + $0x358] sm:$0x3] 0.0
    %s871 = scalar_lea.vmem [#allocation2], 24
    %872 = vst [vmem:[%s871 + $0x1] sm:$0xff] %v699
    %873 = vst [vmem:[%s871 + $0x9] sm:$0xff] %v700
    %874 = vst [vmem:[%s871 + $0x19] sm:$0xff] %v701
    %875 = vst [vmem:[%s871 + $0x21] sm:$0xff] %v702
    %876 = vst [vmem:[%s871 + $0x31] sm:$0xff] %v703
    %877 = vst [vmem:[%s871 + $0x39] sm:$0xff] %v704
    %878 = vst [vmem:[%s871 + $0x49] sm:$0xff] %v705
    %879 = vst [vmem:[%s871 + $0x51] sm:$0xff] %v706
    %880 = vst [vmem:[%s871 + $0x61] sm:$0xff] %v707
    %881 = vst [vmem:[%s871 + $0x69] sm:$0xff] %v708
    %882 = vst [vmem:[%s871 + $0x79] sm:$0xff] %v709
    %883 = vst [vmem:[%s871 + $0x81] sm:$0xff] %v710
    %884 = vst [vmem:[%s871 + $0x91] sm:$0xff] %v711
    %885 = vst [vmem:[%s871 + $0x99] sm:$0xff] %v712
    %886 = vst [vmem:[%s871 + $0xa9] sm:$0xff] %v713
    %887 = vst [vmem:[%s871 + $0xb1] sm:$0xff] %v714
    %888 = vst [vmem:[%s871 + $0xc1] sm:$0xff] %v715
    %889 = vst [vmem:[%s871 + $0xc9] sm:$0xff] %v716
    %890 = vst [vmem:[%s871 + $0xd9] sm:$0xff] %v717
    %891 = vst [vmem:[%s871 + $0xe1] sm:$0xff] %v718
    %892 = vst [vmem:[%s871 + $0xf1] sm:$0xff] %v719
    %893 = vst [vmem:[%s871 + $0xf9] sm:$0xff] %v720
    %894 = vst [vmem:[%s871 + $0x109] sm:$0xff] %v721
    %895 = vst [vmem:[%s871 + $0x111] sm:$0xff] %v722
    %896 = vst [vmem:[%s871 + $0x121] sm:$0xff] %v723
    %897 = vst [vmem:[%s871 + $0x129] sm:$0xff] %v724
    %898 = vst [vmem:[%s871 + $0x139] sm:$0xff] %v725
    %899 = vst [vmem:[%s871 + $0x141] sm:$0xff] %v726
    %900 = vst [vmem:[%s871 + $0x151] sm:$0xff] %v727
    %901 = vst [vmem:[%s871 + $0x159] sm:$0xff] %v728
    %902 = vst [vmem:[%s871 + $0x169] sm:$0xff] %v729
    %903 = vst [vmem:[%s871 + $0x171] sm:$0xff] %v730
    %904 = vst [vmem:[%s871 + $0x1b1] sm:$0xff] %v731
    %905 = vst [vmem:[%s871 + $0x1b9] sm:$0xff] %v732
    %906 = vst [vmem:[%s871 + $0x1c9] sm:$0xff] %v733
    %907 = vst [vmem:[%s871 + $0x1d1] sm:$0xff] %v734
    %908 = vst [vmem:[%s871 + $0x1e1] sm:$0xff] %v735
    %909 = vst [vmem:[%s871 + $0x1e9] sm:$0xff] %v736
    %910 = vst [vmem:[%s871 + $0x1f9] sm:$0xff] %v737
    %911 = vst [vmem:[%s871 + $0x201] sm:$0xff] %v738
    %912 = vst [vmem:[%s871 + $0x211] sm:$0xff] %v739
    %913 = vst [vmem:[%s871 + $0x219] sm:$0xff] %v740
    %914 = vst [vmem:[%s871 + $0x229] sm:$0xff] %v741
    %915 = vst [vmem:[%s871 + $0x231] sm:$0xff] %v742
    %916 = vst [vmem:[%s871 + $0x241] sm:$0xff] %v743
    %917 = vst [vmem:[%s871 + $0x249] sm:$0xff] %v744
    %918 = vst [vmem:[%s871 + $0x259] sm:$0xff] %v745
    %919 = vst [vmem:[%s871 + $0x261] sm:$0xff] %v746
    %920 = vst [vmem:[%s871 + $0x271] sm:$0xff] %v747
    %921 = vst [vmem:[%s871 + $0x279] sm:$0xff] %v748
    %922 = vst [vmem:[%s871 + $0x289] sm:$0xff] %v749
    %923 = vst [vmem:[%s871 + $0x291] sm:$0xff] %v750
    %924 = vst [vmem:[%s871 + $0x2a1] sm:$0xff] %v751
    %925 = vst [vmem:[%s871 + $0x2a9] sm:$0xff] %v752
    %926 = vst [vmem:[%s871 + $0x2b9] sm:$0xff] %v753
    %927 = vst [vmem:[%s871 + $0x2c1] sm:$0xff] %v754
    %928 = vst [vmem:[%s871 + $0x2d1] sm:$0xff] %v755
    %929 = vst [vmem:[%s871 + $0x2d9] sm:$0xff] %v756
    %930 = vst [vmem:[%s871 + $0x2e9] sm:$0xff] %v757
    %931 = vst [vmem:[%s871 + $0x2f1] sm:$0xff] %v758
    %932 = vst [vmem:[%s871 + $0x301] sm:$0xff] %v759
    %933 = vst [vmem:[%s871 + $0x309] sm:$0xff] %v760
    %934 = vst [vmem:[%s871 + $0x319] sm:$0xff] %v761
    %935 = vst [vmem:[%s871 + $0x321] sm:$0xff] %v762
    %v936 = vld [vmem:[#allocation2] sm:$0xff]
    %v937 = vld [vmem:[#allocation2 + $0x8] sm:$0xff]
    %v938 = vld [vmem:[#allocation2 + $0x18] sm:$0xff]
    %v939 = vld [vmem:[#allocation2 + $0x20] sm:$0xff]
    %v940 = vld [vmem:[#allocation2 + $0x30] sm:$0xff]
    %v941 = vld [vmem:[#allocation2 + $0x38] sm:$0xff]
    %v942 = vld [vmem:[#allocation2 + $0x48] sm:$0xff]
    %v943 = vld [vmem:[#allocation2 + $0x50] sm:$0xff]
    %v944 = vld [vmem:[#allocation2 + $0x60] sm:$0xff]
    %v945 = vld [vmem:[#allocation2 + $0x68] sm:$0xff]
    %v946 = vld [vmem:[#allocation2 + $0x78] sm:$0xff]
    %v947 = vld [vmem:[#allocation2 + $0x80] sm:$0xff]
    %v948 = vld [vmem:[#allocation2 + $0x90] sm:$0xff]
    %v949 = vld [vmem:[#allocation2 + $0x98] sm:$0xff]
    %v950 = vld [vmem:[#allocation2 + $0xa8] sm:$0xff]
    %v951 = vld [vmem:[#allocation2 + $0xb0] sm:$0xff]
    %v952 = vld [vmem:[#allocation2 + $0xc0] sm:$0xff]
    %v953 = vld [vmem:[#allocation2 + $0xc8] sm:$0xff]
    %v954 = vld [vmem:[#allocation2 + $0xd8] sm:$0xff]
    %v955 = vld [vmem:[#allocation2 + $0xe0] sm:$0xff]
    %v956 = vld [vmem:[#allocation2 + $0xf0] sm:$0xff]
    %v957 = vld [vmem:[#allocation2 + $0xf8] sm:$0xff]
    %v958 = vld [vmem:[#allocation2 + $0x108] sm:$0xff]
    %v959 = vld [vmem:[#allocation2 + $0x110] sm:$0xff]
    %v960 = vld [vmem:[#allocation2 + $0x120] sm:$0xff]
    %v961 = vld [vmem:[#allocation2 + $0x128] sm:$0xff]
    %v962 = vld [vmem:[#allocation2 + $0x138] sm:$0xff]
    %v963 = vld [vmem:[#allocation2 + $0x140] sm:$0xff]
    %v964 = vld [vmem:[#allocation2 + $0x150] sm:$0xff]
    %v965 = vld [vmem:[#allocation2 + $0x158] sm:$0xff]
    %v966 = vld [vmem:[#allocation2 + $0x168] sm:$0xff]
    %v967 = vld [vmem:[#allocation2 + $0x170] sm:$0xff]
    %v968 = vld [vmem:[#allocation2 + $0x1b0] sm:$0xff]
    %v969 = vld [vmem:[#allocation2 + $0x1b8] sm:$0xff]
    %v970 = vld [vmem:[#allocation2 + $0x1c8] sm:$0xff]
    %v971 = vld [vmem:[#allocation2 + $0x1d0] sm:$0xff]
    %v972 = vld [vmem:[#allocation2 + $0x1e0] sm:$0xff]
    %v973 = vld [vmem:[#allocation2 + $0x1e8] sm:$0xff]
    %v974 = vld [vmem:[#allocation2 + $0x1f8] sm:$0xff]
    %v975 = vld [vmem:[#allocation2 + $0x200] sm:$0xff]
    %v976 = vld [vmem:[#allocation2 + $0x210] sm:$0xff]
    %v977 = vld [vmem:[#allocation2 + $0x218] sm:$0xff]
    %v978 = vld [vmem:[#allocation2 + $0x228] sm:$0xff]
    %v979 = vld [vmem:[#allocation2 + $0x230] sm:$0xff]
    %v980 = vld [vmem:[#allocation2 + $0x240] sm:$0xff]
    %v981 = vld [vmem:[#allocation2 + $0x248] sm:$0xff]
    %v982 = vld [vmem:[#allocation2 + $0x258] sm:$0xff]
    %v983 = vld [vmem:[#allocation2 + $0x260] sm:$0xff]
    %v984 = vld [vmem:[#allocation2 + $0x270] sm:$0xff]
    %v985 = vld [vmem:[#allocation2 + $0x278] sm:$0xff]
    %v986 = vld [vmem:[#allocation2 + $0x288] sm:$0xff]
    %v987 = vld [vmem:[#allocation2 + $0x290] sm:$0xff]
    %v988 = vld [vmem:[#allocation2 + $0x2a0] sm:$0xff]
    %v989 = vld [vmem:[#allocation2 + $0x2a8] sm:$0xff]
    %v990 = vld [vmem:[#allocation2 + $0x2b8] sm:$0xff]
    %v991 = vld [vmem:[#allocation2 + $0x2c0] sm:$0xff]
    %v992 = vld [vmem:[#allocation2 + $0x2d0] sm:$0xff]
    %v993 = vld [vmem:[#allocation2 + $0x2d8] sm:$0xff]
    %v994 = vld [vmem:[#allocation2 + $0x2e8] sm:$0xff]
    %v995 = vld [vmem:[#allocation2 + $0x2f0] sm:$0xff]
    %v996 = vld [vmem:[#allocation2 + $0x300] sm:$0xff]
    %v997 = vld [vmem:[#allocation2 + $0x308] sm:$0xff]
    %v998 = vld [vmem:[#allocation2 + $0x318] sm:$0xff]
    %v999 = vld [vmem:[#allocation2 + $0x320] sm:$0xff]
    %v1000 = vpack.c.bf16 %v937, %v936
    %v1001 = vpack.c.bf16 %v939, %v938
    %v1002 = vpack.c.bf16 %v941, %v940
    %v1003 = vpack.c.bf16 %v943, %v942
    %v1004 = vpack.c.bf16 %v945, %v944
    %v1005 = vpack.c.bf16 %v947, %v946
    %v1006 = vpack.c.bf16 %v949, %v948
    %v1007 = vpack.c.bf16 %v951, %v950
    %v1008 = vpack.c.bf16 %v953, %v952
    %v1009 = vpack.c.bf16 %v955, %v954
    %v1010 = vpack.c.bf16 %v957, %v956
    %v1011 = vpack.c.bf16 %v959, %v958
    %v1012 = vpack.c.bf16 %v961, %v960
    %v1013 = vpack.c.bf16 %v963, %v962
    %v1014 = vpack.c.bf16 %v965, %v964
    %v1015 = vpack.c.bf16 %v967, %v966
    %v1016 = vpack.c.bf16 %v969, %v968
    %v1017 = vpack.c.bf16 %v971, %v970
    %v1018 = vpack.c.bf16 %v973, %v972
    %v1019 = vpack.c.bf16 %v975, %v974
    %v1020 = vpack.c.bf16 %v977, %v976
    %v1021 = vpack.c.bf16 %v979, %v978
    %v1022 = vpack.c.bf16 %v981, %v980
    %v1023 = vpack.c.bf16 %v983, %v982
    %v1024 = vpack.c.bf16 %v985, %v984
    %v1025 = vpack.c.bf16 %v987, %v986
    %v1026 = vpack.c.bf16 %v989, %v988
    %v1027 = vpack.c.bf16 %v991, %v990
    %v1028 = vpack.c.bf16 %v993, %v992
    %v1029 = vpack.c.bf16 %v995, %v994
    %v1030 = vpack.c.bf16 %v997, %v996
    %v1031 = vpack.c.bf16 %v999, %v998
    %v1032 = vld [vmem:[#allocation2 + $0x1] sm:$0xff]
    %v1033 = vld [vmem:[#allocation2 + $0x9] sm:$0xff]
    %v1034 = vld [vmem:[#allocation2 + $0x19] sm:$0xff]
    %v1035 = vld [vmem:[#allocation2 + $0x21] sm:$0xff]
    %v1036 = vld [vmem:[#allocation2 + $0x31] sm:$0xff]
    %v1037 = vld [vmem:[#allocation2 + $0x39] sm:$0xff]
    %v1038 = vld [vmem:[#allocation2 + $0x49] sm:$0xff]
    %v1039 = vld [vmem:[#allocation2 + $0x51] sm:$0xff]
    %v1040 = vld [vmem:[#allocation2 + $0x61] sm:$0xff]
    %v1041 = vld [vmem:[#allocation2 + $0x69] sm:$0xff]
    %v1042 = vld [vmem:[#allocation2 + $0x79] sm:$0xff]
    %v1043 = vld [vmem:[#allocation2 + $0x81] sm:$0xff]
    %v1044 = vld [vmem:[#allocation2 + $0x91] sm:$0xff]
    %v1045 = vld [vmem:[#allocation2 + $0x99] sm:$0xff]
    %v1046 = vld [vmem:[#allocation2 + $0xa9] sm:$0xff]
    %v1047 = vld [vmem:[#allocation2 + $0xb1] sm:$0xff]
    %v1048 = vld [vmem:[#allocation2 + $0xc1] sm:$0xff]
    %v1049 = vld [vmem:[#allocation2 + $0xc9] sm:$0xff]
    %v1050 = vld [vmem:[#allocation2 + $0xd9] sm:$0xff]
    %v1051 = vld [vmem:[#allocation2 + $0xe1] sm:$0xff]
    %v1052 = vld [vmem:[#allocation2 + $0xf1] sm:$0xff]
    %v1053 = vld [vmem:[#allocation2 + $0xf9] sm:$0xff]
    %v1054 = vld [vmem:[#allocation2 + $0x109] sm:$0xff]
    %v1055 = vld [vmem:[#allocation2 + $0x111] sm:$0xff]
    %v1056 = vld [vmem:[#allocation2 + $0x121] sm:$0xff]
    %v1057 = vld [vmem:[#allocation2 + $0x129] sm:$0xff]
    %v1058 = vld [vmem:[#allocation2 + $0x139] sm:$0xff]
    %v1059 = vld [vmem:[#allocation2 + $0x141] sm:$0xff]
    %v1060 = vld [vmem:[#allocation2 + $0x151] sm:$0xff]
    %v1061 = vld [vmem:[#allocation2 + $0x159] sm:$0xff]
    %v1062 = vld [vmem:[#allocation2 + $0x169] sm:$0xff]
    %v1063 = vld [vmem:[#allocation2 + $0x171] sm:$0xff]
    %v1064 = vld [vmem:[#allocation2 + $0x1b1] sm:$0xff]
    %v1065 = vld [vmem:[#allocation2 + $0x1b9] sm:$0xff]
    %v1066 = vld [vmem:[#allocation2 + $0x1c9] sm:$0xff]
    %v1067 = vld [vmem:[#allocation2 + $0x1d1] sm:$0xff]
    %v1068 = vld [vmem:[#allocation2 + $0x1e1] sm:$0xff]
    %v1069 = vld [vmem:[#allocation2 + $0x1e9] sm:$0xff]
    %v1070 = vld [vmem:[#allocation2 + $0x1f9] sm:$0xff]
    %v1071 = vld [vmem:[#allocation2 + $0x201] sm:$0xff]
    %v1072 = vld [vmem:[#allocation2 + $0x211] sm:$0xff]
    %v1073 = vld [vmem:[#allocation2 + $0x219] sm:$0xff]
    %v1074 = vld [vmem:[#allocation2 + $0x229] sm:$0xff]
    %v1075 = vld [vmem:[#allocation2 + $0x231] sm:$0xff]
    %v1076 = vld [vmem:[#allocation2 + $0x241] sm:$0xff]
    %v1077 = vld [vmem:[#allocation2 + $0x249] sm:$0xff]
    %v1078 = vld [vmem:[#allocation2 + $0x259] sm:$0xff]
    %v1079 = vld [vmem:[#allocation2 + $0x261] sm:$0xff]
    %v1080 = vld [vmem:[#allocation2 + $0x271] sm:$0xff]
    %v1081 = vld [vmem:[#allocation2 + $0x279] sm:$0xff]
    %v1082 = vld [vmem:[#allocation2 + $0x289] sm:$0xff]
    %v1083 = vld [vmem:[#allocation2 + $0x291] sm:$0xff]
    %v1084 = vld [vmem:[#allocation2 + $0x2a1] sm:$0xff]
    %v1085 = vld [vmem:[#allocation2 + $0x2a9] sm:$0xff]
    %v1086 = vld [vmem:[#allocation2 + $0x2b9] sm:$0xff]
    %v1087 = vld [vmem:[#allocation2 + $0x2c1] sm:$0xff]
    %v1088 = vld [vmem:[#allocation2 + $0x2d1] sm:$0xff]
    %v1089 = vld [vmem:[#allocation2 + $0x2d9] sm:$0xff]
    %v1090 = vld [vmem:[#allocation2 + $0x2e9] sm:$0xff]
    %v1091 = vld [vmem:[#allocation2 + $0x2f1] sm:$0xff]
    %v1092 = vld [vmem:[#allocation2 + $0x301] sm:$0xff]
    %v1093 = vld [vmem:[#allocation2 + $0x309] sm:$0xff]
    %v1094 = vld [vmem:[#allocation2 + $0x319] sm:$0xff]
    %v1095 = vld [vmem:[#allocation2 + $0x321] sm:$0xff]
    %v1096 = vpack.c.bf16 %v1033, %v1032
    %v1097 = vpack.c.bf16 %v1035, %v1034
    %v1098 = vpack.c.bf16 %v1037, %v1036
    %v1099 = vpack.c.bf16 %v1039, %v1038
    %v1100 = vpack.c.bf16 %v1041, %v1040
    %v1101 = vpack.c.bf16 %v1043, %v1042
    %v1102 = vpack.c.bf16 %v1045, %v1044
    %v1103 = vpack.c.bf16 %v1047, %v1046
    %v1104 = vpack.c.bf16 %v1049, %v1048
    %v1105 = vpack.c.bf16 %v1051, %v1050
    %v1106 = vpack.c.bf16 %v1053, %v1052
    %v1107 = vpack.c.bf16 %v1055, %v1054
    %v1108 = vpack.c.bf16 %v1057, %v1056
    %v1109 = vpack.c.bf16 %v1059, %v1058
    %v1110 = vpack.c.bf16 %v1061, %v1060
    %v1111 = vpack.c.bf16 %v1063, %v1062
    %v1112 = vpack.c.bf16 %v1065, %v1064
    %v1113 = vpack.c.bf16 %v1067, %v1066
    %v1114 = vpack.c.bf16 %v1069, %v1068
    %v1115 = vpack.c.bf16 %v1071, %v1070
    %v1116 = vpack.c.bf16 %v1073, %v1072
    %v1117 = vpack.c.bf16 %v1075, %v1074
    %v1118 = vpack.c.bf16 %v1077, %v1076
    %v1119 = vpack.c.bf16 %v1079, %v1078
    %v1120 = vpack.c.bf16 %v1081, %v1080
    %v1121 = vpack.c.bf16 %v1083, %v1082
    %v1122 = vpack.c.bf16 %v1085, %v1084
    %v1123 = vpack.c.bf16 %v1087, %v1086
    %v1124 = vpack.c.bf16 %v1089, %v1088
    %v1125 = vpack.c.bf16 %v1091, %v1090
    %v1126 = vpack.c.bf16 %v1093, %v1092
    %v1127 = vpack.c.bf16 %v1095, %v1094
    %v1128 = vld [vmem:[#allocation2 + $0x2] sm:$0xff]
    %v1129 = vld [vmem:[#allocation2 + $0xa] sm:$0xff]
    %v1130 = vld [vmem:[#allocation2 + $0x1a] sm:$0xff]
    %v1131 = vld [vmem:[#allocation2 + $0x22] sm:$0xff]
    %v1132 = vld [vmem:[#allocation2 + $0x32] sm:$0xff]
    %v1133 = vld [vmem:[#allocation2 + $0x3a] sm:$0xff]
    %v1134 = vld [vmem:[#allocation2 + $0x4a] sm:$0xff]
    %v1135 = vld [vmem:[#allocation2 + $0x52] sm:$0xff]
    %v1136 = vld [vmem:[#allocation2 + $0x62] sm:$0xff]
    %v1137 = vld [vmem:[#allocation2 + $0x6a] sm:$0xff]
    %v1138 = vld [vmem:[#allocation2 + $0x7a] sm:$0xff]
    %v1139 = vld [vmem:[#allocation2 + $0x82] sm:$0xff]
    %v1140 = vld [vmem:[#allocation2 + $0x92] sm:$0xff]
    %v1141 = vld [vmem:[#allocation2 + $0x9a] sm:$0xff]
    %v1142 = vld [vmem:[#allocation2 + $0xaa] sm:$0xff]
    %v1143 = vld [vmem:[#allocation2 + $0xb2] sm:$0xff]
    %v1144 = vld [vmem:[#allocation2 + $0xc2] sm:$0xff]
    %v1145 = vld [vmem:[#allocation2 + $0xca] sm:$0xff]
    %v1146 = vld [vmem:[#allocation2 + $0xda] sm:$0xff]
    %v1147 = vld [vmem:[#allocation2 + $0xe2] sm:$0xff]
    %v1148 = vld [vmem:[#allocation2 + $0xf2] sm:$0xff]
    %v1149 = vld [vmem:[#allocation2 + $0xfa] sm:$0xff]
    %v1150 = vld [vmem:[#allocation2 + $0x10a] sm:$0xff]
    %v1151 = vld [vmem:[#allocation2 + $0x112] sm:$0xff]
    %v1152 = vld [vmem:[#allocation2 + $0x122] sm:$0xff]
    %v1153 = vld [vmem:[#allocation2 + $0x12a] sm:$0xff]
    %v1154 = vld [vmem:[#allocation2 + $0x13a] sm:$0xff]
    %v1155 = vld [vmem:[#allocation2 + $0x142] sm:$0xff]
    %v1156 = vld [vmem:[#allocation2 + $0x152] sm:$0xff]
    %v1157 = vld [vmem:[#allocation2 + $0x15a] sm:$0xff]
    %v1158 = vld [vmem:[#allocation2 + $0x16a] sm:$0xff]
    %v1159 = vld [vmem:[#allocation2 + $0x172] sm:$0xff]
    %v1160 = vld [vmem:[#allocation2 + $0x1b2] sm:$0xff]
    %v1161 = vld [vmem:[#allocation2 + $0x1ba] sm:$0xff]
    %v1162 = vld [vmem:[#allocation2 + $0x1ca] sm:$0xff]
    %v1163 = vld [vmem:[#allocation2 + $0x1d2] sm:$0xff]
    %v1164 = vld [vmem:[#allocation2 + $0x1e2] sm:$0xff]
    %v1165 = vld [vmem:[#allocation2 + $0x1ea] sm:$0xff]
    %v1166 = vld [vmem:[#allocation2 + $0x1fa] sm:$0xff]
    %v1167 = vld [vmem:[#allocation2 + $0x202] sm:$0xff]
    %v1168 = vld [vmem:[#allocation2 + $0x212] sm:$0xff]
    %v1169 = vld [vmem:[#allocation2 + $0x21a] sm:$0xff]
    %v1170 = vld [vmem:[#allocation2 + $0x22a] sm:$0xff]
    %v1171 = vld [vmem:[#allocation2 + $0x232] sm:$0xff]
    %v1172 = vld [vmem:[#allocation2 + $0x242] sm:$0xff]
    %v1173 = vld [vmem:[#allocation2 + $0x24a] sm:$0xff]
    %v1174 = vld [vmem:[#allocation2 + $0x25a] sm:$0xff]
    %v1175 = vld [vmem:[#allocation2 + $0x262] sm:$0xff]
    %v1176 = vld [vmem:[#allocation2 + $0x272] sm:$0xff]
    %v1177 = vld [vmem:[#allocation2 + $0x27a] sm:$0xff]
    %v1178 = vld [vmem:[#allocation2 + $0x28a] sm:$0xff]
    %v1179 = vld [vmem:[#allocation2 + $0x292] sm:$0xff]
    %v1180 = vld [vmem:[#allocation2 + $0x2a2] sm:$0xff]
    %v1181 = vld [vmem:[#allocation2 + $0x2aa] sm:$0xff]
    %v1182 = vld [vmem:[#allocation2 + $0x2ba] sm:$0xff]
    %v1183 = vld [vmem:[#allocation2 + $0x2c2] sm:$0xff]
    %v1184 = vld [vmem:[#allocation2 + $0x2d2] sm:$0xff]
    %v1185 = vld [vmem:[#allocation2 + $0x2da] sm:$0xff]
    %v1186 = vld [vmem:[#allocation2 + $0x2ea] sm:$0xff]
    %v1187 = vld [vmem:[#allocation2 + $0x2f2] sm:$0xff]
    %v1188 = vld [vmem:[#allocation2 + $0x302] sm:$0xff]
    %v1189 = vld [vmem:[#allocation2 + $0x30a] sm:$0xff]
    %v1190 = vld [vmem:[#allocation2 + $0x31a] sm:$0xff]
    %v1191 = vld [vmem:[#allocation2 + $0x322] sm:$0xff]
    %v1192 = vpack.c.bf16 %v1129, %v1128
    %v1193 = vpack.c.bf16 %v1131, %v1130
    %v1194 = vpack.c.bf16 %v1133, %v1132
    %v1195 = vpack.c.bf16 %v1135, %v1134
    %v1196 = vpack.c.bf16 %v1137, %v1136
    %v1197 = vpack.c.bf16 %v1139, %v1138
    %v1198 = vpack.c.bf16 %v1141, %v1140
    %v1199 = vpack.c.bf16 %v1143, %v1142
    %v1200 = vpack.c.bf16 %v1145, %v1144
    %v1201 = vpack.c.bf16 %v1147, %v1146
    %v1202 = vpack.c.bf16 %v1149, %v1148
    %v1203 = vpack.c.bf16 %v1151, %v1150
    %v1204 = vpack.c.bf16 %v1153, %v1152
    %v1205 = vpack.c.bf16 %v1155, %v1154
    %v1206 = vpack.c.bf16 %v1157, %v1156
    %v1207 = vpack.c.bf16 %v1159, %v1158
    %v1208 = vpack.c.bf16 %v1161, %v1160
    %v1209 = vpack.c.bf16 %v1163, %v1162
    %v1210 = vpack.c.bf16 %v1165, %v1164
    %v1211 = vpack.c.bf16 %v1167, %v1166
    %v1212 = vpack.c.bf16 %v1169, %v1168
    %v1213 = vpack.c.bf16 %v1171, %v1170
    %v1214 = vpack.c.bf16 %v1173, %v1172
    %v1215 = vpack.c.bf16 %v1175, %v1174
    %v1216 = vpack.c.bf16 %v1177, %v1176
    %v1217 = vpack.c.bf16 %v1179, %v1178
    %v1218 = vpack.c.bf16 %v1181, %v1180
    %v1219 = vpack.c.bf16 %v1183, %v1182
    %v1220 = vpack.c.bf16 %v1185, %v1184
    %v1221 = vpack.c.bf16 %v1187, %v1186
    %v1222 = vpack.c.bf16 %v1189, %v1188
    %v1223 = vpack.c.bf16 %v1191, %v1190
    %v1224 = vld [vmem:[%s871] sm:$0xff]
    %v1225 = vld [vmem:[%s871 + $0x8] sm:$0xff]
    %v1226 = vld [vmem:[%s871 + $0x18] sm:$0xff]
    %v1227 = vld [vmem:[%s871 + $0x20] sm:$0xff]
    %v1228 = vld [vmem:[%s871 + $0x30] sm:$0xff]
    %v1229 = vld [vmem:[%s871 + $0x38] sm:$0xff]
    %v1230 = vld [vmem:[%s871 + $0x48] sm:$0xff]
    %v1231 = vld [vmem:[%s871 + $0x50] sm:$0xff]
    %v1232 = vld [vmem:[%s871 + $0x60] sm:$0xff]
    %v1233 = vld [vmem:[%s871 + $0x68] sm:$0xff]
    %v1234 = vld [vmem:[%s871 + $0x78] sm:$0xff]
    %v1235 = vld [vmem:[%s871 + $0x80] sm:$0xff]
    %v1236 = vld [vmem:[%s871 + $0x90] sm:$0xff]
    %v1237 = vld [vmem:[%s871 + $0x98] sm:$0xff]
    %v1238 = vld [vmem:[%s871 + $0xa8] sm:$0xff]
    %v1239 = vld [vmem:[%s871 + $0xb0] sm:$0xff]
    %v1240 = vld [vmem:[%s871 + $0xc0] sm:$0xff]
    %v1241 = vld [vmem:[%s871 + $0xc8] sm:$0xff]
    %v1242 = vld [vmem:[%s871 + $0xd8] sm:$0xff]
    %v1243 = vld [vmem:[%s871 + $0xe0] sm:$0xff]
    %v1244 = vld [vmem:[%s871 + $0xf0] sm:$0xff]
    %v1245 = vld [vmem:[%s871 + $0xf8] sm:$0xff]
    %v1246 = vld [vmem:[%s871 + $0x108] sm:$0xff]
    %v1247 = vld [vmem:[%s871 + $0x110] sm:$0xff]
    %v1248 = vld [vmem:[%s871 + $0x120] sm:$0xff]
    %v1249 = vld [vmem:[%s871 + $0x128] sm:$0xff]
    %v1250 = vld [vmem:[%s871 + $0x138] sm:$0xff]
    %v1251 = vld [vmem:[%s871 + $0x140] sm:$0xff]
    %v1252 = vld [vmem:[%s871 + $0x150] sm:$0xff]
    %v1253 = vld [vmem:[%s871 + $0x158] sm:$0xff]
    %v1254 = vld [vmem:[%s871 + $0x168] sm:$0xff]
    %v1255 = vld [vmem:[%s871 + $0x170] sm:$0xff]
    %v1256 = vld [vmem:[%s871 + $0x1b0] sm:$0xff]
    %v1257 = vld [vmem:[%s871 + $0x1b8] sm:$0xff]
    %v1258 = vld [vmem:[%s871 + $0x1c8] sm:$0xff]
    %v1259 = vld [vmem:[%s871 + $0x1d0] sm:$0xff]
    %v1260 = vld [vmem:[%s871 + $0x1e0] sm:$0xff]
    %v1261 = vld [vmem:[%s871 + $0x1e8] sm:$0xff]
    %v1262 = vld [vmem:[%s871 + $0x1f8] sm:$0xff]
    %v1263 = vld [vmem:[%s871 + $0x200] sm:$0xff]
    %v1264 = vld [vmem:[%s871 + $0x210] sm:$0xff]
    %v1265 = vld [vmem:[%s871 + $0x218] sm:$0xff]
    %v1266 = vld [vmem:[%s871 + $0x228] sm:$0xff]
    %v1267 = vld [vmem:[%s871 + $0x230] sm:$0xff]
    %v1268 = vld [vmem:[%s871 + $0x240] sm:$0xff]
    %v1269 = vld [vmem:[%s871 + $0x248] sm:$0xff]
    %v1270 = vld [vmem:[%s871 + $0x258] sm:$0xff]
    %v1271 = vld [vmem:[%s871 + $0x260] sm:$0xff]
    %v1272 = vld [vmem:[%s871 + $0x270] sm:$0xff]
    %v1273 = vld [vmem:[%s871 + $0x278] sm:$0xff]
    %v1274 = vld [vmem:[%s871 + $0x288] sm:$0xff]
    %v1275 = vld [vmem:[%s871 + $0x290] sm:$0xff]
    %v1276 = vld [vmem:[%s871 + $0x2a0] sm:$0xff]
    %v1277 = vld [vmem:[%s871 + $0x2a8] sm:$0xff]
    %v1278 = vld [vmem:[%s871 + $0x2b8] sm:$0xff]
    %v1279 = vld [vmem:[%s871 + $0x2c0] sm:$0xff]
    %v1280 = vld [vmem:[%s871 + $0x2d0] sm:$0xff]
    %v1281 = vld [vmem:[%s871 + $0x2d8] sm:$0xff]
    %v1282 = vld [vmem:[%s871 + $0x2e8] sm:$0xff]
    %v1283 = vld [vmem:[%s871 + $0x2f0] sm:$0xff]
    %v1284 = vld [vmem:[%s871 + $0x300] sm:$0xff]
    %v1285 = vld [vmem:[%s871 + $0x308] sm:$0xff]
    %v1286 = vld [vmem:[%s871 + $0x318] sm:$0xff]
    %v1287 = vld [vmem:[%s871 + $0x320] sm:$0xff]
    %v1288 = vpack.c.bf16 %v1225, %v1224
    %v1289 = vpack.c.bf16 %v1227, %v1226
    %v1290 = vpack.c.bf16 %v1229, %v1228
    %v1291 = vpack.c.bf16 %v1231, %v1230
    %v1292 = vpack.c.bf16 %v1233, %v1232
    %v1293 = vpack.c.bf16 %v1235, %v1234
    %v1294 = vpack.c.bf16 %v1237, %v1236
    %v1295 = vpack.c.bf16 %v1239, %v1238
    %v1296 = vpack.c.bf16 %v1241, %v1240
    %v1297 = vpack.c.bf16 %v1243, %v1242
    %v1298 = vpack.c.bf16 %v1245, %v1244
    %v1299 = vpack.c.bf16 %v1247, %v1246
    %v1300 = vpack.c.bf16 %v1249, %v1248
    %v1301 = vpack.c.bf16 %v1251, %v1250
    %v1302 = vpack.c.bf16 %v1253, %v1252
    %v1303 = vpack.c.bf16 %v1255, %v1254
    %v1304 = vpack.c.bf16 %v1257, %v1256
    %v1305 = vpack.c.bf16 %v1259, %v1258
    %v1306 = vpack.c.bf16 %v1261, %v1260
    %v1307 = vpack.c.bf16 %v1263, %v1262
    %v1308 = vpack.c.bf16 %v1265, %v1264
    %v1309 = vpack.c.bf16 %v1267, %v1266
    %v1310 = vpack.c.bf16 %v1269, %v1268
    %v1311 = vpack.c.bf16 %v1271, %v1270
    %v1312 = vpack.c.bf16 %v1273, %v1272
    %v1313 = vpack.c.bf16 %v1275, %v1274
    %v1314 = vpack.c.bf16 %v1277, %v1276
    %v1315 = vpack.c.bf16 %v1279, %v1278
    %v1316 = vpack.c.bf16 %v1281, %v1280
    %v1317 = vpack.c.bf16 %v1283, %v1282
    %v1318 = vpack.c.bf16 %v1285, %v1284
    %v1319 = vpack.c.bf16 %v1287, %v1286
    %v1320 = vld [vmem:[%s871 + $0x1] sm:$0xff]
    %v1321 = vld [vmem:[%s871 + $0x9] sm:$0xff]
    %v1322 = vld [vmem:[%s871 + $0x19] sm:$0xff]
    %v1323 = vld [vmem:[%s871 + $0x21] sm:$0xff]
    %v1324 = vld [vmem:[%s871 + $0x31] sm:$0xff]
    %v1325 = vld [vmem:[%s871 + $0x39] sm:$0xff]
    %v1326 = vld [vmem:[%s871 + $0x49] sm:$0xff]
    %v1327 = vld [vmem:[%s871 + $0x51] sm:$0xff]
    %v1328 = vld [vmem:[%s871 + $0x61] sm:$0xff]
    %v1329 = vld [vmem:[%s871 + $0x69] sm:$0xff]
    %v1330 = vld [vmem:[%s871 + $0x79] sm:$0xff]
    %v1331 = vld [vmem:[%s871 + $0x81] sm:$0xff]
    %v1332 = vld [vmem:[%s871 + $0x91] sm:$0xff]
    %v1333 = vld [vmem:[%s871 + $0x99] sm:$0xff]
    %v1334 = vld [vmem:[%s871 + $0xa9] sm:$0xff]
    %v1335 = vld [vmem:[%s871 + $0xb1] sm:$0xff]
    %v1336 = vld [vmem:[%s871 + $0xc1] sm:$0xff]
    %v1337 = vld [vmem:[%s871 + $0xc9] sm:$0xff]
    %v1338 = vld [vmem:[%s871 + $0xd9] sm:$0xff]
    %v1339 = vld [vmem:[%s871 + $0xe1] sm:$0xff]
    %v1340 = vld [vmem:[%s871 + $0xf1] sm:$0xff]
    %v1341 = vld [vmem:[%s871 + $0xf9] sm:$0xff]
    %v1342 = vld [vmem:[%s871 + $0x109] sm:$0xff]
    %v1343 = vld [vmem:[%s871 + $0x111] sm:$0xff]
    %v1344 = vld [vmem:[%s871 + $0x121] sm:$0xff]
    %v1345 = vld [vmem:[%s871 + $0x129] sm:$0xff]
    %v1346 = vld [vmem:[%s871 + $0x139] sm:$0xff]
    %v1347 = vld [vmem:[%s871 + $0x141] sm:$0xff]
    %v1348 = vld [vmem:[%s871 + $0x151] sm:$0xff]
    %v1349 = vld [vmem:[%s871 + $0x159] sm:$0xff]
    %v1350 = vld [vmem:[%s871 + $0x169] sm:$0xff]
    %v1351 = vld [vmem:[%s871 + $0x171] sm:$0xff]
    %v1352 = vld [vmem:[%s871 + $0x1b1] sm:$0xff]
    %v1353 = vld [vmem:[%s871 + $0x1b9] sm:$0xff]
    %v1354 = vld [vmem:[%s871 + $0x1c9] sm:$0xff]
    %v1355 = vld [vmem:[%s871 + $0x1d1] sm:$0xff]
    %v1356 = vld [vmem:[%s871 + $0x1e1] sm:$0xff]
    %v1357 = vld [vmem:[%s871 + $0x1e9] sm:$0xff]
    %v1358 = vld [vmem:[%s871 + $0x1f9] sm:$0xff]
    %v1359 = vld [vmem:[%s871 + $0x201] sm:$0xff]
    %v1360 = vld [vmem:[%s871 + $0x211] sm:$0xff]
    %v1361 = vld [vmem:[%s871 + $0x219] sm:$0xff]
    %v1362 = vld [vmem:[%s871 + $0x229] sm:$0xff]
    %v1363 = vld [vmem:[%s871 + $0x231] sm:$0xff]
    %v1364 = vld [vmem:[%s871 + $0x241] sm:$0xff]
    %v1365 = vld [vmem:[%s871 + $0x249] sm:$0xff]
    %v1366 = vld [vmem:[%s871 + $0x259] sm:$0xff]
    %v1367 = vld [vmem:[%s871 + $0x261] sm:$0xff]
    %v1368 = vld [vmem:[%s871 + $0x271] sm:$0xff]
    %v1369 = vld [vmem:[%s871 + $0x279] sm:$0xff]
    %v1370 = vld [vmem:[%s871 + $0x289] sm:$0xff]
    %v1371 = vld [vmem:[%s871 + $0x291] sm:$0xff]
    %v1372 = vld [vmem:[%s871 + $0x2a1] sm:$0xff]
    %v1373 = vld [vmem:[%s871 + $0x2a9] sm:$0xff]
    %v1374 = vld [vmem:[%s871 + $0x2b9] sm:$0xff]
    %v1375 = vld [vmem:[%s871 + $0x2c1] sm:$0xff]
    %v1376 = vld [vmem:[%s871 + $0x2d1] sm:$0xff]
    %v1377 = vld [vmem:[%s871 + $0x2d9] sm:$0xff]
    %v1378 = vld [vmem:[%s871 + $0x2e9] sm:$0xff]
    %v1379 = vld [vmem:[%s871 + $0x2f1] sm:$0xff]
    %v1380 = vld [vmem:[%s871 + $0x301] sm:$0xff]
    %v1381 = vld [vmem:[%s871 + $0x309] sm:$0xff]
    %v1382 = vld [vmem:[%s871 + $0x319] sm:$0xff]
    %v1383 = vld [vmem:[%s871 + $0x321] sm:$0xff]
    %v1384 = vpack.c.bf16 %v1321, %v1320
    %v1385 = vpack.c.bf16 %v1323, %v1322
    %v1386 = vpack.c.bf16 %v1325, %v1324
    %v1387 = vpack.c.bf16 %v1327, %v1326
    %v1388 = vpack.c.bf16 %v1329, %v1328
    %v1389 = vpack.c.bf16 %v1331, %v1330
    %v1390 = vpack.c.bf16 %v1333, %v1332
    %v1391 = vpack.c.bf16 %v1335, %v1334
    %v1392 = vpack.c.bf16 %v1337, %v1336
    %v1393 = vpack.c.bf16 %v1339, %v1338
    %v1394 = vpack.c.bf16 %v1341, %v1340
    %v1395 = vpack.c.bf16 %v1343, %v1342
    %v1396 = vpack.c.bf16 %v1345, %v1344
    %v1397 = vpack.c.bf16 %v1347, %v1346
    %v1398 = vpack.c.bf16 %v1349, %v1348
    %v1399 = vpack.c.bf16 %v1351, %v1350
    %v1400 = vpack.c.bf16 %v1353, %v1352
    %v1401 = vpack.c.bf16 %v1355, %v1354
    %v1402 = vpack.c.bf16 %v1357, %v1356
    %v1403 = vpack.c.bf16 %v1359, %v1358
    %v1404 = vpack.c.bf16 %v1361, %v1360
    %v1405 = vpack.c.bf16 %v1363, %v1362
    %v1406 = vpack.c.bf16 %v1365, %v1364
    %v1407 = vpack.c.bf16 %v1367, %v1366
    %v1408 = vpack.c.bf16 %v1369, %v1368
    %v1409 = vpack.c.bf16 %v1371, %v1370
    %v1410 = vpack.c.bf16 %v1373, %v1372
    %v1411 = vpack.c.bf16 %v1375, %v1374
    %v1412 = vpack.c.bf16 %v1377, %v1376
    %v1413 = vpack.c.bf16 %v1379, %v1378
    %v1414 = vpack.c.bf16 %v1381, %v1380
    %v1415 = vpack.c.bf16 %v1383, %v1382
    %v1416 = vld [vmem:[%s871 + $0x2] sm:$0xff]
    %v1417 = vld [vmem:[%s871 + $0xa] sm:$0xff]
    %v1418 = vld [vmem:[%s871 + $0x1a] sm:$0xff]
    %v1419 = vld [vmem:[%s871 + $0x22] sm:$0xff]
    %v1420 = vld [vmem:[%s871 + $0x32] sm:$0xff]
    %v1421 = vld [vmem:[%s871 + $0x3a] sm:$0xff]
    %v1422 = vld [vmem:[%s871 + $0x4a] sm:$0xff]
    %v1423 = vld [vmem:[%s871 + $0x52] sm:$0xff]
    %v1424 = vld [vmem:[%s871 + $0x62] sm:$0xff]
    %v1425 = vld [vmem:[%s871 + $0x6a] sm:$0xff]
    %v1426 = vld [vmem:[%s871 + $0x7a] sm:$0xff]
    %v1427 = vld [vmem:[%s871 + $0x82] sm:$0xff]
    %v1428 = vld [vmem:[%s871 + $0x92] sm:$0xff]
    %v1429 = vld [vmem:[%s871 + $0x9a] sm:$0xff]
    %v1430 = vld [vmem:[%s871 + $0xaa] sm:$0xff]
    %v1431 = vld [vmem:[%s871 + $0xb2] sm:$0xff]
    %v1432 = vld [vmem:[%s871 + $0xc2] sm:$0xff]
    %v1433 = vld [vmem:[%s871 + $0xca] sm:$0xff]
    %v1434 = vld [vmem:[%s871 + $0xda] sm:$0xff]
    %v1435 = vld [vmem:[%s871 + $0xe2] sm:$0xff]
    %v1436 = vld [vmem:[%s871 + $0xf2] sm:$0xff]
    %v1437 = vld [vmem:[%s871 + $0xfa] sm:$0xff]
    %v1438 = vld [vmem:[%s871 + $0x10a] sm:$0xff]
    %v1439 = vld [vmem:[%s871 + $0x112] sm:$0xff]
    %v1440 = vld [vmem:[%s871 + $0x122] sm:$0xff]
    %v1441 = vld [vmem:[%s871 + $0x12a] sm:$0xff]
    %v1442 = vld [vmem:[%s871 + $0x13a] sm:$0xff]
    %v1443 = vld [vmem:[%s871 + $0x142] sm:$0xff]
    %v1444 = vld [vmem:[%s871 + $0x152] sm:$0xff]
    %v1445 = vld [vmem:[%s871 + $0x15a] sm:$0xff]
    %v1446 = vld [vmem:[%s871 + $0x16a] sm:$0xff]
    %v1447 = vld [vmem:[%s871 + $0x172] sm:$0xff]
    %v1448 = vld [vmem:[%s871 + $0x1b2] sm:$0xff]
    %v1449 = vld [vmem:[%s871 + $0x1ba] sm:$0xff]
    %v1450 = vld [vmem:[%s871 + $0x1ca] sm:$0xff]
    %v1451 = vld [vmem:[%s871 + $0x1d2] sm:$0xff]
    %v1452 = vld [vmem:[%s871 + $0x1e2] sm:$0xff]
    %v1453 = vld [vmem:[%s871 + $0x1ea] sm:$0xff]
    %v1454 = vld [vmem:[%s871 + $0x1fa] sm:$0xff]
    %v1455 = vld [vmem:[%s871 + $0x202] sm:$0xff]
    %v1456 = vld [vmem:[%s871 + $0x212] sm:$0xff]
    %v1457 = vld [vmem:[%s871 + $0x21a] sm:$0xff]
    %v1458 = vld [vmem:[%s871 + $0x22a] sm:$0xff]
    %v1459 = vld [vmem:[%s871 + $0x232] sm:$0xff]
    %v1460 = vld [vmem:[%s871 + $0x242] sm:$0xff]
    %v1461 = vld [vmem:[%s871 + $0x24a] sm:$0xff]
    %v1462 = vld [vmem:[%s871 + $0x25a] sm:$0xff]
    %v1463 = vld [vmem:[%s871 + $0x262] sm:$0xff]
    %v1464 = vld [vmem:[%s871 + $0x272] sm:$0xff]
    %v1465 = vld [vmem:[%s871 + $0x27a] sm:$0xff]
    %v1466 = vld [vmem:[%s871 + $0x28a] sm:$0xff]
    %v1467 = vld [vmem:[%s871 + $0x292] sm:$0xff]
    %v1468 = vld [vmem:[%s871 + $0x2a2] sm:$0xff]
    %v1469 = vld [vmem:[%s871 + $0x2aa] sm:$0xff]
    %v1470 = vld [vmem:[%s871 + $0x2ba] sm:$0xff]
    %v1471 = vld [vmem:[%s871 + $0x2c2] sm:$0xff]
    %v1472 = vld [vmem:[%s871 + $0x2d2] sm:$0xff]
    %v1473 = vld [vmem:[%s871 + $0x2da] sm:$0xff]
    %v1474 = vld [vmem:[%s871 + $0x2ea] sm:$0xff]
    %v1475 = vld [vmem:[%s871 + $0x2f2] sm:$0xff]
    %v1476 = vld [vmem:[%s871 + $0x302] sm:$0xff]
    %v1477 = vld [vmem:[%s871 + $0x30a] sm:$0xff]
    %v1478 = vld [vmem:[%s871 + $0x31a] sm:$0xff]
    %v1479 = vld [vmem:[%s871 + $0x322] sm:$0xff]
    %v1480 = vpack.c.bf16 %v1417, %v1416
    %v1481 = vpack.c.bf16 %v1419, %v1418
    %v1482 = vpack.c.bf16 %v1421, %v1420
    %v1483 = vpack.c.bf16 %v1423, %v1422
    %v1484 = vpack.c.bf16 %v1425, %v1424
    %v1485 = vpack.c.bf16 %v1427, %v1426
    %v1486 = vpack.c.bf16 %v1429, %v1428
    %v1487 = vpack.c.bf16 %v1431, %v1430
    %v1488 = vpack.c.bf16 %v1433, %v1432
    %v1489 = vpack.c.bf16 %v1435, %v1434
    %v1490 = vpack.c.bf16 %v1437, %v1436
    %v1491 = vpack.c.bf16 %v1439, %v1438
    %v1492 = vpack.c.bf16 %v1441, %v1440
    %v1493 = vpack.c.bf16 %v1443, %v1442
    %v1494 = vpack.c.bf16 %v1445, %v1444
    %v1495 = vpack.c.bf16 %v1447, %v1446
    %v1496 = vpack.c.bf16 %v1449, %v1448
    %v1497 = vpack.c.bf16 %v1451, %v1450
    %v1498 = vpack.c.bf16 %v1453, %v1452
    %v1499 = vpack.c.bf16 %v1455, %v1454
    %v1500 = vpack.c.bf16 %v1457, %v1456
    %v1501 = vpack.c.bf16 %v1459, %v1458
    %v1502 = vpack.c.bf16 %v1461, %v1460
    %v1503 = vpack.c.bf16 %v1463, %v1462
    %v1504 = vpack.c.bf16 %v1465, %v1464
    %v1505 = vpack.c.bf16 %v1467, %v1466
    %v1506 = vpack.c.bf16 %v1469, %v1468
    %v1507 = vpack.c.bf16 %v1471, %v1470
    %v1508 = vpack.c.bf16 %v1473, %v1472
    %v1509 = vpack.c.bf16 %v1475, %v1474
    %v1510 = vpack.c.bf16 %v1477, %v1476
    %v1511 = vpack.c.bf16 %v1479, %v1478
    %s1512 = scalar_lea.vmem [#allocation2], 48
    %v1513 = vld [vmem:[%s1512] sm:$0xff]
    %v1514 = vld [vmem:[%s1512 + $0x8] sm:$0xff]
    %v1515 = vld [vmem:[%s1512 + $0x18] sm:$0xff]
    %v1516 = vld [vmem:[%s1512 + $0x20] sm:$0xff]
    %v1517 = vld [vmem:[%s1512 + $0x30] sm:$0xff]
    %v1518 = vld [vmem:[%s1512 + $0x38] sm:$0xff]
    %v1519 = vld [vmem:[%s1512 + $0x48] sm:$0xff]
    %v1520 = vld [vmem:[%s1512 + $0x50] sm:$0xff]
    %v1521 = vld [vmem:[%s1512 + $0x60] sm:$0xff]
    %v1522 = vld [vmem:[%s1512 + $0x68] sm:$0xff]
    %v1523 = vld [vmem:[%s1512 + $0x78] sm:$0xff]
    %v1524 = vld [vmem:[%s1512 + $0x80] sm:$0xff]
    %v1525 = vld [vmem:[%s1512 + $0x90] sm:$0xff]
    %v1526 = vld [vmem:[%s1512 + $0x98] sm:$0xff]
    %v1527 = vld [vmem:[%s1512 + $0xa8] sm:$0xff]
    %v1528 = vld [vmem:[%s1512 + $0xb0] sm:$0xff]
    %v1529 = vld [vmem:[%s1512 + $0xc0] sm:$0xff]
    %v1530 = vld [vmem:[%s1512 + $0xc8] sm:$0xff]
    %v1531 = vld [vmem:[%s1512 + $0xd8] sm:$0xff]
    %v1532 = vld [vmem:[%s1512 + $0xe0] sm:$0xff]
    %v1533 = vld [vmem:[%s1512 + $0xf0] sm:$0xff]
    %v1534 = vld [vmem:[%s1512 + $0xf8] sm:$0xff]
    %v1535 = vld [vmem:[%s1512 + $0x108] sm:$0xff]
    %v1536 = vld [vmem:[%s1512 + $0x110] sm:$0xff]
    %v1537 = vld [vmem:[%s1512 + $0x120] sm:$0xff]
    %v1538 = vld [vmem:[%s1512 + $0x128] sm:$0xff]
    %v1539 = vld [vmem:[%s1512 + $0x138] sm:$0xff]
    %v1540 = vld [vmem:[%s1512 + $0x140] sm:$0xff]
    %v1541 = vld [vmem:[%s1512 + $0x150] sm:$0xff]
    %v1542 = vld [vmem:[%s1512 + $0x158] sm:$0xff]
    %v1543 = vld [vmem:[%s1512 + $0x168] sm:$0xff]
    %v1544 = vld [vmem:[%s1512 + $0x170] sm:$0xff]
    %v1545 = vld [vmem:[%s1512 + $0x1b0] sm:$0xff]
    %v1546 = vld [vmem:[%s1512 + $0x1b8] sm:$0xff]
    %v1547 = vld [vmem:[%s1512 + $0x1c8] sm:$0xff]
    %v1548 = vld [vmem:[%s1512 + $0x1d0] sm:$0xff]
    %v1549 = vld [vmem:[%s1512 + $0x1e0] sm:$0xff]
    %v1550 = vld [vmem:[%s1512 + $0x1e8] sm:$0xff]
    %v1551 = vld [vmem:[%s1512 + $0x1f8] sm:$0xff]
    %v1552 = vld [vmem:[%s1512 + $0x200] sm:$0xff]
    %v1553 = vld [vmem:[%s1512 + $0x210] sm:$0xff]
    %v1554 = vld [vmem:[%s1512 + $0x218] sm:$0xff]
    %v1555 = vld [vmem:[%s1512 + $0x228] sm:$0xff]
    %v1556 = vld [vmem:[%s1512 + $0x230] sm:$0xff]
    %v1557 = vld [vmem:[%s1512 + $0x240] sm:$0xff]
    %v1558 = vld [vmem:[%s1512 + $0x248] sm:$0xff]
    %v1559 = vld [vmem:[%s1512 + $0x258] sm:$0xff]
    %v1560 = vld [vmem:[%s1512 + $0x260] sm:$0xff]
    %v1561 = vld [vmem:[%s1512 + $0x270] sm:$0xff]
    %v1562 = vld [vmem:[%s1512 + $0x278] sm:$0xff]
    %v1563 = vld [vmem:[%s1512 + $0x288] sm:$0xff]
    %v1564 = vld [vmem:[%s1512 + $0x290] sm:$0xff]
    %v1565 = vld [vmem:[%s1512 + $0x2a0] sm:$0xff]
    %v1566 = vld [vmem:[%s1512 + $0x2a8] sm:$0xff]
    %v1567 = vld [vmem:[%s1512 + $0x2b8] sm:$0xff]
    %v1568 = vld [vmem:[%s1512 + $0x2c0] sm:$0xff]
    %v1569 = vld [vmem:[%s1512 + $0x2d0] sm:$0xff]
    %v1570 = vld [vmem:[%s1512 + $0x2d8] sm:$0xff]
    %v1571 = vld [vmem:[%s1512 + $0x2e8] sm:$0xff]
    %v1572 = vld [vmem:[%s1512 + $0x2f0] sm:$0xff]
    %v1573 = vld [vmem:[%s1512 + $0x300] sm:$0xff]
    %v1574 = vld [vmem:[%s1512 + $0x308] sm:$0xff]
    %v1575 = vld [vmem:[%s1512 + $0x318] sm:$0xff]
    %v1576 = vld [vmem:[%s1512 + $0x320] sm:$0xff]
    %v1577 = vpack.c.bf16 %v1514, %v1513
    %v1578 = vpack.c.bf16 %v1516, %v1515
    %v1579 = vpack.c.bf16 %v1518, %v1517
    %v1580 = vpack.c.bf16 %v1520, %v1519
    %v1581 = vpack.c.bf16 %v1522, %v1521
    %v1582 = vpack.c.bf16 %v1524, %v1523
    %v1583 = vpack.c.bf16 %v1526, %v1525
    %v1584 = vpack.c.bf16 %v1528, %v1527
    %v1585 = vpack.c.bf16 %v1530, %v1529
    %v1586 = vpack.c.bf16 %v1532, %v1531
    %v1587 = vpack.c.bf16 %v1534, %v1533
    %v1588 = vpack.c.bf16 %v1536, %v1535
    %v1589 = vpack.c.bf16 %v1538, %v1537
    %v1590 = vpack.c.bf16 %v1540, %v1539
    %v1591 = vpack.c.bf16 %v1542, %v1541
    %v1592 = vpack.c.bf16 %v1544, %v1543
    %v1593 = vpack.c.bf16 %v1546, %v1545
    %v1594 = vpack.c.bf16 %v1548, %v1547
    %v1595 = vpack.c.bf16 %v1550, %v1549
    %v1596 = vpack.c.bf16 %v1552, %v1551
    %v1597 = vpack.c.bf16 %v1554, %v1553
    %v1598 = vpack.c.bf16 %v1556, %v1555
    %v1599 = vpack.c.bf16 %v1558, %v1557
    %v1600 = vpack.c.bf16 %v1560, %v1559
    %v1601 = vpack.c.bf16 %v1562, %v1561
    %v1602 = vpack.c.bf16 %v1564, %v1563
    %v1603 = vpack.c.bf16 %v1566, %v1565
    %v1604 = vpack.c.bf16 %v1568, %v1567
    %v1605 = vpack.c.bf16 %v1570, %v1569
    %v1606 = vpack.c.bf16 %v1572, %v1571
    %v1607 = vpack.c.bf16 %v1574, %v1573
    %v1608 = vpack.c.bf16 %v1576, %v1575
    %v1609 = vld [vmem:[%s1512 + $0x1] sm:$0xff]
    %v1610 = vld [vmem:[%s1512 + $0x9] sm:$0xff]
    %v1611 = vld [vmem:[%s1512 + $0x19] sm:$0xff]
    %v1612 = vld [vmem:[%s1512 + $0x21] sm:$0xff]
    %v1613 = vld [vmem:[%s1512 + $0x31] sm:$0xff]
    %v1614 = vld [vmem:[%s1512 + $0x39] sm:$0xff]
    %v1615 = vld [vmem:[%s1512 + $0x49] sm:$0xff]
    %v1616 = vld [vmem:[%s1512 + $0x51] sm:$0xff]
    %v1617 = vld [vmem:[%s1512 + $0x61] sm:$0xff]
    %v1618 = vld [vmem:[%s1512 + $0x69] sm:$0xff]
    %v1619 = vld [vmem:[%s1512 + $0x79] sm:$0xff]
    %v1620 = vld [vmem:[%s1512 + $0x81] sm:$0xff]
    %v1621 = vld [vmem:[%s1512 + $0x91] sm:$0xff]
    %v1622 = vld [vmem:[%s1512 + $0x99] sm:$0xff]
    %v1623 = vld [vmem:[%s1512 + $0xa9] sm:$0xff]
    %v1624 = vld [vmem:[%s1512 + $0xb1] sm:$0xff]
    %v1625 = vld [vmem:[%s1512 + $0xc1] sm:$0xff]
    %v1626 = vld [vmem:[%s1512 + $0xc9] sm:$0xff]
    %v1627 = vld [vmem:[%s1512 + $0xd9] sm:$0xff]
    %v1628 = vld [vmem:[%s1512 + $0xe1] sm:$0xff]
    %v1629 = vld [vmem:[%s1512 + $0xf1] sm:$0xff]
    %v1630 = vld [vmem:[%s1512 + $0xf9] sm:$0xff]
    %v1631 = vld [vmem:[%s1512 + $0x109] sm:$0xff]
    %v1632 = vld [vmem:[%s1512 + $0x111] sm:$0xff]
    %v1633 = vld [vmem:[%s1512 + $0x121] sm:$0xff]
    %v1634 = vld [vmem:[%s1512 + $0x129] sm:$0xff]
    %v1635 = vld [vmem:[%s1512 + $0x139] sm:$0xff]
    %v1636 = vld [vmem:[%s1512 + $0x141] sm:$0xff]
    %v1637 = vld [vmem:[%s1512 + $0x151] sm:$0xff]
    %v1638 = vld [vmem:[%s1512 + $0x159] sm:$0xff]
    %v1639 = vld [vmem:[%s1512 + $0x169] sm:$0xff]
    %v1640 = vld [vmem:[%s1512 + $0x171] sm:$0xff]
    %v1641 = vld [vmem:[%s1512 + $0x1b1] sm:$0xff]
    %v1642 = vld [vmem:[%s1512 + $0x1b9] sm:$0xff]
    %v1643 = vld [vmem:[%s1512 + $0x1c9] sm:$0xff]
    %v1644 = vld [vmem:[%s1512 + $0x1d1] sm:$0xff]
    %v1645 = vld [vmem:[%s1512 + $0x1e1] sm:$0xff]
    %v1646 = vld [vmem:[%s1512 + $0x1e9] sm:$0xff]
    %v1647 = vld [vmem:[%s1512 + $0x1f9] sm:$0xff]
    %v1648 = vld [vmem:[%s1512 + $0x201] sm:$0xff]
    %v1649 = vld [vmem:[%s1512 + $0x211] sm:$0xff]
    %v1650 = vld [vmem:[%s1512 + $0x219] sm:$0xff]
    %v1651 = vld [vmem:[%s1512 + $0x229] sm:$0xff]
    %v1652 = vld [vmem:[%s1512 + $0x231] sm:$0xff]
    %v1653 = vld [vmem:[%s1512 + $0x241] sm:$0xff]
    %v1654 = vld [vmem:[%s1512 + $0x249] sm:$0xff]
    %v1655 = vld [vmem:[%s1512 + $0x259] sm:$0xff]
    %v1656 = vld [vmem:[%s1512 + $0x261] sm:$0xff]
    %v1657 = vld [vmem:[%s1512 + $0x271] sm:$0xff]
    %v1658 = vld [vmem:[%s1512 + $0x279] sm:$0xff]
    %v1659 = vld [vmem:[%s1512 + $0x289] sm:$0xff]
    %v1660 = vld [vmem:[%s1512 + $0x291] sm:$0xff]
    %v1661 = vld [vmem:[%s1512 + $0x2a1] sm:$0xff]
    %v1662 = vld [vmem:[%s1512 + $0x2a9] sm:$0xff]
    %v1663 = vld [vmem:[%s1512 + $0x2b9] sm:$0xff]
    %v1664 = vld [vmem:[%s1512 + $0x2c1] sm:$0xff]
    %v1665 = vld [vmem:[%s1512 + $0x2d1] sm:$0xff]
    %v1666 = vld [vmem:[%s1512 + $0x2d9] sm:$0xff]
    %v1667 = vld [vmem:[%s1512 + $0x2e9] sm:$0xff]
    %v1668 = vld [vmem:[%s1512 + $0x2f1] sm:$0xff]
    %v1669 = vld [vmem:[%s1512 + $0x301] sm:$0xff]
    %v1670 = vld [vmem:[%s1512 + $0x309] sm:$0xff]
    %v1671 = vld [vmem:[%s1512 + $0x319] sm:$0xff]
    %v1672 = vld [vmem:[%s1512 + $0x321] sm:$0xff]
    %v1673 = vpack.c.bf16 %v1610, %v1609
    %v1674 = vpack.c.bf16 %v1612, %v1611
    %v1675 = vpack.c.bf16 %v1614, %v1613
    %v1676 = vpack.c.bf16 %v1616, %v1615
    %v1677 = vpack.c.bf16 %v1618, %v1617
    %v1678 = vpack.c.bf16 %v1620, %v1619
    %v1679 = vpack.c.bf16 %v1622, %v1621
    %v1680 = vpack.c.bf16 %v1624, %v1623
    %v1681 = vpack.c.bf16 %v1626, %v1625
    %v1682 = vpack.c.bf16 %v1628, %v1627
    %v1683 = vpack.c.bf16 %v1630, %v1629
    %v1684 = vpack.c.bf16 %v1632, %v1631
    %v1685 = vpack.c.bf16 %v1634, %v1633
    %v1686 = vpack.c.bf16 %v1636, %v1635
    %v1687 = vpack.c.bf16 %v1638, %v1637
    %v1688 = vpack.c.bf16 %v1640, %v1639
    %v1689 = vpack.c.bf16 %v1642, %v1641
    %v1690 = vpack.c.bf16 %v1644, %v1643
    %v1691 = vpack.c.bf16 %v1646, %v1645
    %v1692 = vpack.c.bf16 %v1648, %v1647
    %v1693 = vpack.c.bf16 %v1650, %v1649
    %v1694 = vpack.c.bf16 %v1652, %v1651
    %v1695 = vpack.c.bf16 %v1654, %v1653
    %v1696 = vpack.c.bf16 %v1656, %v1655
    %v1697 = vpack.c.bf16 %v1658, %v1657
    %v1698 = vpack.c.bf16 %v1660, %v1659
    %v1699 = vpack.c.bf16 %v1662, %v1661
    %v1700 = vpack.c.bf16 %v1664, %v1663
    %v1701 = vpack.c.bf16 %v1666, %v1665
    %v1702 = vpack.c.bf16 %v1668, %v1667
    %v1703 = vpack.c.bf16 %v1670, %v1669
    %v1704 = vpack.c.bf16 %v1672, %v1671
    %v1705 = vld [vmem:[%s1512 + $0x2] sm:$0xff]
    %v1706 = vld [vmem:[%s1512 + $0xa] sm:$0xff]
    %v1707 = vld [vmem:[%s1512 + $0x1a] sm:$0xff]
    %v1708 = vld [vmem:[%s1512 + $0x22] sm:$0xff]
    %v1709 = vld [vmem:[%s1512 + $0x32] sm:$0xff]
    %v1710 = vld [vmem:[%s1512 + $0x3a] sm:$0xff]
    %v1711 = vld [vmem:[%s1512 + $0x4a] sm:$0xff]
    %v1712 = vld [vmem:[%s1512 + $0x52] sm:$0xff]
    %v1713 = vld [vmem:[%s1512 + $0x62] sm:$0xff]
    %v1714 = vld [vmem:[%s1512 + $0x6a] sm:$0xff]
    %v1715 = vld [vmem:[%s1512 + $0x7a] sm:$0xff]
    %v1716 = vld [vmem:[%s1512 + $0x82] sm:$0xff]
    %v1717 = vld [vmem:[%s1512 + $0x92] sm:$0xff]
    %v1718 = vld [vmem:[%s1512 + $0x9a] sm:$0xff]
    %v1719 = vld [vmem:[%s1512 + $0xaa] sm:$0xff]
    %v1720 = vld [vmem:[%s1512 + $0xb2] sm:$0xff]
    %v1721 = vld [vmem:[%s1512 + $0xc2] sm:$0xff]
    %v1722 = vld [vmem:[%s1512 + $0xca] sm:$0xff]
    %v1723 = vld [vmem:[%s1512 + $0xda] sm:$0xff]
    %v1724 = vld [vmem:[%s1512 + $0xe2] sm:$0xff]
    %v1725 = vld [vmem:[%s1512 + $0xf2] sm:$0xff]
    %v1726 = vld [vmem:[%s1512 + $0xfa] sm:$0xff]
    %v1727 = vld [vmem:[%s1512 + $0x10a] sm:$0xff]
    %v1728 = vld [vmem:[%s1512 + $0x112] sm:$0xff]
    %v1729 = vld [vmem:[%s1512 + $0x122] sm:$0xff]
    %v1730 = vld [vmem:[%s1512 + $0x12a] sm:$0xff]
    %v1731 = vld [vmem:[%s1512 + $0x13a] sm:$0xff]
    %v1732 = vld [vmem:[%s1512 + $0x142] sm:$0xff]
    %v1733 = vld [vmem:[%s1512 + $0x152] sm:$0xff]
    %v1734 = vld [vmem:[%s1512 + $0x15a] sm:$0xff]
    %v1735 = vld [vmem:[%s1512 + $0x16a] sm:$0xff]
    %v1736 = vld [vmem:[%s1512 + $0x172] sm:$0xff]
    %v1737 = vld [vmem:[%s1512 + $0x1b2] sm:$0xff]
    %v1738 = vld [vmem:[%s1512 + $0x1ba] sm:$0xff]
    %v1739 = vld [vmem:[%s1512 + $0x1ca] sm:$0xff]
    %v1740 = vld [vmem:[%s1512 + $0x1d2] sm:$0xff]
    %v1741 = vld [vmem:[%s1512 + $0x1e2] sm:$0xff]
    %v1742 = vld [vmem:[%s1512 + $0x1ea] sm:$0xff]
    %v1743 = vld [vmem:[%s1512 + $0x1fa] sm:$0xff]
    %v1744 = vld [vmem:[%s1512 + $0x202] sm:$0xff]
    %v1745 = vld [vmem:[%s1512 + $0x212] sm:$0xff]
    %v1746 = vld [vmem:[%s1512 + $0x21a] sm:$0xff]
    %v1747 = vld [vmem:[%s1512 + $0x22a] sm:$0xff]
    %v1748 = vld [vmem:[%s1512 + $0x232] sm:$0xff]
    %v1749 = vld [vmem:[%s1512 + $0x242] sm:$0xff]
    %v1750 = vld [vmem:[%s1512 + $0x24a] sm:$0xff]
    %v1751 = vld [vmem:[%s1512 + $0x25a] sm:$0xff]
    %v1752 = vld [vmem:[%s1512 + $0x262] sm:$0xff]
    %v1753 = vld [vmem:[%s1512 + $0x272] sm:$0xff]
    %v1754 = vld [vmem:[%s1512 + $0x27a] sm:$0xff]
    %v1755 = vld [vmem:[%s1512 + $0x28a] sm:$0xff]
    %v1756 = vld [vmem:[%s1512 + $0x292] sm:$0xff]
    %v1757 = vld [vmem:[%s1512 + $0x2a2] sm:$0xff]
    %v1758 = vld [vmem:[%s1512 + $0x2aa] sm:$0xff]
    %v1759 = vld [vmem:[%s1512 + $0x2ba] sm:$0xff]
    %v1760 = vld [vmem:[%s1512 + $0x2c2] sm:$0xff]
    %v1761 = vld [vmem:[%s1512 + $0x2d2] sm:$0xff]
    %v1762 = vld [vmem:[%s1512 + $0x2da] sm:$0xff]
    %v1763 = vld [vmem:[%s1512 + $0x2ea] sm:$0xff]
    %v1764 = vld [vmem:[%s1512 + $0x2f2] sm:$0xff]
    %v1765 = vld [vmem:[%s1512 + $0x302] sm:$0xff]
    %v1766 = vld [vmem:[%s1512 + $0x30a] sm:$0xff]
    %v1767 = vld [vmem:[%s1512 + $0x31a] sm:$0xff]
    %v1768 = vld [vmem:[%s1512 + $0x322] sm:$0xff]
    %v1769 = vpack.c.bf16 %v1706, %v1705
    %v1770 = vpack.c.bf16 %v1708, %v1707
    %v1771 = vpack.c.bf16 %v1710, %v1709
    %v1772 = vpack.c.bf16 %v1712, %v1711
    %v1773 = vpack.c.bf16 %v1714, %v1713
    %v1774 = vpack.c.bf16 %v1716, %v1715
    %v1775 = vpack.c.bf16 %v1718, %v1717
    %v1776 = vpack.c.bf16 %v1720, %v1719
    %v1777 = vpack.c.bf16 %v1722, %v1721
    %v1778 = vpack.c.bf16 %v1724, %v1723
    %v1779 = vpack.c.bf16 %v1726, %v1725
    %v1780 = vpack.c.bf16 %v1728, %v1727
    %v1781 = vpack.c.bf16 %v1730, %v1729
    %v1782 = vpack.c.bf16 %v1732, %v1731
    %v1783 = vpack.c.bf16 %v1734, %v1733
    %v1784 = vpack.c.bf16 %v1736, %v1735
    %v1785 = vpack.c.bf16 %v1738, %v1737
    %v1786 = vpack.c.bf16 %v1740, %v1739
    %v1787 = vpack.c.bf16 %v1742, %v1741
    %v1788 = vpack.c.bf16 %v1744, %v1743
    %v1789 = vpack.c.bf16 %v1746, %v1745
    %v1790 = vpack.c.bf16 %v1748, %v1747
    %v1791 = vpack.c.bf16 %v1750, %v1749
    %v1792 = vpack.c.bf16 %v1752, %v1751
    %v1793 = vpack.c.bf16 %v1754, %v1753
    %v1794 = vpack.c.bf16 %v1756, %v1755
    %v1795 = vpack.c.bf16 %v1758, %v1757
    %v1796 = vpack.c.bf16 %v1760, %v1759
    %v1797 = vpack.c.bf16 %v1762, %v1761
    %v1798 = vpack.c.bf16 %v1764, %v1763
    %v1799 = vpack.c.bf16 %v1766, %v1765
    %v1800 = vpack.c.bf16 %v1768, %v1767
    %v1801 = vld [vmem:[#allocation8] sm:$0xf]
    %v1802 = vld [vmem:[#allocation8 + $0x4] sm:$0xf]
    %v1803 = vld [vmem:[#allocation8 + $0x8] sm:$0xf]
    %v1804 = vld [vmem:[#allocation8 + $0xc] sm:$0xf]
    %v1805 = vld [vmem:[#allocation8 + $0x10] sm:$0xf]
    %v1806 = vld [vmem:[#allocation8 + $0x14] sm:$0xf]
    %v1807 = vld [vmem:[#allocation8 + $0x18] sm:$0xf]
    %v1808 = vld [vmem:[#allocation8 + $0x1c] sm:$0xf]
    %v1809 = vld [vmem:[#allocation8 + $0x20] sm:$0xf]
    %v1810 = vld [vmem:[#allocation8 + $0x24] sm:$0xf]
    %v1811 = vld [vmem:[#allocation8 + $0x28] sm:$0xf]
    %v1812 = vld [vmem:[#allocation8 + $0x2c] sm:$0xf]
    %v1813 = vld [vmem:[#allocation8 + $0x30] sm:$0xf]
    %v1814 = vld [vmem:[#allocation8 + $0x34] sm:$0xf]
    %v1815 = vld [vmem:[#allocation8 + $0x38] sm:$0xf]
    %v1816 = vld [vmem:[#allocation8 + $0x3c] sm:$0xf]
    %v1817 = vld [vmem:[#allocation8 + $0x40] sm:$0xf]
    %v1818 = vld [vmem:[#allocation8 + $0x44] sm:$0xf]
    %v1819 = vld [vmem:[#allocation8 + $0x48] sm:$0xf]
    %v1820 = vld [vmem:[#allocation8 + $0x4c] sm:$0xf]
    %v1821 = vld [vmem:[#allocation8 + $0x50] sm:$0xf]
    %v1822 = vld [vmem:[#allocation8 + $0x54] sm:$0xf]
    %v1823 = vld [vmem:[#allocation8 + $0x58] sm:$0xf]
    %v1824 = vld [vmem:[#allocation8 + $0x5c] sm:$0xf]
    %v1825 = vld [vmem:[#allocation8 + $0x60] sm:$0xf]
    %v1826 = vld [vmem:[#allocation8 + $0x64] sm:$0xf]
    %v1827 = vld [vmem:[#allocation8 + $0x68] sm:$0xf]
    %v1828 = vld [vmem:[#allocation8 + $0x6c] sm:$0xf]
    %v1829 = vld [vmem:[#allocation8 + $0x70] sm:$0xf]
    %v1830 = vld [vmem:[#allocation8 + $0x74] sm:$0xf]
    %v1831 = vld [vmem:[#allocation8 + $0x78] sm:$0xf]
    %v1832 = vld [vmem:[#allocation8 + $0x7c] sm:$0xf]
    %v1833 = vld [vmem:[#allocation8 + $0x80] sm:$0xf]
    %v1834 = vld [vmem:[#allocation8 + $0x84] sm:$0xf]
    %v1835 = vld [vmem:[#allocation8 + $0x88] sm:$0xf]
    %v1836 = vld [vmem:[#allocation8 + $0x8c] sm:$0xf]
    %v1837 = vld [vmem:[#allocation8 + $0x90] sm:$0xf]
    %v1838 = vld [vmem:[#allocation8 + $0x94] sm:$0xf]
    %v1839 = vld [vmem:[#allocation8 + $0x98] sm:$0xf]
    %v1840 = vld [vmem:[#allocation8 + $0x9c] sm:$0xf]
    %v1841 = vld [vmem:[#allocation8 + $0xa0] sm:$0xf]
    %v1842 = vld [vmem:[#allocation8 + $0xa4] sm:$0xf]
    %v1843 = vld [vmem:[#allocation8 + $0xa8] sm:$0xf]
    %v1844 = vld [vmem:[#allocation8 + $0xac] sm:$0xf]
    %v1845 = vld [vmem:[#allocation8 + $0xb0] sm:$0xf]
    %v1846 = vld [vmem:[#allocation8 + $0xb4] sm:$0xf]
    %v1847 = vld [vmem:[#allocation8 + $0xb8] sm:$0xf]
    %v1848 = vld [vmem:[#allocation8 + $0xbc] sm:$0xf]
    %v1849 = vld [vmem:[#allocation8 + $0xc0] sm:$0xf]
    %v1850 = vld [vmem:[#allocation8 + $0xc4] sm:$0xf]
    %v1851 = vld [vmem:[#allocation8 + $0xc8] sm:$0xf]
    %v1852 = vld [vmem:[#allocation8 + $0xcc] sm:$0xf]
    %v1853 = vld [vmem:[#allocation8 + $0xd0] sm:$0xf]
    %v1854 = vld [vmem:[#allocation8 + $0xd4] sm:$0xf]
    %v1855 = vld [vmem:[#allocation8 + $0xd8] sm:$0xf]
    %v1856 = vld [vmem:[#allocation8 + $0xdc] sm:$0xf]
    %v1857 = vld [vmem:[#allocation8 + $0xe0] sm:$0xf]
    %v1858 = vld [vmem:[#allocation8 + $0xe4] sm:$0xf]
    %v1859 = vld [vmem:[#allocation8 + $0xe8] sm:$0xf]
    %v1860 = vld [vmem:[#allocation8 + $0xec] sm:$0xf]
    %v1861 = vld [vmem:[#allocation8 + $0xf0] sm:$0xf]
    %v1862 = vld [vmem:[#allocation8 + $0xf4] sm:$0xf]
    %v1863 = vld [vmem:[#allocation8 + $0xf8] sm:$0xf]
    %v1864 = vld [vmem:[#allocation8 + $0xfc] sm:$0xf]
    %v1865 = vld [vmem:[#allocation8 + $0x100] sm:$0xf]
    %v1866 = vld [vmem:[#allocation8 + $0x104] sm:$0xf]
    %v1867 = vld [vmem:[#allocation8 + $0x108] sm:$0xf]
    %v1868 = vld [vmem:[#allocation8 + $0x10c] sm:$0xf]
    %v1869 = vld [vmem:[#allocation8 + $0x110] sm:$0xf]
    %v1870 = vld [vmem:[#allocation8 + $0x114] sm:$0xf]
    %v1871 = vld [vmem:[#allocation8 + $0x118] sm:$0xf]
    %v1872 = vld [vmem:[#allocation8 + $0x11c] sm:$0xf]
    %v1873 = vld [vmem:[#allocation8 + $0x120] sm:$0xf]
    %v1874 = vld [vmem:[#allocation8 + $0x124] sm:$0xf]
    %v1875 = vld [vmem:[#allocation8 + $0x128] sm:$0xf]
    %v1876 = vld [vmem:[#allocation8 + $0x12c] sm:$0xf]
    %v1877 = vld [vmem:[#allocation8 + $0x130] sm:$0xf]
    %v1878 = vld [vmem:[#allocation8 + $0x134] sm:$0xf]
    %v1879 = vld [vmem:[#allocation8 + $0x138] sm:$0xf]
    %v1880 = vld [vmem:[#allocation8 + $0x13c] sm:$0xf]
    %v1881 = vld [vmem:[#allocation8 + $0x140] sm:$0xf]
    %v1882 = vld [vmem:[#allocation8 + $0x144] sm:$0xf]
    %v1883 = vld [vmem:[#allocation8 + $0x148] sm:$0xf]
    %v1884 = vld [vmem:[#allocation8 + $0x14c] sm:$0xf]
    %v1885 = vld [vmem:[#allocation8 + $0x150] sm:$0xf]
    %v1886 = vld [vmem:[#allocation8 + $0x154] sm:$0xf]
    %v1887 = vld [vmem:[#allocation8 + $0x158] sm:$0xf]
    %v1888 = vld [vmem:[#allocation8 + $0x15c] sm:$0xf]
    %v1889 = vld [vmem:[#allocation8 + $0x160] sm:$0xf]
    %v1890 = vld [vmem:[#allocation8 + $0x164] sm:$0xf]
    %v1891 = vld [vmem:[#allocation8 + $0x168] sm:$0xf]
    %v1892 = vld [vmem:[#allocation8 + $0x16c] sm:$0xf]
    %v1893 = vld [vmem:[#allocation8 + $0x170] sm:$0xf]
    %v1894 = vld [vmem:[#allocation8 + $0x174] sm:$0xf]
    %v1895 = vld [vmem:[#allocation8 + $0x178] sm:$0xf]
    %v1896 = vld [vmem:[#allocation8 + $0x17c] sm:$0xf]
    %v1897 = vld [vmem:[#allocation8 + $0x180] sm:$0xf]
    %v1898 = vld [vmem:[#allocation8 + $0x184] sm:$0xf]
    %v1899 = vld [vmem:[#allocation8 + $0x188] sm:$0xf]
    %v1900 = vld [vmem:[#allocation8 + $0x18c] sm:$0xf]
    %v1901 = vld [vmem:[#allocation8 + $0x190] sm:$0xf]
    %v1902 = vld [vmem:[#allocation8 + $0x194] sm:$0xf]
    %v1903 = vld [vmem:[#allocation8 + $0x198] sm:$0xf]
    %v1904 = vld [vmem:[#allocation8 + $0x19c] sm:$0xf]
    %v1905 = vld [vmem:[#allocation8 + $0x1a0] sm:$0xf]
    %v1906 = vld [vmem:[#allocation8 + $0x1a4] sm:$0xf]
    %v1907 = vld [vmem:[#allocation8 + $0x1a8] sm:$0xf]
    %v1908 = vld [vmem:[#allocation8 + $0x1ac] sm:$0xf]
    %v1909 = vld [vmem:[#allocation8 + $0x1b0] sm:$0xf]
    %v1910 = vld [vmem:[#allocation8 + $0x1b4] sm:$0xf]
    %v1911 = vld [vmem:[#allocation8 + $0x1b8] sm:$0xf]
    %v1912 = vld [vmem:[#allocation8 + $0x1bc] sm:$0xf]
    %v1913 = vld [vmem:[#allocation8 + $0x1c0] sm:$0xf]
    %v1914 = vld [vmem:[#allocation8 + $0x1c4] sm:$0xf]
    %v1915 = vld [vmem:[#allocation8 + $0x1c8] sm:$0xf]
    %v1916 = vld [vmem:[#allocation8 + $0x1cc] sm:$0xf]
    %v1917 = vld [vmem:[#allocation8 + $0x1d0] sm:$0xf]
    %v1918 = vld [vmem:[#allocation8 + $0x1d4] sm:$0xf]
    %v1919 = vld [vmem:[#allocation8 + $0x1d8] sm:$0xf]
    %v1920 = vld [vmem:[#allocation8 + $0x1dc] sm:$0xf]
    %v1921 = vld [vmem:[#allocation8 + $0x1e0] sm:$0xf]
    %v1922 = vld [vmem:[#allocation8 + $0x1e4] sm:$0xf]
    %v1923 = vld [vmem:[#allocation8 + $0x1e8] sm:$0xf]
    %v1924 = vld [vmem:[#allocation8 + $0x1ec] sm:$0xf]
    %v1925 = vld [vmem:[#allocation8 + $0x1f0] sm:$0xf]
    %v1926 = vld [vmem:[#allocation8 + $0x1f4] sm:$0xf]
    %v1927 = vld [vmem:[#allocation8 + $0x1f8] sm:$0xf]
    %v1928 = vld [vmem:[#allocation8 + $0x1fc] sm:$0xf]
    %v1929 = vld [vmem:[#allocation8 + $0x200] sm:$0xf]
    %v1930 = vld [vmem:[#allocation8 + $0x204] sm:$0xf]
    %v1931 = vld [vmem:[#allocation8 + $0x208] sm:$0xf]
    %v1932 = vld [vmem:[#allocation8 + $0x20c] sm:$0xf]
    %v1933 = vld [vmem:[#allocation8 + $0x210] sm:$0xf]
    %v1934 = vld [vmem:[#allocation8 + $0x214] sm:$0xf]
    %v1935 = vld [vmem:[#allocation8 + $0x218] sm:$0xf]
    %v1936 = vld [vmem:[#allocation8 + $0x21c] sm:$0xf]
    %v1937 = vld [vmem:[#allocation8 + $0x220] sm:$0xf]
    %v1938 = vld [vmem:[#allocation8 + $0x224] sm:$0xf]
    %v1939 = vld [vmem:[#allocation8 + $0x228] sm:$0xf]
    %v1940 = vld [vmem:[#allocation8 + $0x22c] sm:$0xf]
    %v1941 = vld [vmem:[#allocation8 + $0x230] sm:$0xf]
    %v1942 = vld [vmem:[#allocation8 + $0x234] sm:$0xf]
    %v1943 = vld [vmem:[#allocation8 + $0x238] sm:$0xf]
    %v1944 = vld [vmem:[#allocation8 + $0x23c] sm:$0xf]
    %v1945 = vld [vmem:[%s4] sm:$0x1]
    %v1947 = vlaneseq
    %v1948 = vshrl.u32 %v1947, 7
    %v1949 = vsub.s32 0, %v1948
    %v1950 = vrot.slane %v1945, %v1949
    %v2096 = vunpack.c.l.b16 %v1801
    %v2097 = vunpack.c.l.b16 %v1802
    %v2098 = vunpack.c.l.b16 %v1803
    %v2099 = vunpack.c.l.b16 %v1804
    %v2100 = vunpack.c.l.b16 %v1805
    %v2101 = vunpack.c.l.b16 %v1806
    %v2102 = vunpack.c.l.b16 %v1807
    %v2103 = vunpack.c.l.b16 %v1808
    %v2104 = vunpack.c.l.b16 %v1809
    %v2105 = vunpack.c.l.b16 %v1810
    %v2106 = vunpack.c.l.b16 %v1811
    %v2107 = vunpack.c.l.b16 %v1812
    %v2108 = vunpack.c.l.b16 %v1813
    %v2109 = vunpack.c.l.b16 %v1814
    %v2110 = vunpack.c.l.b16 %v1815
    %v2111 = vunpack.c.l.b16 %v1816
    %v2112 = vunpack.c.l.b16 %v1817
    %v2113 = vunpack.c.l.b16 %v1818
    %v2114 = vunpack.c.l.b16 %v1819
    %v2115 = vunpack.c.l.b16 %v1820
    %v2116 = vunpack.c.l.b16 %v1821
    %v2117 = vunpack.c.l.b16 %v1822
    %v2118 = vunpack.c.l.b16 %v1823
    %v2119 = vunpack.c.l.b16 %v1824
    %v2120 = vunpack.c.l.b16 %v1825
    %v2121 = vunpack.c.l.b16 %v1826
    %v2122 = vunpack.c.l.b16 %v1827
    %v2123 = vunpack.c.l.b16 %v1828
    %v2124 = vunpack.c.l.b16 %v1829
    %v2125 = vunpack.c.l.b16 %v1830
    %v2126 = vunpack.c.l.b16 %v1831
    %v2127 = vunpack.c.l.b16 %v1832
    %v2128 = vunpack.c.l.b16 %v1833
    %v2129 = vunpack.c.l.b16 %v1834
    %v2130 = vunpack.c.l.b16 %v1835
    %v2131 = vunpack.c.l.b16 %v1836
    %v2132 = vunpack.c.l.b16 %v1837
    %v2133 = vunpack.c.l.b16 %v1838
    %v2134 = vunpack.c.l.b16 %v1839
    %v2135 = vunpack.c.l.b16 %v1840
    %v2136 = vunpack.c.l.b16 %v1841
    %v2137 = vunpack.c.l.b16 %v1842
    %v2138 = vunpack.c.l.b16 %v1843
    %v2139 = vunpack.c.l.b16 %v1844
    %v2140 = vunpack.c.l.b16 %v1845
    %v2141 = vunpack.c.l.b16 %v1846
    %v2142 = vunpack.c.l.b16 %v1847
    %v2143 = vunpack.c.l.b16 %v1848
    %v2144 = vunpack.c.l.b16 %v1849
    %v2145 = vunpack.c.l.b16 %v1850
    %v2146 = vunpack.c.l.b16 %v1851
    %v2147 = vunpack.c.l.b16 %v1852
    %v2148 = vunpack.c.l.b16 %v1853
    %v2149 = vunpack.c.l.b16 %v1854
    %v2150 = vunpack.c.l.b16 %v1855
    %v2151 = vunpack.c.l.b16 %v1856
    %v2152 = vunpack.c.l.b16 %v1857
    %v2153 = vunpack.c.l.b16 %v1858
    %v2154 = vunpack.c.l.b16 %v1859
    %v2155 = vunpack.c.l.b16 %v1860
    %v2156 = vunpack.c.l.b16 %v1861
    %v2157 = vunpack.c.l.b16 %v1862
    %v2158 = vunpack.c.l.b16 %v1863
    %v2159 = vunpack.c.l.b16 %v1864
    %v2160 = vunpack.c.l.b16 %v1865
    %v2161 = vunpack.c.l.b16 %v1866
    %v2162 = vunpack.c.l.b16 %v1867
    %v2163 = vunpack.c.l.b16 %v1868
    %v2164 = vunpack.c.l.b16 %v1869
    %v2165 = vunpack.c.l.b16 %v1870
    %v2166 = vunpack.c.l.b16 %v1871
    %v2167 = vunpack.c.l.b16 %v1872
    %v2168 = vunpack.c.l.b16 %v1873
    %v2169 = vunpack.c.l.b16 %v1874
    %v2170 = vunpack.c.l.b16 %v1875
    %v2171 = vunpack.c.l.b16 %v1876
    %v2172 = vunpack.c.l.b16 %v1877
    %v2173 = vunpack.c.l.b16 %v1878
    %v2174 = vunpack.c.l.b16 %v1879
    %v2175 = vunpack.c.l.b16 %v1880
    %v2176 = vunpack.c.l.b16 %v1881
    %v2177 = vunpack.c.l.b16 %v1882
    %v2178 = vunpack.c.l.b16 %v1883
    %v2179 = vunpack.c.l.b16 %v1884
    %v2180 = vunpack.c.l.b16 %v1885
    %v2181 = vunpack.c.l.b16 %v1886
    %v2182 = vunpack.c.l.b16 %v1887
    %v2183 = vunpack.c.l.b16 %v1888
    %v2184 = vunpack.c.l.b16 %v1889
    %v2185 = vunpack.c.l.b16 %v1890
    %v2186 = vunpack.c.l.b16 %v1891
    %v2187 = vunpack.c.l.b16 %v1892
    %v2188 = vunpack.c.l.b16 %v1893
    %v2189 = vunpack.c.l.b16 %v1894
    %v2190 = vunpack.c.l.b16 %v1895
    %v2191 = vunpack.c.l.b16 %v1896
    %v2192 = vunpack.c.l.b16 %v1897
    %v2193 = vunpack.c.l.b16 %v1898
    %v2194 = vunpack.c.l.b16 %v1899
    %v2195 = vunpack.c.l.b16 %v1900
    %v2196 = vunpack.c.l.b16 %v1901
    %v2197 = vunpack.c.l.b16 %v1902
    %v2198 = vunpack.c.l.b16 %v1903
    %v2199 = vunpack.c.l.b16 %v1904
    %v2200 = vunpack.c.l.b16 %v1905
    %v2201 = vunpack.c.l.b16 %v1906
    %v2202 = vunpack.c.l.b16 %v1907
    %v2203 = vunpack.c.l.b16 %v1908
    %v2204 = vunpack.c.l.b16 %v1909
    %v2205 = vunpack.c.l.b16 %v1910
    %v2206 = vunpack.c.l.b16 %v1911
    %v2207 = vunpack.c.l.b16 %v1912
    %v2208 = vunpack.c.l.b16 %v1913
    %v2209 = vunpack.c.l.b16 %v1914
    %v2210 = vunpack.c.l.b16 %v1915
    %v2211 = vunpack.c.l.b16 %v1916
    %v2212 = vunpack.c.l.b16 %v1917
    %v2213 = vunpack.c.l.b16 %v1918
    %v2214 = vunpack.c.l.b16 %v1919
    %v2215 = vunpack.c.l.b16 %v1920
    %v2216 = vunpack.c.l.b16 %v1921
    %v2217 = vunpack.c.l.b16 %v1922
    %v2218 = vunpack.c.l.b16 %v1923
    %v2219 = vunpack.c.l.b16 %v1924
    %v2220 = vunpack.c.l.b16 %v1925
    %v2221 = vunpack.c.l.b16 %v1926
    %v2222 = vunpack.c.l.b16 %v1927
    %v2223 = vunpack.c.l.b16 %v1928
    %v2224 = vunpack.c.l.b16 %v1929
    %v2225 = vunpack.c.l.b16 %v1930
    %v2226 = vunpack.c.l.b16 %v1931
    %v2227 = vunpack.c.l.b16 %v1932
    %v2228 = vunpack.c.l.b16 %v1933
    %v2229 = vunpack.c.l.b16 %v1934
    %v2230 = vunpack.c.l.b16 %v1935
    %v2231 = vunpack.c.l.b16 %v1936
    %v2232 = vunpack.c.l.b16 %v1937
    %v2233 = vunpack.c.l.b16 %v1938
    %v2234 = vunpack.c.l.b16 %v1939
    %v2235 = vunpack.c.l.b16 %v1940
    %v2236 = vunpack.c.l.b16 %v1941
    %v2237 = vunpack.c.l.b16 %v1942
    %v2238 = vunpack.c.l.b16 %v1943
    %v2239 = vunpack.c.l.b16 %v1944
    %v2240 = vpack.c.b16 %v2097, %v2096
    %v2241 = vpack.c.b16 %v2099, %v2098
    %v2242 = vpack.c.b16 %v2101, %v2100
    %v2243 = vpack.c.b16 %v2103, %v2102
    %v2244 = vpack.c.b16 %v2105, %v2104
    %v2245 = vpack.c.b16 %v2107, %v2106
    %v2246 = vpack.c.b16 %v2109, %v2108
    %v2247 = vpack.c.b16 %v2111, %v2110
    %v2248 = vpack.c.b16 %v2113, %v2112
    %v2249 = vpack.c.b16 %v2115, %v2114
    %v2250 = vpack.c.b16 %v2117, %v2116
    %v2251 = vpack.c.b16 %v2119, %v2118
    %v2252 = vpack.c.b16 %v2121, %v2120
    %v2253 = vpack.c.b16 %v2123, %v2122
    %v2254 = vpack.c.b16 %v2125, %v2124
    %v2255 = vpack.c.b16 %v2127, %v2126
    %v2256 = vpack.c.b16 %v2129, %v2128
    %v2257 = vpack.c.b16 %v2131, %v2130
    %v2258 = vpack.c.b16 %v2133, %v2132
    %v2259 = vpack.c.b16 %v2135, %v2134
    %v2260 = vpack.c.b16 %v2137, %v2136
    %v2261 = vpack.c.b16 %v2139, %v2138
    %v2262 = vpack.c.b16 %v2141, %v2140
    %v2263 = vpack.c.b16 %v2143, %v2142
    %v2264 = vpack.c.b16 %v2145, %v2144
    %v2265 = vpack.c.b16 %v2147, %v2146
    %v2266 = vpack.c.b16 %v2149, %v2148
    %v2267 = vpack.c.b16 %v2151, %v2150
    %v2268 = vpack.c.b16 %v2153, %v2152
    %v2269 = vpack.c.b16 %v2155, %v2154
    %v2270 = vpack.c.b16 %v2157, %v2156
    %v2271 = vpack.c.b16 %v2159, %v2158
    %v2272 = vpack.c.b16 %v2161, %v2160
    %v2273 = vpack.c.b16 %v2163, %v2162
    %v2274 = vpack.c.b16 %v2165, %v2164
    %v2275 = vpack.c.b16 %v2167, %v2166
    %v2276 = vpack.c.b16 %v2169, %v2168
    %v2277 = vpack.c.b16 %v2171, %v2170
    %v2278 = vpack.c.b16 %v2173, %v2172
    %v2279 = vpack.c.b16 %v2175, %v2174
    %v2280 = vpack.c.b16 %v2177, %v2176
    %v2281 = vpack.c.b16 %v2179, %v2178
    %v2282 = vpack.c.b16 %v2181, %v2180
    %v2283 = vpack.c.b16 %v2183, %v2182
    %v2284 = vpack.c.b16 %v2185, %v2184
    %v2285 = vpack.c.b16 %v2187, %v2186
    %v2286 = vpack.c.b16 %v2189, %v2188
    %v2287 = vpack.c.b16 %v2191, %v2190
    %v2288 = vpack.c.b16 %v2193, %v2192
    %v2289 = vpack.c.b16 %v2195, %v2194
    %v2290 = vpack.c.b16 %v2197, %v2196
    %v2291 = vpack.c.b16 %v2199, %v2198
    %v2292 = vpack.c.b16 %v2201, %v2200
    %v2293 = vpack.c.b16 %v2203, %v2202
    %v2294 = vpack.c.b16 %v2205, %v2204
    %v2295 = vpack.c.b16 %v2207, %v2206
    %v2296 = vpack.c.b16 %v2209, %v2208
    %v2297 = vpack.c.b16 %v2211, %v2210
    %v2298 = vpack.c.b16 %v2213, %v2212
    %v2299 = vpack.c.b16 %v2215, %v2214
    %v2300 = vpack.c.b16 %v2217, %v2216
    %v2301 = vpack.c.b16 %v2219, %v2218
    %v2302 = vpack.c.b16 %v2221, %v2220
    %v2303 = vpack.c.b16 %v2223, %v2222
    %v2304 = vpack.c.b16 %v2225, %v2224
    %v2305 = vpack.c.b16 %v2227, %v2226
    %v2306 = vpack.c.b16 %v2229, %v2228
    %v2307 = vpack.c.b16 %v2231, %v2230
    %v2308 = vpack.c.b16 %v2233, %v2232
    %v2309 = vpack.c.b16 %v2235, %v2234
    %v2310 = vpack.c.b16 %v2237, %v2236
    %v2311 = vpack.c.b16 %v2239, %v2238
    %2384 = vmatprep.subr.bf16.mxu0 0
    %2385 = vmatpush1.bf16.msra.mxu0 %v2240
    %2386 = vmatprep.subr.bf16.mxu0 0
    %2387 = vmatpush1.bf16.msra.mxu0 %v2241
    %2388 = vmatprep.subr.bf16.mxu0 0
    %2389 = vmatpush1.bf16.msra.mxu0 %v2242
    %2390 = vmatprep.subr.bf16.mxu0 0
    %2391 = vmatpush1.bf16.msra.mxu0 %v2243
    %2392 = vmatprep.subr.bf16.mxu0 0
    %2393 = vmatpush1.bf16.msra.mxu0 %v2244
    %2394 = vmatprep.subr.bf16.mxu0 0
    %2395 = vmatpush1.bf16.msra.mxu0 %v2245
    %2396 = vmatprep.subr.bf16.mxu0 0
    %2397 = vmatpush1.bf16.msra.mxu0 %v2246
    %2398 = vmatprep.subr.bf16.mxu0 0
    %2399 = vmatpush1.bf16.msra.mxu0 %v2247
    %2400 = vmatprep.subr.bf16.mxu0 0
    %2401 = vmatpush1.bf16.msra.mxu0 %v2248
    %2402 = vmatprep.subr.bf16.mxu0 0
    %2403 = vmatpush1.bf16.msra.mxu0 %v2249
    %2404 = vmatprep.subr.bf16.mxu0 0
    %2405 = vmatpush1.bf16.msra.mxu0 %v2250
    %2406 = vmatprep.subr.bf16.mxu0 0
    %2407 = vmatpush1.bf16.msra.mxu0 %v2251
    %2408 = vmatprep.subr.bf16.mxu0 0
    %2409 = vmatpush1.bf16.msra.mxu0 %v2252
    %2410 = vmatprep.subr.bf16.mxu0 0
    %2411 = vmatpush1.bf16.msra.mxu0 %v2253
    %2412 = vmatprep.subr.bf16.mxu0 0
    %2413 = vmatpush1.bf16.msra.mxu0 %v2254
    %2414 = vmatprep.subr.bf16.mxu0 0
    %2415 = vmatpush1.bf16.msra.mxu0 %v2255
    %2416 = vmatprep.mubr.bf16.mxu0 %v1096
    %2417 = vmatmul.mubr.bf16.gmra.mrb[0].mxu0 %v1000
    %v2418 = vpop.f32.mrb[0].mxu0
    %v2419 = vadd.f32 %v1950, %v2418
    %v2420 = vpop.f32.mrb[0].mxu0
    %v2421 = vpop.f32.mrb[0].mxu0
    %v2422 = vadd.f32 %v1950, %v2421
    %v2423 = vpop.f32.mrb[0].mxu0
    %2424 = vmatprep.mubr.bf16.mxu0 %v1097
    %2425 = vmatmul.mubr.bf16.gmra.mrb[0].mxu0 %v1001
    %v2426 = vpop.f32.mrb[0].mxu0
    %v2427 = vadd.f32 %v1950, %v2426
    %v2428 = vpop.f32.mrb[0].mxu0
    %v2429 = vpop.f32.mrb[0].mxu0
    %v2430 = vadd.f32 %v1950, %v2429
    %v2431 = vpop.f32.mrb[0].mxu0
    %2432 = vmatprep.mubr.bf16.mxu0 %v1098
    %2433 = vmatmul.mubr.bf16.gmra.mrb[0].mxu0 %v1002
    %v2434 = vpop.f32.mrb[0].mxu0
    %v2435 = vadd.f32 %v1950, %v2434
    %v2436 = vpop.f32.mrb[0].mxu0
    %v2437 = vpop.f32.mrb[0].mxu0
    %v2438 = vadd.f32 %v1950, %v2437
    %v2439 = vpop.f32.mrb[0].mxu0
    %2440 = vmatprep.mubr.bf16.mxu0 %v1099
    %2441 = vmatmul.mubr.bf16.gmra.mrb[0].mxu0 %v1003
    %v2442 = vpop.f32.mrb[0].mxu0
    %v2443 = vadd.f32 %v1950, %v2442
    %v2444 = vpop.f32.mrb[0].mxu0
    %v2445 = vpop.f32.mrb[0].mxu0
    %v2446 = vadd.f32 %v1950, %v2445
    %v2447 = vpop.f32.mrb[0].mxu0
    %2448 = vmatprep.mubr.bf16.mxu0 %v1100
    %2449 = vmatmul.mubr.bf16.gmra.mrb[0].mxu0 %v1004
    %v2450 = vpop.f32.mrb[0].mxu0
    %v2451 = vadd.f32 %v1950, %v2450
    %v2452 = vpop.f32.mrb[0].mxu0
    %v2453 = vpop.f32.mrb[0].mxu0
    %v2454 = vadd.f32 %v1950, %v2453
    %v2455 = vpop.f32.mrb[0].mxu0
    %2456 = vmatprep.mubr.bf16.mxu0 %v1101
    %2457 = vmatmul.mubr.bf16.gmra.mrb[0].mxu0 %v1005
    %v2458 = vpop.f32.mrb[0].mxu0
    %v2459 = vadd.f32 %v1950, %v2458
    %v2460 = vpop.f32.mrb[0].mxu0
    %v2461 = vpop.f32.mrb[0].mxu0
    %v2462 = vadd.f32 %v1950, %v2461
    %v2463 = vpop.f32.mrb[0].mxu0
    %2464 = vmatprep.mubr.bf16.mxu0 %v1102
    %2465 = vmatmul.mubr.bf16.gmra.mrb[0].mxu0 %v1006
    %v2466 = vpop.f32.mrb[0].mxu0
    %v2467 = vadd.f32 %v1950, %v2466
    %v2468 = vpop.f32.mrb[0].mxu0
    %v2469 = vpop.f32.mrb[0].mxu0
    %v2470 = vadd.f32 %v1950, %v2469
    %v2471 = vpop.f32.mrb[0].mxu0
    %2472 = vmatprep.mubr.bf16.mxu0 %v1103
    %2473 = vmatmul.mubr.bf16.gmra.mrb[0].mxu0 %v1007
    %v2474 = vpop.f32.mrb[0].mxu0
    %v2475 = vadd.f32 %v1950, %v2474
    %v2476 = vpop.f32.mrb[0].mxu0
    %v2477 = vpop.f32.mrb[0].mxu0
    %v2478 = vadd.f32 %v1950, %v2477
    %v2479 = vpop.f32.mrb[0].mxu0
    %2480 = vmatprep.mubr.bf16.mxu0 %v1104
    %2481 = vmatmul.mubr.bf16.gmra.mrb[0].mxu0 %v1008
    %v2482 = vpop.f32.mrb[0].mxu0
    %v2483 = vadd.f32 %v1950, %v2482
    %v2484 = vpop.f32.mrb[0].mxu0
    %v2485 = vpop.f32.mrb[0].mxu0
    %v2486 = vadd.f32 %v1950, %v2485
    %v2487 = vpop.f32.mrb[0].mxu0
    %2488 = vmatprep.mubr.bf16.mxu0 %v1105
    %2489 = vmatmul.mubr.bf16.gmra.mrb[0].mxu0 %v1009
    %v2490 = vpop.f32.mrb[0].mxu0
    %v2491 = vadd.f32 %v1950, %v2490
    %v2492 = vpop.f32.mrb[0].mxu0
    %v2493 = vpop.f32.mrb[0].mxu0
    %v2494 = vadd.f32 %v1950, %v2493
    %v2495 = vpop.f32.mrb[0].mxu0
    %2496 = vmatprep.mubr.bf16.mxu0 %v1106
    %2497 = vmatmul.mubr.bf16.gmra.mrb[0].mxu0 %v1010
    %v2498 = vpop.f32.mrb[0].mxu0
    %v2499 = vadd.f32 %v1950, %v2498
    %v2500 = vpop.f32.mrb[0].mxu0
    %v2501 = vpop.f32.mrb[0].mxu0
    %v2502 = vadd.f32 %v1950, %v2501
    %v2503 = vpop.f32.mrb[0].mxu0
    %2504 = vmatprep.mubr.bf16.mxu0 %v1107
    %2505 = vmatmul.mubr.bf16.gmra.mrb[0].mxu0 %v1011
    %v2506 = vpop.f32.mrb[0].mxu0
    %v2507 = vadd.f32 %v1950, %v2506
    %v2508 = vpop.f32.mrb[0].mxu0
    %v2509 = vpop.f32.mrb[0].mxu0
    %v2510 = vadd.f32 %v1950, %v2509
    %v2511 = vpop.f32.mrb[0].mxu0
    %2512 = vmatprep.mubr.bf16.mxu0 %v1108
    %2513 = vmatmul.mubr.bf16.gmra.mrb[0].mxu0 %v1012
    %v2514 = vpop.f32.mrb[0].mxu0
    %v2515 = vadd.f32 %v1950, %v2514
    %v2516 = vpop.f32.mrb[0].mxu0
    %v2517 = vpop.f32.mrb[0].mxu0
    %v2518 = vadd.f32 %v1950, %v2517
    %v2519 = vpop.f32.mrb[0].mxu0
    %2520 = vmatprep.mubr.bf16.mxu0 %v1109
    %2521 = vmatmul.mubr.bf16.gmra.mrb[0].mxu0 %v1013
    %v2522 = vpop.f32.mrb[0].mxu0
    %v2523 = vadd.f32 %v1950, %v2522
    %v2524 = vpop.f32.mrb[0].mxu0
    %v2525 = vpop.f32.mrb[0].mxu0
    %v2526 = vadd.f32 %v1950, %v2525
    %v2527 = vpop.f32.mrb[0].mxu0
    %2528 = vmatprep.mubr.bf16.mxu0 %v1110
    %2529 = vmatmul.mubr.bf16.gmra.mrb[0].mxu0 %v1014
    %v2530 = vpop.f32.mrb[0].mxu0
    %v2531 = vadd.f32 %v1950, %v2530
    %v2532 = vpop.f32.mrb[0].mxu0
    %v2533 = vpop.f32.mrb[0].mxu0
    %v2534 = vadd.f32 %v1950, %v2533
    %v2535 = vpop.f32.mrb[0].mxu0
    %2536 = vmatprep.mubr.bf16.mxu0 %v1111
    %2537 = vmatmul.mubr.bf16.gmra.mrb[0].mxu0 %v1015
    %v2538 = vpop.f32.mrb[0].mxu0
    %v2539 = vadd.f32 %v1950, %v2538
    %v2540 = vpop.f32.mrb[0].mxu0
    %v2541 = vpop.f32.mrb[0].mxu0
    %v2542 = vadd.f32 %v1950, %v2541
    %v2543 = vpop.f32.mrb[0].mxu0
    %2544 = vmatprep.mubr.bf16.mxu0 %v1112
    %2545 = vmatmul.mubr.bf16.gmra.mrb[0].mxu0 %v1016
    %v2546 = vpop.f32.mrb[0].mxu0
    %v2547 = vadd.f32 %v1950, %v2546
    %v2548 = vpop.f32.mrb[0].mxu0
    %v2549 = vpop.f32.mrb[0].mxu0
    %v2550 = vadd.f32 %v1950, %v2549
    %v2551 = vpop.f32.mrb[0].mxu0
    %2552 = vmatprep.mubr.bf16.mxu0 %v1113
    %2553 = vmatmul.mubr.bf16.gmra.mrb[0].mxu0 %v1017
    %v2554 = vpop.f32.mrb[0].mxu0
    %v2555 = vadd.f32 %v1950, %v2554
    %v2556 = vpop.f32.mrb[0].mxu0
    %v2557 = vpop.f32.mrb[0].mxu0
    %v2558 = vadd.f32 %v1950, %v2557
    %v2559 = vpop.f32.mrb[0].mxu0
    %2560 = vmatprep.mubr.bf16.mxu0 %v1114
    %2561 = vmatmul.mubr.bf16.gmra.mrb[0].mxu0 %v1018
    %v2562 = vpop.f32.mrb[0].mxu0
    %v2563 = vadd.f32 %v1950, %v2562
    %v2564 = vpop.f32.mrb[0].mxu0
    %v2565 = vpop.f32.mrb[0].mxu0
    %v2566 = vadd.f32 %v1950, %v2565
    %v2567 = vpop.f32.mrb[0].mxu0
    %2568 = vmatprep.mubr.bf16.mxu0 %v1115
    %2569 = vmatmul.mubr.bf16.gmra.mrb[0].mxu0 %v1019
    %v2570 = vpop.f32.mrb[0].mxu0
    %v2571 = vadd.f32 %v1950, %v2570
    %v2572 = vpop.f32.mrb[0].mxu0
    %v2573 = vpop.f32.mrb[0].mxu0
    %v2574 = vadd.f32 %v1950, %v2573
    %v2575 = vpop.f32.mrb[0].mxu0
    %2576 = vmatprep.mubr.bf16.mxu0 %v1116
    %2577 = vmatmul.mubr.bf16.gmra.mrb[0].mxu0 %v1020
    %v2578 = vpop.f32.mrb[0].mxu0
    %v2579 = vadd.f32 %v1950, %v2578
    %v2580 = vpop.f32.mrb[0].mxu0
    %v2581 = vpop.f32.mrb[0].mxu0
    %v2582 = vadd.f32 %v1950, %v2581
    %v2583 = vpop.f32.mrb[0].mxu0
    %2584 = vmatprep.mubr.bf16.mxu0 %v1117
    %2585 = vmatmul.mubr.bf16.gmra.mrb[0].mxu0 %v1021
    %v2586 = vpop.f32.mrb[0].mxu0
    %v2587 = vadd.f32 %v1950, %v2586
    %v2588 = vpop.f32.mrb[0].mxu0
    %v2589 = vpop.f32.mrb[0].mxu0
    %v2590 = vadd.f32 %v1950, %v2589
    %v2591 = vpop.f32.mrb[0].mxu0
    %2592 = vmatprep.mubr.bf16.mxu0 %v1118
    %2593 = vmatmul.mubr.bf16.gmra.mrb[0].mxu0 %v1022
    %v2594 = vpop.f32.mrb[0].mxu0
    %v2595 = vadd.f32 %v1950, %v2594
    %v2596 = vpop.f32.mrb[0].mxu0
    %v2597 = vpop.f32.mrb[0].mxu0
    %v2598 = vadd.f32 %v1950, %v2597
    %v2599 = vpop.f32.mrb[0].mxu0
    %2600 = vmatprep.mubr.bf16.mxu0 %v1119
    %2601 = vmatmul.mubr.bf16.gmra.mrb[0].mxu0 %v1023
    %v2602 = vpop.f32.mrb[0].mxu0
    %v2603 = vadd.f32 %v1950, %v2602
    %v2604 = vpop.f32.mrb[0].mxu0
    %v2605 = vpop.f32.mrb[0].mxu0
    %v2606 = vadd.f32 %v1950, %v2605
    %v2607 = vpop.f32.mrb[0].mxu0
    %2608 = vmatprep.mubr.bf16.mxu0 %v1120
    %2609 = vmatmul.mubr.bf16.gmra.mrb[0].mxu0 %v1024
    %v2610 = vpop.f32.mrb[0].mxu0
    %v2611 = vadd.f32 %v1950, %v2610
    %v2612 = vpop.f32.mrb[0].mxu0
    %v2613 = vpop.f32.mrb[0].mxu0
    %v2614 = vadd.f32 %v1950, %v2613
    %v2615 = vpop.f32.mrb[0].mxu0
    %2616 = vmatprep.mubr.bf16.mxu0 %v1121
    %2617 = vmatmul.mubr.bf16.gmra.mrb[0].mxu0 %v1025
    %v2618 = vpop.f32.mrb[0].mxu0
    %v2619 = vadd.f32 %v1950, %v2618
    %v2620 = vpop.f32.mrb[0].mxu0
    %v2621 = vpop.f32.mrb[0].mxu0
    %v2622 = vadd.f32 %v1950, %v2621
    %v2623 = vpop.f32.mrb[0].mxu0
    %2624 = vmatprep.mubr.bf16.mxu0 %v1122
    %2625 = vmatmul.mubr.bf16.gmra.mrb[0].mxu0 %v1026
    %v2626 = vpop.f32.mrb[0].mxu0
    %v2627 = vadd.f32 %v1950, %v2626
    %v2628 = vpop.f32.mrb[0].mxu0
    %v2629 = vpop.f32.mrb[0].mxu0
    %v2630 = vadd.f32 %v1950, %v2629
    %v2631 = vpop.f32.mrb[0].mxu0
    %2632 = vmatprep.mubr.bf16.mxu0 %v1123
    %2633 = vmatmul.mubr.bf16.gmra.mrb[0].mxu0 %v1027
    %v2634 = vpop.f32.mrb[0].mxu0
    %v2635 = vadd.f32 %v1950, %v2634
    %v2636 = vpop.f32.mrb[0].mxu0
    %v2637 = vpop.f32.mrb[0].mxu0
    %v2638 = vadd.f32 %v1950, %v2637
    %v2639 = vpop.f32.mrb[0].mxu0
    %2640 = vmatprep.mubr.bf16.mxu0 %v1124
    %2641 = vmatmul.mubr.bf16.gmra.mrb[0].mxu0 %v1028
    %v2642 = vpop.f32.mrb[0].mxu0
    %v2643 = vadd.f32 %v1950, %v2642
    %v2644 = vpop.f32.mrb[0].mxu0
    %v2645 = vpop.f32.mrb[0].mxu0
    %v2646 = vadd.f32 %v1950, %v2645
    %v2647 = vpop.f32.mrb[0].mxu0
    %2648 = vmatprep.mubr.bf16.mxu0 %v1125
    %2649 = vmatmul.mubr.bf16.gmra.mrb[0].mxu0 %v1029
    %v2650 = vpop.f32.mrb[0].mxu0
    %v2651 = vadd.f32 %v1950, %v2650
    %v2652 = vpop.f32.mrb[0].mxu0
    %v2653 = vpop.f32.mrb[0].mxu0
    %v2654 = vadd.f32 %v1950, %v2653
    %v2655 = vpop.f32.mrb[0].mxu0
    %2656 = vmatprep.mubr.bf16.mxu0 %v1126
    %2657 = vmatmul.mubr.bf16.gmra.mrb[0].mxu0 %v1030
    %v2658 = vpop.f32.mrb[0].mxu0
    %v2659 = vadd.f32 %v1950, %v2658
    %v2660 = vpop.f32.mrb[0].mxu0
    %v2661 = vpop.f32.mrb[0].mxu0
    %v2662 = vadd.f32 %v1950, %v2661
    %v2663 = vpop.f32.mrb[0].mxu0
    %2664 = vmatprep.mubr.bf16.mxu0 %v1127
    %2665 = vmatmul.mubr.bf16.gmra.mrb[0].mxu0 %v1031
    %v2666 = vpop.f32.mrb[0].mxu0
    %v2667 = vadd.f32 %v1950, %v2666
    %v2668 = vpop.f32.mrb[0].mxu0
    %v2669 = vpop.f32.mrb[0].mxu0
    %v2670 = vadd.f32 %v1950, %v2669
    %v2671 = vpop.f32.mrb[0].mxu0
    %2672 = vdwg.mxu0
    %2673 = vmatprep.subr.bf16.mxu0 0
    %2674 = vmatpush1.bf16.msra.mxu0 %v2256
    %2675 = vmatprep.subr.bf16.mxu0 0
    %2676 = vmatpush1.bf16.msra.mxu0 %v2257
    %2677 = vmatprep.subr.bf16.mxu0 0
    %2678 = vmatpush1.bf16.msra.mxu0 %v2258
    %2679 = vmatprep.subr.bf16.mxu0 0
    %2680 = vmatpush1.bf16.msra.mxu0 %v2259
    %2681 = vmatprep.subr.bf16.mxu0 0
    %2682 = vmatpush1.bf16.msra.mxu0 %v2260
    %2683 = vmatprep.subr.bf16.mxu0 0
    %2684 = vmatpush1.bf16.msra.mxu0 %v2261
    %2685 = vmatprep.subr.bf16.mxu0 0
    %2686 = vmatpush1.bf16.msra.mxu0 %v2262
    %2687 = vmatprep.subr.bf16.mxu0 0
    %2688 = vmatpush1.bf16.msra.mxu0 %v2263
    %2689 = vmatprep.subr.bf16.mxu0 0
    %2690 = vmatpush1.bf16.msra.mxu0 %v2264
    %2691 = vmatprep.subr.bf16.mxu0 0
    %2692 = vmatpush1.bf16.msra.mxu0 %v2265
    %2693 = vmatprep.subr.bf16.mxu0 0
    %2694 = vmatpush1.bf16.msra.mxu0 %v2266
    %2695 = vmatprep.subr.bf16.mxu0 0
    %2696 = vmatpush1.bf16.msra.mxu0 %v2267
    %2697 = vmatprep.subr.bf16.mxu0 0
    %2698 = vmatpush1.bf16.msra.mxu0 %v2268
    %2699 = vmatprep.subr.bf16.mxu0 0
    %2700 = vmatpush1.bf16.msra.mxu0 %v2269
    %2701 = vmatprep.subr.bf16.mxu0 0
    %2702 = vmatpush1.bf16.msra.mxu0 %v2270
    %2703 = vmatprep.subr.bf16.mxu0 0
    %2704 = vmatpush1.bf16.msra.mxu0 %v2271
    %2705 = vmatprep.mubr.bf16.mxu0 %v1288
    %2706 = vmatmul.mubr.bf16.gmra.mrb[0].mxu0 %v1192
    %v2707 = vpop.f32.mrb[0].mxu0
    %v2708 = vadd.f32 %v2419, %v2707
    %v2709 = vpop.f32.mrb[0].mxu0
    %v2710 = vpop.f32.mrb[0].mxu0
    %v2711 = vadd.f32 %v2422, %v2710
    %v2712 = vpop.f32.mrb[0].mxu0
    %2713 = vmatprep.mubr.bf16.mxu0 %v1289
    %2714 = vmatmul.mubr.bf16.gmra.mrb[0].mxu0 %v1193
    %v2715 = vpop.f32.mrb[0].mxu0
    %v2716 = vadd.f32 %v2427, %v2715
    %v2717 = vpop.f32.mrb[0].mxu0
    %v2718 = vpop.f32.mrb[0].mxu0
    %v2719 = vadd.f32 %v2430, %v2718
    %v2720 = vpop.f32.mrb[0].mxu0
    %2721 = vmatprep.mubr.bf16.mxu0 %v1290
    %2722 = vmatmul.mubr.bf16.gmra.mrb[0].mxu0 %v1194
    %v2723 = vpop.f32.mrb[0].mxu0
    %v2724 = vadd.f32 %v2435, %v2723
    %v2725 = vpop.f32.mrb[0].mxu0
    %v2726 = vpop.f32.mrb[0].mxu0
    %v2727 = vadd.f32 %v2438, %v2726
    %v2728 = vpop.f32.mrb[0].mxu0
    %2729 = vmatprep.mubr.bf16.mxu0 %v1291
    %2730 = vmatmul.mubr.bf16.gmra.mrb[0].mxu0 %v1195
    %v2731 = vpop.f32.mrb[0].mxu0
    %v2732 = vadd.f32 %v2443, %v2731
    %v2733 = vpop.f32.mrb[0].mxu0
    %v2734 = vpop.f32.mrb[0].mxu0
    %v2735 = vadd.f32 %v2446, %v2734
    %v2736 = vpop.f32.mrb[0].mxu0
    %2737 = vmatprep.mubr.bf16.mxu0 %v1292
    %2738 = vmatmul.mubr.bf16.gmra.mrb[0].mxu0 %v1196
    %v2739 = vpop.f32.mrb[0].mxu0
    %v2740 = vadd.f32 %v2451, %v2739
    %v2741 = vpop.f32.mrb[0].mxu0
    %v2742 = vpop.f32.mrb[0].mxu0
    %v2743 = vadd.f32 %v2454, %v2742
    %v2744 = vpop.f32.mrb[0].mxu0
    %2745 = vmatprep.mubr.bf16.mxu0 %v1293
    %2746 = vmatmul.mubr.bf16.gmra.mrb[0].mxu0 %v1197
    %v2747 = vpop.f32.mrb[0].mxu0
    %v2748 = vadd.f32 %v2459, %v2747
    %v2749 = vpop.f32.mrb[0].mxu0
    %v2750 = vpop.f32.mrb[0].mxu0
    %v2751 = vadd.f32 %v2462, %v2750
    %v2752 = vpop.f32.mrb[0].mxu0
    %2753 = vmatprep.mubr.bf16.mxu0 %v1294
    %2754 = vmatmul.mubr.bf16.gmra.mrb[0].mxu0 %v1198
    %v2755 = vpop.f32.mrb[0].mxu0
    %v2756 = vadd.f32 %v2467, %v2755
    %v2757 = vpop.f32.mrb[0].mxu0
    %v2758 = vpop.f32.mrb[0].mxu0
    %v2759 = vadd.f32 %v2470, %v2758
    %v2760 = vpop.f32.mrb[0].mxu0
    %2761 = vmatprep.mubr.bf16.mxu0 %v1295
    %2762 = vmatmul.mubr.bf16.gmra.mrb[0].mxu0 %v1199
    %v2763 = vpop.f32.mrb[0].mxu0
    %v2764 = vadd.f32 %v2475, %v2763
    %v2765 = vpop.f32.mrb[0].mxu0
    %v2766 = vpop.f32.mrb[0].mxu0
    %v2767 = vadd.f32 %v2478, %v2766
    %v2768 = vpop.f32.mrb[0].mxu0
    %2769 = vmatprep.mubr.bf16.mxu0 %v1296
    %2770 = vmatmul.mubr.bf16.gmra.mrb[0].mxu0 %v1200
    %v2771 = vpop.f32.mrb[0].mxu0
    %v2772 = vadd.f32 %v2483, %v2771
    %v2773 = vpop.f32.mrb[0].mxu0
    %v2774 = vpop.f32.mrb[0].mxu0
    %v2775 = vadd.f32 %v2486, %v2774
    %v2776 = vpop.f32.mrb[0].mxu0
    %2777 = vmatprep.mubr.bf16.mxu0 %v1297
    %2778 = vmatmul.mubr.bf16.gmra.mrb[0].mxu0 %v1201
    %v2779 = vpop.f32.mrb[0].mxu0
    %v2780 = vadd.f32 %v2491, %v2779
    %v2781 = vpop.f32.mrb[0].mxu0
    %v2782 = vpop.f32.mrb[0].mxu0
    %v2783 = vadd.f32 %v2494, %v2782
    %v2784 = vpop.f32.mrb[0].mxu0
    %2785 = vmatprep.mubr.bf16.mxu0 %v1298
    %2786 = vmatmul.mubr.bf16.gmra.mrb[0].mxu0 %v1202
    %v2787 = vpop.f32.mrb[0].mxu0
    %v2788 = vadd.f32 %v2499, %v2787
    %v2789 = vpop.f32.mrb[0].mxu0
    %v2790 = vpop.f32.mrb[0].mxu0
    %v2791 = vadd.f32 %v2502, %v2790
    %v2792 = vpop.f32.mrb[0].mxu0
    %2793 = vmatprep.mubr.bf16.mxu0 %v1299
    %2794 = vmatmul.mubr.bf16.gmra.mrb[0].mxu0 %v1203
    %v2795 = vpop.f32.mrb[0].mxu0
    %v2796 = vadd.f32 %v2507, %v2795
    %v2797 = vpop.f32.mrb[0].mxu0
    %v2798 = vpop.f32.mrb[0].mxu0
    %v2799 = vadd.f32 %v2510, %v2798
    %v2800 = vpop.f32.mrb[0].mxu0
    %2801 = vmatprep.mubr.bf16.mxu0 %v1300
    %2802 = vmatmul.mubr.bf16.gmra.mrb[0].mxu0 %v1204
    %v2803 = vpop.f32.mrb[0].mxu0
    %v2804 = vadd.f32 %v2515, %v2803
    %v2805 = vpop.f32.mrb[0].mxu0
    %v2806 = vpop.f32.mrb[0].mxu0
    %v2807 = vadd.f32 %v2518, %v2806
    %v2808 = vpop.f32.mrb[0].mxu0
    %2809 = vmatprep.mubr.bf16.mxu0 %v1301
    %2810 = vmatmul.mubr.bf16.gmra.mrb[0].mxu0 %v1205
    %v2811 = vpop.f32.mrb[0].mxu0
    %v2812 = vadd.f32 %v2523, %v2811
    %v2813 = vpop.f32.mrb[0].mxu0
    %v2814 = vpop.f32.mrb[0].mxu0
    %v2815 = vadd.f32 %v2526, %v2814
    %v2816 = vpop.f32.mrb[0].mxu0
    %2817 = vmatprep.mubr.bf16.mxu0 %v1302
    %2818 = vmatmul.mubr.bf16.gmra.mrb[0].mxu0 %v1206
    %v2819 = vpop.f32.mrb[0].mxu0
    %v2820 = vadd.f32 %v2531, %v2819
    %v2821 = vpop.f32.mrb[0].mxu0
    %v2822 = vpop.f32.mrb[0].mxu0
    %v2823 = vadd.f32 %v2534, %v2822
    %v2824 = vpop.f32.mrb[0].mxu0
    %2825 = vmatprep.mubr.bf16.mxu0 %v1303
    %2826 = vmatmul.mubr.bf16.gmra.mrb[0].mxu0 %v1207
    %v2827 = vpop.f32.mrb[0].mxu0
    %v2828 = vadd.f32 %v2539, %v2827
    %v2829 = vpop.f32.mrb[0].mxu0
    %v2830 = vpop.f32.mrb[0].mxu0
    %v2831 = vadd.f32 %v2542, %v2830
    %v2832 = vpop.f32.mrb[0].mxu0
    %2833 = vmatprep.mubr.bf16.mxu0 %v1304
    %2834 = vmatmul.mubr.bf16.gmra.mrb[0].mxu0 %v1208
    %v2835 = vpop.f32.mrb[0].mxu0
    %v2836 = vadd.f32 %v2547, %v2835
    %v2837 = vpop.f32.mrb[0].mxu0
    %v2838 = vpop.f32.mrb[0].mxu0
    %v2839 = vadd.f32 %v2550, %v2838
    %v2840 = vpop.f32.mrb[0].mxu0
    %2841 = vmatprep.mubr.bf16.mxu0 %v1305
    %2842 = vmatmul.mubr.bf16.gmra.mrb[0].mxu0 %v1209
    %v2843 = vpop.f32.mrb[0].mxu0
    %v2844 = vadd.f32 %v2555, %v2843
    %v2845 = vpop.f32.mrb[0].mxu0
    %v2846 = vpop.f32.mrb[0].mxu0
    %v2847 = vadd.f32 %v2558, %v2846
    %v2848 = vpop.f32.mrb[0].mxu0
    %2849 = vmatprep.mubr.bf16.mxu0 %v1306
    %2850 = vmatmul.mubr.bf16.gmra.mrb[0].mxu0 %v1210
    %v2851 = vpop.f32.mrb[0].mxu0
    %v2852 = vadd.f32 %v2563, %v2851
    %v2853 = vpop.f32.mrb[0].mxu0
    %v2854 = vpop.f32.mrb[0].mxu0
    %v2855 = vadd.f32 %v2566, %v2854
    %v2856 = vpop.f32.mrb[0].mxu0
    %2857 = vmatprep.mubr.bf16.mxu0 %v1307
    %2858 = vmatmul.mubr.bf16.gmra.mrb[0].mxu0 %v1211
    %v2859 = vpop.f32.mrb[0].mxu0
    %v2860 = vadd.f32 %v2571, %v2859
    %v2861 = vpop.f32.mrb[0].mxu0
    %v2862 = vpop.f32.mrb[0].mxu0
    %v2863 = vadd.f32 %v2574, %v2862
    %v2864 = vpop.f32.mrb[0].mxu0
    %2865 = vmatprep.mubr.bf16.mxu0 %v1308
    %2866 = vmatmul.mubr.bf16.gmra.mrb[0].mxu0 %v1212
    %v2867 = vpop.f32.mrb[0].mxu0
    %v2868 = vadd.f32 %v2579, %v2867
    %v2869 = vpop.f32.mrb[0].mxu0
    %v2870 = vpop.f32.mrb[0].mxu0
    %v2871 = vadd.f32 %v2582, %v2870
    %v2872 = vpop.f32.mrb[0].mxu0
    %2873 = vmatprep.mubr.bf16.mxu0 %v1309
    %2874 = vmatmul.mubr.bf16.gmra.mrb[0].mxu0 %v1213
    %v2875 = vpop.f32.mrb[0].mxu0
    %v2876 = vadd.f32 %v2587, %v2875
    %v2877 = vpop.f32.mrb[0].mxu0
    %v2878 = vpop.f32.mrb[0].mxu0
    %v2879 = vadd.f32 %v2590, %v2878
    %v2880 = vpop.f32.mrb[0].mxu0
    %2881 = vmatprep.mubr.bf16.mxu0 %v1310
    %2882 = vmatmul.mubr.bf16.gmra.mrb[0].mxu0 %v1214
    %v2883 = vpop.f32.mrb[0].mxu0
    %v2884 = vadd.f32 %v2595, %v2883
    %v2885 = vpop.f32.mrb[0].mxu0
    %v2886 = vpop.f32.mrb[0].mxu0
    %v2887 = vadd.f32 %v2598, %v2886
    %v2888 = vpop.f32.mrb[0].mxu0
    %2889 = vmatprep.mubr.bf16.mxu0 %v1311
    %2890 = vmatmul.mubr.bf16.gmra.mrb[0].mxu0 %v1215
    %v2891 = vpop.f32.mrb[0].mxu0
    %v2892 = vadd.f32 %v2603, %v2891
    %v2893 = vpop.f32.mrb[0].mxu0
    %v2894 = vpop.f32.mrb[0].mxu0
    %v2895 = vadd.f32 %v2606, %v2894
    %v2896 = vpop.f32.mrb[0].mxu0
    %2897 = vmatprep.mubr.bf16.mxu0 %v1312
    %2898 = vmatmul.mubr.bf16.gmra.mrb[0].mxu0 %v1216
    %v2899 = vpop.f32.mrb[0].mxu0
    %v2900 = vadd.f32 %v2611, %v2899
    %v2901 = vpop.f32.mrb[0].mxu0
    %v2902 = vpop.f32.mrb[0].mxu0
    %v2903 = vadd.f32 %v2614, %v2902
    %v2904 = vpop.f32.mrb[0].mxu0
    %2905 = vmatprep.mubr.bf16.mxu0 %v1313
    %2906 = vmatmul.mubr.bf16.gmra.mrb[0].mxu0 %v1217
    %v2907 = vpop.f32.mrb[0].mxu0
    %v2908 = vadd.f32 %v2619, %v2907
    %v2909 = vpop.f32.mrb[0].mxu0
    %v2910 = vpop.f32.mrb[0].mxu0
    %v2911 = vadd.f32 %v2622, %v2910
    %v2912 = vpop.f32.mrb[0].mxu0
    %2913 = vmatprep.mubr.bf16.mxu0 %v1314
    %2914 = vmatmul.mubr.bf16.gmra.mrb[0].mxu0 %v1218
    %v2915 = vpop.f32.mrb[0].mxu0
    %v2916 = vadd.f32 %v2627, %v2915
    %v2917 = vpop.f32.mrb[0].mxu0
    %v2918 = vpop.f32.mrb[0].mxu0
    %v2919 = vadd.f32 %v2630, %v2918
    %v2920 = vpop.f32.mrb[0].mxu0
    %2921 = vmatprep.mubr.bf16.mxu0 %v1315
    %2922 = vmatmul.mubr.bf16.gmra.mrb[0].mxu0 %v1219
    %v2923 = vpop.f32.mrb[0].mxu0
    %v2924 = vadd.f32 %v2635, %v2923
    %v2925 = vpop.f32.mrb[0].mxu0
    %v2926 = vpop.f32.mrb[0].mxu0
    %v2927 = vadd.f32 %v2638, %v2926
    %v2928 = vpop.f32.mrb[0].mxu0
    %2929 = vmatprep.mubr.bf16.mxu0 %v1316
    %2930 = vmatmul.mubr.bf16.gmra.mrb[0].mxu0 %v1220
    %v2931 = vpop.f32.mrb[0].mxu0
    %v2932 = vadd.f32 %v2643, %v2931
    %v2933 = vpop.f32.mrb[0].mxu0
    %v2934 = vpop.f32.mrb[0].mxu0
    %v2935 = vadd.f32 %v2646, %v2934
    %v2936 = vpop.f32.mrb[0].mxu0
    %2937 = vmatprep.mubr.bf16.mxu0 %v1317
    %2938 = vmatmul.mubr.bf16.gmra.mrb[0].mxu0 %v1221
    %v2939 = vpop.f32.mrb[0].mxu0
    %v2940 = vadd.f32 %v2651, %v2939
    %v2941 = vpop.f32.mrb[0].mxu0
    %v2942 = vpop.f32.mrb[0].mxu0
    %v2943 = vadd.f32 %v2654, %v2942
    %v2944 = vpop.f32.mrb[0].mxu0
    %2945 = vmatprep.mubr.bf16.mxu0 %v1318
    %2946 = vmatmul.mubr.bf16.gmra.mrb[0].mxu0 %v1222
    %v2947 = vpop.f32.mrb[0].mxu0
    %v2948 = vadd.f32 %v2659, %v2947
    %v2949 = vpop.f32.mrb[0].mxu0
    %v2950 = vpop.f32.mrb[0].mxu0
    %v2951 = vadd.f32 %v2662, %v2950
    %v2952 = vpop.f32.mrb[0].mxu0
    %2953 = vmatprep.mubr.bf16.mxu0 %v1319
    %2954 = vmatmul.mubr.bf16.gmra.mrb[0].mxu0 %v1223
    %v2955 = vpop.f32.mrb[0].mxu0
    %v2956 = vadd.f32 %v2667, %v2955
    %v2957 = vpop.f32.mrb[0].mxu0
    %v2958 = vpop.f32.mrb[0].mxu0
    %v2959 = vadd.f32 %v2670, %v2958
    %v2960 = vpop.f32.mrb[0].mxu0
    %2961 = vdwg.mxu0
    %2962 = vmatprep.subr.bf16.mxu0 0
    %2963 = vmatpush1.bf16.msra.mxu0 %v2272
    %2964 = vmatprep.subr.bf16.mxu0 0
    %2965 = vmatpush1.bf16.msra.mxu0 %v2273
    %2966 = vmatprep.subr.bf16.mxu0 0
    %2967 = vmatpush1.bf16.msra.mxu0 %v2274
    %2968 = vmatprep.subr.bf16.mxu0 0
    %2969 = vmatpush1.bf16.msra.mxu0 %v2275
    %2970 = vmatprep.subr.bf16.mxu0 0
    %2971 = vmatpush1.bf16.msra.mxu0 %v2276
    %2972 = vmatprep.subr.bf16.mxu0 0
    %2973 = vmatpush1.bf16.msra.mxu0 %v2277
    %2974 = vmatprep.subr.bf16.mxu0 0
    %2975 = vmatpush1.bf16.msra.mxu0 %v2278
    %2976 = vmatprep.subr.bf16.mxu0 0
    %2977 = vmatpush1.bf16.msra.mxu0 %v2279
    %2978 = vmatprep.subr.bf16.mxu0 0
    %2979 = vmatpush1.bf16.msra.mxu0 %v2280
    %2980 = vmatprep.subr.bf16.mxu0 0
    %2981 = vmatpush1.bf16.msra.mxu0 %v2281
    %2982 = vmatprep.subr.bf16.mxu0 0
    %2983 = vmatpush1.bf16.msra.mxu0 %v2282
    %2984 = vmatprep.subr.bf16.mxu0 0
    %2985 = vmatpush1.bf16.msra.mxu0 %v2283
    %2986 = vmatprep.subr.bf16.mxu0 0
    %2987 = vmatpush1.bf16.msra.mxu0 %v2284
    %2988 = vmatprep.subr.bf16.mxu0 0
    %2989 = vmatpush1.bf16.msra.mxu0 %v2285
    %2990 = vmatprep.subr.bf16.mxu0 0
    %2991 = vmatpush1.bf16.msra.mxu0 %v2286
    %2992 = vmatprep.subr.bf16.mxu0 0
    %2993 = vmatpush1.bf16.msra.mxu0 %v2287
    %2994 = vmatprep.mubr.bf16.mxu0 %v1480
    %2995 = vmatmul.mubr.bf16.gmra.mrb[0].mxu0 %v1384
    %v2996 = vpop.f32.mrb[0].mxu0
    %v2997 = vadd.f32 %v2708, %v2996
    %v2998 = vpop.f32.mrb[0].mxu0
    %v2999 = vpop.f32.mrb[0].mxu0
    %v3000 = vadd.f32 %v2711, %v2999
    %v3001 = vpop.f32.mrb[0].mxu0
    %3002 = vmatprep.mubr.bf16.mxu0 %v1481
    %3003 = vmatmul.mubr.bf16.gmra.mrb[0].mxu0 %v1385
    %v3004 = vpop.f32.mrb[0].mxu0
    %v3005 = vadd.f32 %v2716, %v3004
    %v3006 = vpop.f32.mrb[0].mxu0
    %v3007 = vpop.f32.mrb[0].mxu0
    %v3008 = vadd.f32 %v2719, %v3007
    %v3009 = vpop.f32.mrb[0].mxu0
    %3010 = vmatprep.mubr.bf16.mxu0 %v1482
    %3011 = vmatmul.mubr.bf16.gmra.mrb[0].mxu0 %v1386
    %v3012 = vpop.f32.mrb[0].mxu0
    %v3013 = vadd.f32 %v2724, %v3012
    %v3014 = vpop.f32.mrb[0].mxu0
    %v3015 = vpop.f32.mrb[0].mxu0
    %v3016 = vadd.f32 %v2727, %v3015
    %v3017 = vpop.f32.mrb[0].mxu0
    %3018 = vmatprep.mubr.bf16.mxu0 %v1483
    %3019 = vmatmul.mubr.bf16.gmra.mrb[0].mxu0 %v1387
    %v3020 = vpop.f32.mrb[0].mxu0
    %v3021 = vadd.f32 %v2732, %v3020
    %v3022 = vpop.f32.mrb[0].mxu0
    %v3023 = vpop.f32.mrb[0].mxu0
    %v3024 = vadd.f32 %v2735, %v3023
    %v3025 = vpop.f32.mrb[0].mxu0
    %3026 = vmatprep.mubr.bf16.mxu0 %v1484
    %3027 = vmatmul.mubr.bf16.gmra.mrb[0].mxu0 %v1388
    %v3028 = vpop.f32.mrb[0].mxu0
    %v3029 = vadd.f32 %v2740, %v3028
    %v3030 = vpop.f32.mrb[0].mxu0
    %v3031 = vpop.f32.mrb[0].mxu0
    %v3032 = vadd.f32 %v2743, %v3031
    %v3033 = vpop.f32.mrb[0].mxu0
    %3034 = vmatprep.mubr.bf16.mxu0 %v1485
    %3035 = vmatmul.mubr.bf16.gmra.mrb[0].mxu0 %v1389
    %v3036 = vpop.f32.mrb[0].mxu0
    %v3037 = vadd.f32 %v2748, %v3036
    %v3038 = vpop.f32.mrb[0].mxu0
    %v3039 = vpop.f32.mrb[0].mxu0
    %v3040 = vadd.f32 %v2751, %v3039
    %v3041 = vpop.f32.mrb[0].mxu0
    %3042 = vmatprep.mubr.bf16.mxu0 %v1486
    %3043 = vmatmul.mubr.bf16.gmra.mrb[0].mxu0 %v1390
    %v3044 = vpop.f32.mrb[0].mxu0
    %v3045 = vadd.f32 %v2756, %v3044
    %v3046 = vpop.f32.mrb[0].mxu0
    %v3047 = vpop.f32.mrb[0].mxu0
    %v3048 = vadd.f32 %v2759, %v3047
    %v3049 = vpop.f32.mrb[0].mxu0
    %3050 = vmatprep.mubr.bf16.mxu0 %v1487
    %3051 = vmatmul.mubr.bf16.gmra.mrb[0].mxu0 %v1391
    %v3052 = vpop.f32.mrb[0].mxu0
    %v3053 = vadd.f32 %v2764, %v3052
    %v3054 = vpop.f32.mrb[0].mxu0
    %v3055 = vpop.f32.mrb[0].mxu0
    %v3056 = vadd.f32 %v2767, %v3055
    %v3057 = vpop.f32.mrb[0].mxu0
    %3058 = vmatprep.mubr.bf16.mxu0 %v1488
    %3059 = vmatmul.mubr.bf16.gmra.mrb[0].mxu0 %v1392
    %v3060 = vpop.f32.mrb[0].mxu0
    %v3061 = vadd.f32 %v2772, %v3060
    %v3062 = vpop.f32.mrb[0].mxu0
    %v3063 = vpop.f32.mrb[0].mxu0
    %v3064 = vadd.f32 %v2775, %v3063
    %v3065 = vpop.f32.mrb[0].mxu0
    %3066 = vmatprep.mubr.bf16.mxu0 %v1489
    %3067 = vmatmul.mubr.bf16.gmra.mrb[0].mxu0 %v1393
    %v3068 = vpop.f32.mrb[0].mxu0
    %v3069 = vadd.f32 %v2780, %v3068
    %v3070 = vpop.f32.mrb[0].mxu0
    %v3071 = vpop.f32.mrb[0].mxu0
    %v3072 = vadd.f32 %v2783, %v3071
    %v3073 = vpop.f32.mrb[0].mxu0
    %3074 = vmatprep.mubr.bf16.mxu0 %v1490
    %3075 = vmatmul.mubr.bf16.gmra.mrb[0].mxu0 %v1394
    %v3076 = vpop.f32.mrb[0].mxu0
    %v3077 = vadd.f32 %v2788, %v3076
    %v3078 = vpop.f32.mrb[0].mxu0
    %v3079 = vpop.f32.mrb[0].mxu0
    %v3080 = vadd.f32 %v2791, %v3079
    %v3081 = vpop.f32.mrb[0].mxu0
    %3082 = vmatprep.mubr.bf16.mxu0 %v1491
    %3083 = vmatmul.mubr.bf16.gmra.mrb[0].mxu0 %v1395
    %v3084 = vpop.f32.mrb[0].mxu0
    %v3085 = vadd.f32 %v2796, %v3084
    %v3086 = vpop.f32.mrb[0].mxu0
    %v3087 = vpop.f32.mrb[0].mxu0
    %v3088 = vadd.f32 %v2799, %v3087
    %v3089 = vpop.f32.mrb[0].mxu0
    %3090 = vmatprep.mubr.bf16.mxu0 %v1492
    %3091 = vmatmul.mubr.bf16.gmra.mrb[0].mxu0 %v1396
    %v3092 = vpop.f32.mrb[0].mxu0
    %v3093 = vadd.f32 %v2804, %v3092
    %v3094 = vpop.f32.mrb[0].mxu0
    %v3095 = vpop.f32.mrb[0].mxu0
    %v3096 = vadd.f32 %v2807, %v3095
    %v3097 = vpop.f32.mrb[0].mxu0
    %3098 = vmatprep.mubr.bf16.mxu0 %v1493
    %3099 = vmatmul.mubr.bf16.gmra.mrb[0].mxu0 %v1397
    %v3100 = vpop.f32.mrb[0].mxu0
    %v3101 = vadd.f32 %v2812, %v3100
    %v3102 = vpop.f32.mrb[0].mxu0
    %v3103 = vpop.f32.mrb[0].mxu0
    %v3104 = vadd.f32 %v2815, %v3103
    %v3105 = vpop.f32.mrb[0].mxu0
    %3106 = vmatprep.mubr.bf16.mxu0 %v1494
    %3107 = vmatmul.mubr.bf16.gmra.mrb[0].mxu0 %v1398
    %v3108 = vpop.f32.mrb[0].mxu0
    %v3109 = vadd.f32 %v2820, %v3108
    %v3110 = vpop.f32.mrb[0].mxu0
    %v3111 = vpop.f32.mrb[0].mxu0
    %v3112 = vadd.f32 %v2823, %v3111
    %v3113 = vpop.f32.mrb[0].mxu0
    %3114 = vmatprep.mubr.bf16.mxu0 %v1495
    %3115 = vmatmul.mubr.bf16.gmra.mrb[0].mxu0 %v1399
    %v3116 = vpop.f32.mrb[0].mxu0
    %v3117 = vadd.f32 %v2828, %v3116
    %v3118 = vpop.f32.mrb[0].mxu0
    %v3119 = vpop.f32.mrb[0].mxu0
    %v3120 = vadd.f32 %v2831, %v3119
    %v3121 = vpop.f32.mrb[0].mxu0
    %3122 = vmatprep.mubr.bf16.mxu0 %v1496
    %3123 = vmatmul.mubr.bf16.gmra.mrb[0].mxu0 %v1400
    %v3124 = vpop.f32.mrb[0].mxu0
    %v3125 = vadd.f32 %v2836, %v3124
    %v3126 = vpop.f32.mrb[0].mxu0
    %v3127 = vpop.f32.mrb[0].mxu0
    %v3128 = vadd.f32 %v2839, %v3127
    %v3129 = vpop.f32.mrb[0].mxu0
    %3130 = vmatprep.mubr.bf16.mxu0 %v1497
    %3131 = vmatmul.mubr.bf16.gmra.mrb[0].mxu0 %v1401
    %v3132 = vpop.f32.mrb[0].mxu0
    %v3133 = vadd.f32 %v2844, %v3132
    %v3134 = vpop.f32.mrb[0].mxu0
    %v3135 = vpop.f32.mrb[0].mxu0
    %v3136 = vadd.f32 %v2847, %v3135
    %v3137 = vpop.f32.mrb[0].mxu0
    %3138 = vmatprep.mubr.bf16.mxu0 %v1498
    %3139 = vmatmul.mubr.bf16.gmra.mrb[0].mxu0 %v1402
    %v3140 = vpop.f32.mrb[0].mxu0
    %v3141 = vadd.f32 %v2852, %v3140
    %v3142 = vpop.f32.mrb[0].mxu0
    %v3143 = vpop.f32.mrb[0].mxu0
    %v3144 = vadd.f32 %v2855, %v3143
    %v3145 = vpop.f32.mrb[0].mxu0
    %3146 = vmatprep.mubr.bf16.mxu0 %v1499
    %3147 = vmatmul.mubr.bf16.gmra.mrb[0].mxu0 %v1403
    %v3148 = vpop.f32.mrb[0].mxu0
    %v3149 = vadd.f32 %v2860, %v3148
    %v3150 = vpop.f32.mrb[0].mxu0
    %v3151 = vpop.f32.mrb[0].mxu0
    %v3152 = vadd.f32 %v2863, %v3151
    %v3153 = vpop.f32.mrb[0].mxu0
    %3154 = vmatprep.mubr.bf16.mxu0 %v1500
    %3155 = vmatmul.mubr.bf16.gmra.mrb[0].mxu0 %v1404
    %v3156 = vpop.f32.mrb[0].mxu0
    %v3157 = vadd.f32 %v2868, %v3156
    %v3158 = vpop.f32.mrb[0].mxu0
    %v3159 = vpop.f32.mrb[0].mxu0
    %v3160 = vadd.f32 %v2871, %v3159
    %v3161 = vpop.f32.mrb[0].mxu0
    %3162 = vmatprep.mubr.bf16.mxu0 %v1501
    %3163 = vmatmul.mubr.bf16.gmra.mrb[0].mxu0 %v1405
    %v3164 = vpop.f32.mrb[0].mxu0
    %v3165 = vadd.f32 %v2876, %v3164
    %v3166 = vpop.f32.mrb[0].mxu0
    %v3167 = vpop.f32.mrb[0].mxu0
    %v3168 = vadd.f32 %v2879, %v3167
    %v3169 = vpop.f32.mrb[0].mxu0
    %3170 = vmatprep.mubr.bf16.mxu0 %v1502
    %3171 = vmatmul.mubr.bf16.gmra.mrb[0].mxu0 %v1406
    %v3172 = vpop.f32.mrb[0].mxu0
    %v3173 = vadd.f32 %v2884, %v3172
    %v3174 = vpop.f32.mrb[0].mxu0
    %v3175 = vpop.f32.mrb[0].mxu0
    %v3176 = vadd.f32 %v2887, %v3175
    %v3177 = vpop.f32.mrb[0].mxu0
    %3178 = vmatprep.mubr.bf16.mxu0 %v1503
    %3179 = vmatmul.mubr.bf16.gmra.mrb[0].mxu0 %v1407
    %v3180 = vpop.f32.mrb[0].mxu0
    %v3181 = vadd.f32 %v2892, %v3180
    %v3182 = vpop.f32.mrb[0].mxu0
    %v3183 = vpop.f32.mrb[0].mxu0
    %v3184 = vadd.f32 %v2895, %v3183
    %v3185 = vpop.f32.mrb[0].mxu0
    %3186 = vmatprep.mubr.bf16.mxu0 %v1504
    %3187 = vmatmul.mubr.bf16.gmra.mrb[0].mxu0 %v1408
    %v3188 = vpop.f32.mrb[0].mxu0
    %v3189 = vadd.f32 %v2900, %v3188
    %v3190 = vpop.f32.mrb[0].mxu0
    %v3191 = vpop.f32.mrb[0].mxu0
    %v3192 = vadd.f32 %v2903, %v3191
    %v3193 = vpop.f32.mrb[0].mxu0
    %3194 = vmatprep.mubr.bf16.mxu0 %v1505
    %3195 = vmatmul.mubr.bf16.gmra.mrb[0].mxu0 %v1409
    %v3196 = vpop.f32.mrb[0].mxu0
    %v3197 = vadd.f32 %v2908, %v3196
    %v3198 = vpop.f32.mrb[0].mxu0
    %v3199 = vpop.f32.mrb[0].mxu0
    %v3200 = vadd.f32 %v2911, %v3199
    %v3201 = vpop.f32.mrb[0].mxu0
    %3202 = vmatprep.mubr.bf16.mxu0 %v1506
    %3203 = vmatmul.mubr.bf16.gmra.mrb[0].mxu0 %v1410
    %v3204 = vpop.f32.mrb[0].mxu0
    %v3205 = vadd.f32 %v2916, %v3204
    %v3206 = vpop.f32.mrb[0].mxu0
    %v3207 = vpop.f32.mrb[0].mxu0
    %v3208 = vadd.f32 %v2919, %v3207
    %v3209 = vpop.f32.mrb[0].mxu0
    %3210 = vmatprep.mubr.bf16.mxu0 %v1507
    %3211 = vmatmul.mubr.bf16.gmra.mrb[0].mxu0 %v1411
    %v3212 = vpop.f32.mrb[0].mxu0
    %v3213 = vadd.f32 %v2924, %v3212
    %v3214 = vpop.f32.mrb[0].mxu0
    %v3215 = vpop.f32.mrb[0].mxu0
    %v3216 = vadd.f32 %v2927, %v3215
    %v3217 = vpop.f32.mrb[0].mxu0
    %3218 = vmatprep.mubr.bf16.mxu0 %v1508
    %3219 = vmatmul.mubr.bf16.gmra.mrb[0].mxu0 %v1412
    %v3220 = vpop.f32.mrb[0].mxu0
    %v3221 = vadd.f32 %v2932, %v3220
    %v3222 = vpop.f32.mrb[0].mxu0
    %v3223 = vpop.f32.mrb[0].mxu0
    %v3224 = vadd.f32 %v2935, %v3223
    %v3225 = vpop.f32.mrb[0].mxu0
    %3226 = vmatprep.mubr.bf16.mxu0 %v1509
    %3227 = vmatmul.mubr.bf16.gmra.mrb[0].mxu0 %v1413
    %v3228 = vpop.f32.mrb[0].mxu0
    %v3229 = vadd.f32 %v2940, %v3228
    %v3230 = vpop.f32.mrb[0].mxu0
    %v3231 = vpop.f32.mrb[0].mxu0
    %v3232 = vadd.f32 %v2943, %v3231
    %v3233 = vpop.f32.mrb[0].mxu0
    %3234 = vmatprep.mubr.bf16.mxu0 %v1510
    %3235 = vmatmul.mubr.bf16.gmra.mrb[0].mxu0 %v1414
    %v3236 = vpop.f32.mrb[0].mxu0
    %v3237 = vadd.f32 %v2948, %v3236
    %v3238 = vpop.f32.mrb[0].mxu0
    %v3239 = vpop.f32.mrb[0].mxu0
    %v3240 = vadd.f32 %v2951, %v3239
    %v3241 = vpop.f32.mrb[0].mxu0
    %3242 = vmatprep.mubr.bf16.mxu0 %v1511
    %3243 = vmatmul.mubr.bf16.gmra.mrb[0].mxu0 %v1415
    %v3244 = vpop.f32.mrb[0].mxu0
    %v3245 = vadd.f32 %v2956, %v3244
    %v3246 = vpop.f32.mrb[0].mxu0
    %v3247 = vpop.f32.mrb[0].mxu0
    %v3248 = vadd.f32 %v2959, %v3247
    %v3249 = vpop.f32.mrb[0].mxu0
    %3250 = vdwg.mxu0
    %3251 = vmatprep.subr.bf16.mxu0 0
    %3252 = vmatpush1.bf16.msra.mxu0 %v2288
    %3253 = vmatprep.subr.bf16.mxu0 0
    %3254 = vmatpush1.bf16.msra.mxu0 %v2289
    %3255 = vmatprep.subr.bf16.mxu0 0
    %3256 = vmatpush1.bf16.msra.mxu0 %v2290
    %3257 = vmatprep.subr.bf16.mxu0 0
    %3258 = vmatpush1.bf16.msra.mxu0 %v2291
    %3259 = vmatprep.subr.bf16.mxu0 0
    %3260 = vmatpush1.bf16.msra.mxu0 %v2292
    %3261 = vmatprep.subr.bf16.mxu0 0
    %3262 = vmatpush1.bf16.msra.mxu0 %v2293
    %3263 = vmatprep.subr.bf16.mxu0 0
    %3264 = vmatpush1.bf16.msra.mxu0 %v2294
    %3265 = vmatprep.subr.bf16.mxu0 0
    %3266 = vmatpush1.bf16.msra.mxu0 %v2295
    %3267 = vmatprep.subr.bf16.mxu0 0
    %3268 = vmatpush1.bf16.msra.mxu0 %v2296
    %3269 = vmatprep.subr.bf16.mxu0 0
    %3270 = vmatpush1.bf16.msra.mxu0 %v2297
    %3271 = vmatprep.subr.bf16.mxu0 0
    %3272 = vmatpush1.bf16.msra.mxu0 %v2298
    %3273 = vmatprep.subr.bf16.mxu0 0
    %3274 = vmatpush1.bf16.msra.mxu0 %v2299
    %3275 = vmatprep.subr.bf16.mxu0 0
    %3276 = vmatpush1.bf16.msra.mxu0 %v2300
    %3277 = vmatprep.subr.bf16.mxu0 0
    %3278 = vmatpush1.bf16.msra.mxu0 %v2301
    %3279 = vmatprep.subr.bf16.mxu0 0
    %3280 = vmatpush1.bf16.msra.mxu0 %v2302
    %3281 = vmatprep.subr.bf16.mxu0 0
    %3282 = vmatpush1.bf16.msra.mxu0 %v2303
    %3283 = vmatprep.mubr.bf16.mxu0 %v1673
    %3284 = vmatmul.mubr.bf16.gmra.mrb[0].mxu0 %v1577
    %v3285 = vpop.f32.mrb[0].mxu0
    %v3286 = vadd.f32 %v2997, %v3285
    %v3287 = vpop.f32.mrb[0].mxu0
    %v3288 = vpop.f32.mrb[0].mxu0
    %v3289 = vadd.f32 %v3000, %v3288
    %v3290 = vpop.f32.mrb[0].mxu0
    %3291 = vmatprep.mubr.bf16.mxu0 %v1674
    %3292 = vmatmul.mubr.bf16.gmra.mrb[0].mxu0 %v1578
    %v3293 = vpop.f32.mrb[0].mxu0
    %v3294 = vadd.f32 %v3005, %v3293
    %v3295 = vpop.f32.mrb[0].mxu0
    %v3296 = vpop.f32.mrb[0].mxu0
    %v3297 = vadd.f32 %v3008, %v3296
    %v3298 = vpop.f32.mrb[0].mxu0
    %3299 = vmatprep.mubr.bf16.mxu0 %v1675
    %3300 = vmatmul.mubr.bf16.gmra.mrb[0].mxu0 %v1579
    %v3301 = vpop.f32.mrb[0].mxu0
    %v3302 = vadd.f32 %v3013, %v3301
    %v3303 = vpop.f32.mrb[0].mxu0
    %v3304 = vpop.f32.mrb[0].mxu0
    %v3305 = vadd.f32 %v3016, %v3304
    %v3306 = vpop.f32.mrb[0].mxu0
    %3307 = vmatprep.mubr.bf16.mxu0 %v1676
    %3308 = vmatmul.mubr.bf16.gmra.mrb[0].mxu0 %v1580
    %v3309 = vpop.f32.mrb[0].mxu0
    %v3310 = vadd.f32 %v3021, %v3309
    %v3311 = vpop.f32.mrb[0].mxu0
    %v3312 = vpop.f32.mrb[0].mxu0
    %v3313 = vadd.f32 %v3024, %v3312
    %v3314 = vpop.f32.mrb[0].mxu0
    %3315 = vmatprep.mubr.bf16.mxu0 %v1677
    %3316 = vmatmul.mubr.bf16.gmra.mrb[0].mxu0 %v1581
    %v3317 = vpop.f32.mrb[0].mxu0
    %v3318 = vadd.f32 %v3029, %v3317
    %v3319 = vpop.f32.mrb[0].mxu0
    %v3320 = vpop.f32.mrb[0].mxu0
    %v3321 = vadd.f32 %v3032, %v3320
    %v3322 = vpop.f32.mrb[0].mxu0
    %3323 = vmatprep.mubr.bf16.mxu0 %v1678
    %3324 = vmatmul.mubr.bf16.gmra.mrb[0].mxu0 %v1582
    %v3325 = vpop.f32.mrb[0].mxu0
    %v3326 = vadd.f32 %v3037, %v3325
    %v3327 = vpop.f32.mrb[0].mxu0
    %v3328 = vpop.f32.mrb[0].mxu0
    %v3329 = vadd.f32 %v3040, %v3328
    %v3330 = vpop.f32.mrb[0].mxu0
    %3331 = vmatprep.mubr.bf16.mxu0 %v1679
    %3332 = vmatmul.mubr.bf16.gmra.mrb[0].mxu0 %v1583
    %v3333 = vpop.f32.mrb[0].mxu0
    %v3334 = vadd.f32 %v3045, %v3333
    %v3335 = vpop.f32.mrb[0].mxu0
    %v3336 = vpop.f32.mrb[0].mxu0
    %v3337 = vadd.f32 %v3048, %v3336
    %v3338 = vpop.f32.mrb[0].mxu0
    %3339 = vmatprep.mubr.bf16.mxu0 %v1680
    %3340 = vmatmul.mubr.bf16.gmra.mrb[0].mxu0 %v1584
    %v3341 = vpop.f32.mrb[0].mxu0
    %v3342 = vadd.f32 %v3053, %v3341
    %v3343 = vpop.f32.mrb[0].mxu0
    %v3344 = vpop.f32.mrb[0].mxu0
    %v3345 = vadd.f32 %v3056, %v3344
    %v3346 = vpop.f32.mrb[0].mxu0
    %3347 = vmatprep.mubr.bf16.mxu0 %v1681
    %3348 = vmatmul.mubr.bf16.gmra.mrb[0].mxu0 %v1585
    %v3349 = vpop.f32.mrb[0].mxu0
    %v3350 = vadd.f32 %v3061, %v3349
    %v3351 = vpop.f32.mrb[0].mxu0
    %v3352 = vpop.f32.mrb[0].mxu0
    %v3353 = vadd.f32 %v3064, %v3352
    %v3354 = vpop.f32.mrb[0].mxu0
    %3355 = vmatprep.mubr.bf16.mxu0 %v1682
    %3356 = vmatmul.mubr.bf16.gmra.mrb[0].mxu0 %v1586
    %v3357 = vpop.f32.mrb[0].mxu0
    %v3358 = vadd.f32 %v3069, %v3357
    %v3359 = vpop.f32.mrb[0].mxu0
    %v3360 = vpop.f32.mrb[0].mxu0
    %v3361 = vadd.f32 %v3072, %v3360
    %v3362 = vpop.f32.mrb[0].mxu0
    %3363 = vmatprep.mubr.bf16.mxu0 %v1683
    %3364 = vmatmul.mubr.bf16.gmra.mrb[0].mxu0 %v1587
    %v3365 = vpop.f32.mrb[0].mxu0
    %v3366 = vadd.f32 %v3077, %v3365
    %v3367 = vpop.f32.mrb[0].mxu0
    %v3368 = vpop.f32.mrb[0].mxu0
    %v3369 = vadd.f32 %v3080, %v3368
    %v3370 = vpop.f32.mrb[0].mxu0
    %3371 = vmatprep.mubr.bf16.mxu0 %v1684
    %3372 = vmatmul.mubr.bf16.gmra.mrb[0].mxu0 %v1588
    %v3373 = vpop.f32.mrb[0].mxu0
    %v3374 = vadd.f32 %v3085, %v3373
    %v3375 = vpop.f32.mrb[0].mxu0
    %v3376 = vpop.f32.mrb[0].mxu0
    %v3377 = vadd.f32 %v3088, %v3376
    %v3378 = vpop.f32.mrb[0].mxu0
    %3379 = vmatprep.mubr.bf16.mxu0 %v1685
    %3380 = vmatmul.mubr.bf16.gmra.mrb[0].mxu0 %v1589
    %v3381 = vpop.f32.mrb[0].mxu0
    %v3382 = vadd.f32 %v3093, %v3381
    %v3383 = vpop.f32.mrb[0].mxu0
    %v3384 = vpop.f32.mrb[0].mxu0
    %v3385 = vadd.f32 %v3096, %v3384
    %v3386 = vpop.f32.mrb[0].mxu0
    %3387 = vmatprep.mubr.bf16.mxu0 %v1686
    %3388 = vmatmul.mubr.bf16.gmra.mrb[0].mxu0 %v1590
    %v3389 = vpop.f32.mrb[0].mxu0
    %v3390 = vadd.f32 %v3101, %v3389
    %v3391 = vpop.f32.mrb[0].mxu0
    %v3392 = vpop.f32.mrb[0].mxu0
    %v3393 = vadd.f32 %v3104, %v3392
    %v3394 = vpop.f32.mrb[0].mxu0
    %3395 = vmatprep.mubr.bf16.mxu0 %v1687
    %3396 = vmatmul.mubr.bf16.gmra.mrb[0].mxu0 %v1591
    %v3397 = vpop.f32.mrb[0].mxu0
    %v3398 = vadd.f32 %v3109, %v3397
    %v3399 = vpop.f32.mrb[0].mxu0
    %v3400 = vpop.f32.mrb[0].mxu0
    %v3401 = vadd.f32 %v3112, %v3400
    %v3402 = vpop.f32.mrb[0].mxu0
    %3403 = vmatprep.mubr.bf16.mxu0 %v1688
    %3404 = vmatmul.mubr.bf16.gmra.mrb[0].mxu0 %v1592
    %v3405 = vpop.f32.mrb[0].mxu0
    %v3406 = vadd.f32 %v3117, %v3405
    %v3407 = vpop.f32.mrb[0].mxu0
    %v3408 = vpop.f32.mrb[0].mxu0
    %v3409 = vadd.f32 %v3120, %v3408
    %v3410 = vpop.f32.mrb[0].mxu0
    %3411 = vmatprep.mubr.bf16.mxu0 %v1689
    %3412 = vmatmul.mubr.bf16.gmra.mrb[0].mxu0 %v1593
    %v3413 = vpop.f32.mrb[0].mxu0
    %v3414 = vadd.f32 %v3125, %v3413
    %v3415 = vpop.f32.mrb[0].mxu0
    %v3416 = vpop.f32.mrb[0].mxu0
    %v3417 = vadd.f32 %v3128, %v3416
    %v3418 = vpop.f32.mrb[0].mxu0
    %3419 = vmatprep.mubr.bf16.mxu0 %v1690
    %3420 = vmatmul.mubr.bf16.gmra.mrb[0].mxu0 %v1594
    %v3421 = vpop.f32.mrb[0].mxu0
    %v3422 = vadd.f32 %v3133, %v3421
    %v3423 = vpop.f32.mrb[0].mxu0
    %v3424 = vpop.f32.mrb[0].mxu0
    %v3425 = vadd.f32 %v3136, %v3424
    %v3426 = vpop.f32.mrb[0].mxu0
    %3427 = vmatprep.mubr.bf16.mxu0 %v1691
    %3428 = vmatmul.mubr.bf16.gmra.mrb[0].mxu0 %v1595
    %v3429 = vpop.f32.mrb[0].mxu0
    %v3430 = vadd.f32 %v3141, %v3429
    %v3431 = vpop.f32.mrb[0].mxu0
    %v3432 = vpop.f32.mrb[0].mxu0
    %v3433 = vadd.f32 %v3144, %v3432
    %v3434 = vpop.f32.mrb[0].mxu0
    %3435 = vmatprep.mubr.bf16.mxu0 %v1692
    %3436 = vmatmul.mubr.bf16.gmra.mrb[0].mxu0 %v1596
    %v3437 = vpop.f32.mrb[0].mxu0
    %v3438 = vadd.f32 %v3149, %v3437
    %v3439 = vpop.f32.mrb[0].mxu0
    %v3440 = vpop.f32.mrb[0].mxu0
    %v3441 = vadd.f32 %v3152, %v3440
    %v3442 = vpop.f32.mrb[0].mxu0
    %3443 = vmatprep.mubr.bf16.mxu0 %v1693
    %3444 = vmatmul.mubr.bf16.gmra.mrb[0].mxu0 %v1597
    %v3445 = vpop.f32.mrb[0].mxu0
    %v3446 = vadd.f32 %v3157, %v3445
    %v3447 = vpop.f32.mrb[0].mxu0
    %v3448 = vpop.f32.mrb[0].mxu0
    %v3449 = vadd.f32 %v3160, %v3448
    %v3450 = vpop.f32.mrb[0].mxu0
    %3451 = vmatprep.mubr.bf16.mxu0 %v1694
    %3452 = vmatmul.mubr.bf16.gmra.mrb[0].mxu0 %v1598
    %v3453 = vpop.f32.mrb[0].mxu0
    %v3454 = vadd.f32 %v3165, %v3453
    %v3455 = vpop.f32.mrb[0].mxu0
    %v3456 = vpop.f32.mrb[0].mxu0
    %v3457 = vadd.f32 %v3168, %v3456
    %v3458 = vpop.f32.mrb[0].mxu0
    %3459 = vmatprep.mubr.bf16.mxu0 %v1695
    %3460 = vmatmul.mubr.bf16.gmra.mrb[0].mxu0 %v1599
    %v3461 = vpop.f32.mrb[0].mxu0
    %v3462 = vadd.f32 %v3173, %v3461
    %v3463 = vpop.f32.mrb[0].mxu0
    %v3464 = vpop.f32.mrb[0].mxu0
    %v3465 = vadd.f32 %v3176, %v3464
    %v3466 = vpop.f32.mrb[0].mxu0
    %3467 = vmatprep.mubr.bf16.mxu0 %v1696
    %3468 = vmatmul.mubr.bf16.gmra.mrb[0].mxu0 %v1600
    %v3469 = vpop.f32.mrb[0].mxu0
    %v3470 = vadd.f32 %v3181, %v3469
    %v3471 = vpop.f32.mrb[0].mxu0
    %v3472 = vpop.f32.mrb[0].mxu0
    %v3473 = vadd.f32 %v3184, %v3472
    %v3474 = vpop.f32.mrb[0].mxu0
    %3475 = vmatprep.mubr.bf16.mxu0 %v1697
    %3476 = vmatmul.mubr.bf16.gmra.mrb[0].mxu0 %v1601
    %v3477 = vpop.f32.mrb[0].mxu0
    %v3478 = vadd.f32 %v3189, %v3477
    %v3479 = vpop.f32.mrb[0].mxu0
    %v3480 = vpop.f32.mrb[0].mxu0
    %v3481 = vadd.f32 %v3192, %v3480
    %v3482 = vpop.f32.mrb[0].mxu0
    %3483 = vmatprep.mubr.bf16.mxu0 %v1698
    %3484 = vmatmul.mubr.bf16.gmra.mrb[0].mxu0 %v1602
    %v3485 = vpop.f32.mrb[0].mxu0
    %v3486 = vadd.f32 %v3197, %v3485
    %v3487 = vpop.f32.mrb[0].mxu0
    %v3488 = vpop.f32.mrb[0].mxu0
    %v3489 = vadd.f32 %v3200, %v3488
    %v3490 = vpop.f32.mrb[0].mxu0
    %3491 = vmatprep.mubr.bf16.mxu0 %v1699
    %3492 = vmatmul.mubr.bf16.gmra.mrb[0].mxu0 %v1603
    %v3493 = vpop.f32.mrb[0].mxu0
    %v3494 = vadd.f32 %v3205, %v3493
    %v3495 = vpop.f32.mrb[0].mxu0
    %v3496 = vpop.f32.mrb[0].mxu0
    %v3497 = vadd.f32 %v3208, %v3496
    %v3498 = vpop.f32.mrb[0].mxu0
    %3499 = vmatprep.mubr.bf16.mxu0 %v1700
    %3500 = vmatmul.mubr.bf16.gmra.mrb[0].mxu0 %v1604
    %v3501 = vpop.f32.mrb[0].mxu0
    %v3502 = vadd.f32 %v3213, %v3501
    %v3503 = vpop.f32.mrb[0].mxu0
    %v3504 = vpop.f32.mrb[0].mxu0
    %v3505 = vadd.f32 %v3216, %v3504
    %v3506 = vpop.f32.mrb[0].mxu0
    %3507 = vmatprep.mubr.bf16.mxu0 %v1701
    %3508 = vmatmul.mubr.bf16.gmra.mrb[0].mxu0 %v1605
    %v3509 = vpop.f32.mrb[0].mxu0
    %v3510 = vadd.f32 %v3221, %v3509
    %v3511 = vpop.f32.mrb[0].mxu0
    %v3512 = vpop.f32.mrb[0].mxu0
    %v3513 = vadd.f32 %v3224, %v3512
    %v3514 = vpop.f32.mrb[0].mxu0
    %3515 = vmatprep.mubr.bf16.mxu0 %v1702
    %3516 = vmatmul.mubr.bf16.gmra.mrb[0].mxu0 %v1606
    %v3517 = vpop.f32.mrb[0].mxu0
    %v3518 = vadd.f32 %v3229, %v3517
    %v3519 = vpop.f32.mrb[0].mxu0
    %v3520 = vpop.f32.mrb[0].mxu0
    %v3521 = vadd.f32 %v3232, %v3520
    %v3522 = vpop.f32.mrb[0].mxu0
    %3523 = vmatprep.mubr.bf16.mxu0 %v1703
    %3524 = vmatmul.mubr.bf16.gmra.mrb[0].mxu0 %v1607
    %v3525 = vpop.f32.mrb[0].mxu0
    %v3526 = vadd.f32 %v3237, %v3525
    %v3527 = vpop.f32.mrb[0].mxu0
    %v3528 = vpop.f32.mrb[0].mxu0
    %v3529 = vadd.f32 %v3240, %v3528
    %v3530 = vpop.f32.mrb[0].mxu0
    %3531 = vmatprep.mubr.bf16.mxu0 %v1704
    %3532 = vmatmul.mubr.bf16.gmra.mrb[0].mxu0 %v1608
    %v3533 = vpop.f32.mrb[0].mxu0
    %v3534 = vadd.f32 %v3245, %v3533
    %v3535 = vpop.f32.mrb[0].mxu0
    %v3536 = vpop.f32.mrb[0].mxu0
    %v3537 = vadd.f32 %v3248, %v3536
    %v3538 = vpop.f32.mrb[0].mxu0
    %3539 = vdwg.mxu0
    %3540 = vmatprep.subr.bf16.mxu0 0
    %3541 = vmatpush1.bf16.msra.mxu0 %v2304
    %3542 = vmatprep.subr.bf16.mxu0 0
    %3543 = vmatpush1.bf16.msra.mxu0 %v2305
    %3544 = vmatprep.subr.bf16.mxu0 0
    %3545 = vmatpush1.bf16.msra.mxu0 %v2306
    %3546 = vmatprep.subr.bf16.mxu0 0
    %3547 = vmatpush1.bf16.msra.mxu0 %v2307
    %3548 = vmatprep.subr.bf16.mxu0 0
    %3549 = vmatpush1.bf16.msra.mxu0 %v2308
    %3550 = vmatprep.subr.bf16.mxu0 0
    %3551 = vmatpush1.bf16.msra.mxu0 %v2309
    %3552 = vmatprep.subr.bf16.mxu0 0
    %3553 = vmatpush1.bf16.msra.mxu0 %v2310
    %3554 = vmatprep.subr.bf16.mxu0 0
    %3555 = vmatpush1.bf16.msra.mxu0 %v2311
    %3556 = vmatprep.subr.bf16.mxu0 0
    %3557 = vmatpush1.bf16.msra.mxu0 0
    %3558 = vmatprep.subr.bf16.mxu0 0
    %3559 = vmatpush1.bf16.msra.mxu0 0
    %3560 = vmatprep.subr.bf16.mxu0 0
    %3561 = vmatpush1.bf16.msra.mxu0 0
    %3562 = vmatprep.subr.bf16.mxu0 0
    %3563 = vmatpush1.bf16.msra.mxu0 0
    %3564 = vmatprep.subr.bf16.mxu0 0
    %3565 = vmatpush1.bf16.msra.mxu0 0
    %3566 = vmatprep.subr.bf16.mxu0 0
    %3567 = vmatpush1.bf16.msra.mxu0 0
    %3568 = vmatprep.subr.bf16.mxu0 0
    %3569 = vmatpush1.bf16.msra.mxu0 0
    %3570 = vmatprep.subr.bf16.mxu0 0
    %3571 = vmatpush1.bf16.msra.mxu0 0
    %3572 = vmatprep.mubr.bf16.mxu0 0
    %3573 = vmatmul.mubr.bf16.gmra.mrb[0].mxu0 %v1769
    %v3574 = vpop.f32.mrb[0].mxu0
    %v3575 = vadd.f32 %v3286, %v3574
    %v3576 = vpop.f32.mrb[0].mxu0
    %v3577 = vpop.f32.mrb[0].mxu0
    %v3578 = vadd.f32 %v3289, %v3577
    %v3579 = vpop.f32.mrb[0].mxu0
    %3580 = vmatprep.mubr.bf16.mxu0 0
    %3581 = vmatmul.mubr.bf16.gmra.mrb[0].mxu0 %v1770
    %v3582 = vpop.f32.mrb[0].mxu0
    %v3583 = vadd.f32 %v3294, %v3582
    %v3584 = vpop.f32.mrb[0].mxu0
    %v3585 = vpop.f32.mrb[0].mxu0
    %v3586 = vadd.f32 %v3297, %v3585
    %v3587 = vpop.f32.mrb[0].mxu0
    %3588 = vmatprep.mubr.bf16.mxu0 0
    %3589 = vmatmul.mubr.bf16.gmra.mrb[0].mxu0 %v1771
    %v3590 = vpop.f32.mrb[0].mxu0
    %v3591 = vadd.f32 %v3302, %v3590
    %v3592 = vpop.f32.mrb[0].mxu0
    %v3593 = vpop.f32.mrb[0].mxu0
    %v3594 = vadd.f32 %v3305, %v3593
    %v3595 = vpop.f32.mrb[0].mxu0
    %3596 = vmatprep.mubr.bf16.mxu0 0
    %3597 = vmatmul.mubr.bf16.gmra.mrb[0].mxu0 %v1772
    %v3598 = vpop.f32.mrb[0].mxu0
    %v3599 = vadd.f32 %v3310, %v3598
    %v3600 = vpop.f32.mrb[0].mxu0
    %v3601 = vpop.f32.mrb[0].mxu0
    %v3602 = vadd.f32 %v3313, %v3601
    %v3603 = vpop.f32.mrb[0].mxu0
    %3604 = vmatprep.mubr.bf16.mxu0 0
    %3605 = vmatmul.mubr.bf16.gmra.mrb[0].mxu0 %v1773
    %v3606 = vpop.f32.mrb[0].mxu0
    %v3607 = vadd.f32 %v3318, %v3606
    %v3608 = vpop.f32.mrb[0].mxu0
    %v3609 = vpop.f32.mrb[0].mxu0
    %v3610 = vadd.f32 %v3321, %v3609
    %v3611 = vpop.f32.mrb[0].mxu0
    %3612 = vmatprep.mubr.bf16.mxu0 0
    %3613 = vmatmul.mubr.bf16.gmra.mrb[0].mxu0 %v1774
    %v3614 = vpop.f32.mrb[0].mxu0
    %v3615 = vadd.f32 %v3326, %v3614
    %v3616 = vpop.f32.mrb[0].mxu0
    %v3617 = vpop.f32.mrb[0].mxu0
    %v3618 = vadd.f32 %v3329, %v3617
    %v3619 = vpop.f32.mrb[0].mxu0
    %3620 = vmatprep.mubr.bf16.mxu0 0
    %3621 = vmatmul.mubr.bf16.gmra.mrb[0].mxu0 %v1775
    %v3622 = vpop.f32.mrb[0].mxu0
    %v3623 = vadd.f32 %v3334, %v3622
    %v3624 = vpop.f32.mrb[0].mxu0
    %v3625 = vpop.f32.mrb[0].mxu0
    %v3626 = vadd.f32 %v3337, %v3625
    %v3627 = vpop.f32.mrb[0].mxu0
    %3628 = vmatprep.mubr.bf16.mxu0 0
    %3629 = vmatmul.mubr.bf16.gmra.mrb[0].mxu0 %v1776
    %v3630 = vpop.f32.mrb[0].mxu0
    %v3631 = vadd.f32 %v3342, %v3630
    %v3632 = vpop.f32.mrb[0].mxu0
    %v3633 = vpop.f32.mrb[0].mxu0
    %v3634 = vadd.f32 %v3345, %v3633
    %v3635 = vpop.f32.mrb[0].mxu0
    %3636 = vmatprep.mubr.bf16.mxu0 0
    %3637 = vmatmul.mubr.bf16.gmra.mrb[0].mxu0 %v1777
    %v3638 = vpop.f32.mrb[0].mxu0
    %v3639 = vadd.f32 %v3350, %v3638
    %v3640 = vpop.f32.mrb[0].mxu0
    %v3641 = vpop.f32.mrb[0].mxu0
    %v3642 = vadd.f32 %v3353, %v3641
    %v3643 = vpop.f32.mrb[0].mxu0
    %3644 = vmatprep.mubr.bf16.mxu0 0
    %3645 = vmatmul.mubr.bf16.gmra.mrb[0].mxu0 %v1778
    %v3646 = vpop.f32.mrb[0].mxu0
    %v3647 = vadd.f32 %v3358, %v3646
    %v3648 = vpop.f32.mrb[0].mxu0
    %v3649 = vpop.f32.mrb[0].mxu0
    %v3650 = vadd.f32 %v3361, %v3649
    %v3651 = vpop.f32.mrb[0].mxu0
    %3652 = vmatprep.mubr.bf16.mxu0 0
    %3653 = vmatmul.mubr.bf16.gmra.mrb[0].mxu0 %v1779
    %v3654 = vpop.f32.mrb[0].mxu0
    %v3655 = vadd.f32 %v3366, %v3654
    %v3656 = vpop.f32.mrb[0].mxu0
    %v3657 = vpop.f32.mrb[0].mxu0
    %v3658 = vadd.f32 %v3369, %v3657
    %v3659 = vpop.f32.mrb[0].mxu0
    %3660 = vmatprep.mubr.bf16.mxu0 0
    %3661 = vmatmul.mubr.bf16.gmra.mrb[0].mxu0 %v1780
    %v3662 = vpop.f32.mrb[0].mxu0
    %v3663 = vadd.f32 %v3374, %v3662
    %v3664 = vpop.f32.mrb[0].mxu0
    %v3665 = vpop.f32.mrb[0].mxu0
    %v3666 = vadd.f32 %v3377, %v3665
    %v3667 = vpop.f32.mrb[0].mxu0
    %3668 = vmatprep.mubr.bf16.mxu0 0
    %3669 = vmatmul.mubr.bf16.gmra.mrb[0].mxu0 %v1781
    %v3670 = vpop.f32.mrb[0].mxu0
    %v3671 = vadd.f32 %v3382, %v3670
    %v3672 = vpop.f32.mrb[0].mxu0
    %v3673 = vpop.f32.mrb[0].mxu0
    %v3674 = vadd.f32 %v3385, %v3673
    %v3675 = vpop.f32.mrb[0].mxu0
    %3676 = vmatprep.mubr.bf16.mxu0 0
    %3677 = vmatmul.mubr.bf16.gmra.mrb[0].mxu0 %v1782
    %v3678 = vpop.f32.mrb[0].mxu0
    %v3679 = vadd.f32 %v3390, %v3678
    %v3680 = vpop.f32.mrb[0].mxu0
    %v3681 = vpop.f32.mrb[0].mxu0
    %v3682 = vadd.f32 %v3393, %v3681
    %v3683 = vpop.f32.mrb[0].mxu0
    %3684 = vmatprep.mubr.bf16.mxu0 0
    %3685 = vmatmul.mubr.bf16.gmra.mrb[0].mxu0 %v1783
    %v3686 = vpop.f32.mrb[0].mxu0
    %v3687 = vadd.f32 %v3398, %v3686
    %v3688 = vpop.f32.mrb[0].mxu0
    %v3689 = vpop.f32.mrb[0].mxu0
    %v3690 = vadd.f32 %v3401, %v3689
    %v3691 = vpop.f32.mrb[0].mxu0
    %3692 = vmatprep.mubr.bf16.mxu0 0
    %3693 = vmatmul.mubr.bf16.gmra.mrb[0].mxu0 %v1784
    %v3694 = vpop.f32.mrb[0].mxu0
    %v3695 = vadd.f32 %v3406, %v3694
    %v3696 = vpop.f32.mrb[0].mxu0
    %v3697 = vpop.f32.mrb[0].mxu0
    %v3698 = vadd.f32 %v3409, %v3697
    %v3699 = vpop.f32.mrb[0].mxu0
    %3700 = vmatprep.mubr.bf16.mxu0 0
    %3701 = vmatmul.mubr.bf16.gmra.mrb[0].mxu0 %v1785
    %v3702 = vpop.f32.mrb[0].mxu0
    %v3703 = vadd.f32 %v3414, %v3702
    %v3704 = vpop.f32.mrb[0].mxu0
    %v3705 = vpop.f32.mrb[0].mxu0
    %v3706 = vadd.f32 %v3417, %v3705
    %v3707 = vpop.f32.mrb[0].mxu0
    %3708 = vmatprep.mubr.bf16.mxu0 0
    %3709 = vmatmul.mubr.bf16.gmra.mrb[0].mxu0 %v1786
    %v3710 = vpop.f32.mrb[0].mxu0
    %v3711 = vadd.f32 %v3422, %v3710
    %v3712 = vpop.f32.mrb[0].mxu0
    %v3713 = vpop.f32.mrb[0].mxu0
    %v3714 = vadd.f32 %v3425, %v3713
    %v3715 = vpop.f32.mrb[0].mxu0
    %3716 = vmatprep.mubr.bf16.mxu0 0
    %3717 = vmatmul.mubr.bf16.gmra.mrb[0].mxu0 %v1787
    %v3718 = vpop.f32.mrb[0].mxu0
    %v3719 = vadd.f32 %v3430, %v3718
    %v3720 = vpop.f32.mrb[0].mxu0
    %v3721 = vpop.f32.mrb[0].mxu0
    %v3722 = vadd.f32 %v3433, %v3721
    %v3723 = vpop.f32.mrb[0].mxu0
    %3724 = vmatprep.mubr.bf16.mxu0 0
    %3725 = vmatmul.mubr.bf16.gmra.mrb[0].mxu0 %v1788
    %v3726 = vpop.f32.mrb[0].mxu0
    %v3727 = vadd.f32 %v3438, %v3726
    %v3728 = vpop.f32.mrb[0].mxu0
    %v3729 = vpop.f32.mrb[0].mxu0
    %v3730 = vadd.f32 %v3441, %v3729
    %v3731 = vpop.f32.mrb[0].mxu0
    %3732 = vmatprep.mubr.bf16.mxu0 0
    %3733 = vmatmul.mubr.bf16.gmra.mrb[0].mxu0 %v1789
    %v3734 = vpop.f32.mrb[0].mxu0
    %v3735 = vadd.f32 %v3446, %v3734
    %v3736 = vpop.f32.mrb[0].mxu0
    %v3737 = vpop.f32.mrb[0].mxu0
    %v3738 = vadd.f32 %v3449, %v3737
    %v3739 = vpop.f32.mrb[0].mxu0
    %3740 = vmatprep.mubr.bf16.mxu0 0
    %3741 = vmatmul.mubr.bf16.gmra.mrb[0].mxu0 %v1790
    %v3742 = vpop.f32.mrb[0].mxu0
    %v3743 = vadd.f32 %v3454, %v3742
    %v3744 = vpop.f32.mrb[0].mxu0
    %v3745 = vpop.f32.mrb[0].mxu0
    %v3746 = vadd.f32 %v3457, %v3745
    %v3747 = vpop.f32.mrb[0].mxu0
    %3748 = vmatprep.mubr.bf16.mxu0 0
    %3749 = vmatmul.mubr.bf16.gmra.mrb[0].mxu0 %v1791
    %v3750 = vpop.f32.mrb[0].mxu0
    %v3751 = vadd.f32 %v3462, %v3750
    %v3752 = vpop.f32.mrb[0].mxu0
    %v3753 = vpop.f32.mrb[0].mxu0
    %v3754 = vadd.f32 %v3465, %v3753
    %v3755 = vpop.f32.mrb[0].mxu0
    %3756 = vmatprep.mubr.bf16.mxu0 0
    %3757 = vmatmul.mubr.bf16.gmra.mrb[0].mxu0 %v1792
    %v3758 = vpop.f32.mrb[0].mxu0
    %v3759 = vadd.f32 %v3470, %v3758
    %v3760 = vpop.f32.mrb[0].mxu0
    %v3761 = vpop.f32.mrb[0].mxu0
    %v3762 = vadd.f32 %v3473, %v3761
    %v3763 = vpop.f32.mrb[0].mxu0
    %3764 = vmatprep.mubr.bf16.mxu0 0
    %3765 = vmatmul.mubr.bf16.gmra.mrb[0].mxu0 %v1793
    %v3766 = vpop.f32.mrb[0].mxu0
    %v3767 = vadd.f32 %v3478, %v3766
    %v3768 = vpop.f32.mrb[0].mxu0
    %v3769 = vpop.f32.mrb[0].mxu0
    %v3770 = vadd.f32 %v3481, %v3769
    %v3771 = vpop.f32.mrb[0].mxu0
    %3772 = vmatprep.mubr.bf16.mxu0 0
    %3773 = vmatmul.mubr.bf16.gmra.mrb[0].mxu0 %v1794
    %v3774 = vpop.f32.mrb[0].mxu0
    %v3775 = vadd.f32 %v3486, %v3774
    %v3776 = vpop.f32.mrb[0].mxu0
    %v3777 = vpop.f32.mrb[0].mxu0
    %v3778 = vadd.f32 %v3489, %v3777
    %v3779 = vpop.f32.mrb[0].mxu0
    %3780 = vmatprep.mubr.bf16.mxu0 0
    %3781 = vmatmul.mubr.bf16.gmra.mrb[0].mxu0 %v1795
    %v3782 = vpop.f32.mrb[0].mxu0
    %v3783 = vadd.f32 %v3494, %v3782
    %v3784 = vpop.f32.mrb[0].mxu0
    %v3785 = vpop.f32.mrb[0].mxu0
    %v3786 = vadd.f32 %v3497, %v3785
    %v3787 = vpop.f32.mrb[0].mxu0
    %3788 = vmatprep.mubr.bf16.mxu0 0
    %3789 = vmatmul.mubr.bf16.gmra.mrb[0].mxu0 %v1796
    %v3790 = vpop.f32.mrb[0].mxu0
    %v3791 = vadd.f32 %v3502, %v3790
    %v3792 = vpop.f32.mrb[0].mxu0
    %v3793 = vpop.f32.mrb[0].mxu0
    %v3794 = vadd.f32 %v3505, %v3793
    %v3795 = vpop.f32.mrb[0].mxu0
    %3796 = vmatprep.mubr.bf16.mxu0 0
    %3797 = vmatmul.mubr.bf16.gmra.mrb[0].mxu0 %v1797
    %v3798 = vpop.f32.mrb[0].mxu0
    %v3799 = vadd.f32 %v3510, %v3798
    %v3800 = vpop.f32.mrb[0].mxu0
    %v3801 = vpop.f32.mrb[0].mxu0
    %v3802 = vadd.f32 %v3513, %v3801
    %v3803 = vpop.f32.mrb[0].mxu0
    %3804 = vmatprep.mubr.bf16.mxu0 0
    %3805 = vmatmul.mubr.bf16.gmra.mrb[0].mxu0 %v1798
    %v3806 = vpop.f32.mrb[0].mxu0
    %v3807 = vadd.f32 %v3518, %v3806
    %v3808 = vpop.f32.mrb[0].mxu0
    %v3809 = vpop.f32.mrb[0].mxu0
    %v3810 = vadd.f32 %v3521, %v3809
    %v3811 = vpop.f32.mrb[0].mxu0
    %3812 = vmatprep.mubr.bf16.mxu0 0
    %3813 = vmatmul.mubr.bf16.gmra.mrb[0].mxu0 %v1799
    %v3814 = vpop.f32.mrb[0].mxu0
    %v3815 = vadd.f32 %v3526, %v3814
    %v3816 = vpop.f32.mrb[0].mxu0
    %v3817 = vpop.f32.mrb[0].mxu0
    %v3818 = vadd.f32 %v3529, %v3817
    %v3819 = vpop.f32.mrb[0].mxu0
    %3820 = vmatprep.mubr.bf16.mxu0 0
    %3821 = vmatmul.mubr.bf16.gmra.mrb[0].mxu0 %v1800
    %v3822 = vpop.f32.mrb[0].mxu0
    %v3823 = vadd.f32 %v3534, %v3822
    %v3824 = vpop.f32.mrb[0].mxu0
    %v3825 = vpop.f32.mrb[0].mxu0
    %v3826 = vadd.f32 %v3537, %v3825
    %v3827 = vpop.f32.mrb[0].mxu0
    %3828 = vdwg.mxu0
    %v3829 = vmax.f32 %v3575, 0.0
    %v3830 = vmax.f32 %v3578, 0.0
    %v3831 = vmax.f32 %v3583, 0.0
    %v3832 = vmax.f32 %v3586, 0.0
    %v3833 = vmax.f32 %v3591, 0.0
    %v3834 = vmax.f32 %v3594, 0.0
    %v3835 = vmax.f32 %v3599, 0.0
    %v3836 = vmax.f32 %v3602, 0.0
    %v3837 = vmax.f32 %v3607, 0.0
    %v3838 = vmax.f32 %v3610, 0.0
    %v3839 = vmax.f32 %v3615, 0.0
    %v3840 = vmax.f32 %v3618, 0.0
    %v3841 = vmax.f32 %v3623, 0.0
    %v3842 = vmax.f32 %v3626, 0.0
    %v3843 = vmax.f32 %v3631, 0.0
    %v3844 = vmax.f32 %v3634, 0.0
    %v3845 = vmax.f32 %v3639, 0.0
    %v3846 = vmax.f32 %v3642, 0.0
    %v3847 = vmax.f32 %v3647, 0.0
    %v3848 = vmax.f32 %v3650, 0.0
    %v3849 = vmax.f32 %v3655, 0.0
    %v3850 = vmax.f32 %v3658, 0.0
    %v3851 = vmax.f32 %v3663, 0.0
    %v3852 = vmax.f32 %v3666, 0.0
    %v3853 = vmax.f32 %v3671, 0.0
    %v3854 = vmax.f32 %v3674, 0.0
    %v3855 = vmax.f32 %v3679, 0.0
    %v3856 = vmax.f32 %v3682, 0.0
    %v3857 = vmax.f32 %v3687, 0.0
    %v3858 = vmax.f32 %v3690, 0.0
    %v3859 = vmax.f32 %v3695, 0.0
    %v3860 = vmax.f32 %v3698, 0.0
    %v3861 = vmax.f32 %v3703, 0.0
    %v3862 = vmax.f32 %v3706, 0.0
    %v3863 = vmax.f32 %v3711, 0.0
    %v3864 = vmax.f32 %v3714, 0.0
    %v3865 = vmax.f32 %v3719, 0.0
    %v3866 = vmax.f32 %v3722, 0.0
    %v3867 = vmax.f32 %v3727, 0.0
    %v3868 = vmax.f32 %v3730, 0.0
    %v3869 = vmax.f32 %v3735, 0.0
    %v3870 = vmax.f32 %v3738, 0.0
    %v3871 = vmax.f32 %v3743, 0.0
    %v3872 = vmax.f32 %v3746, 0.0
    %v3873 = vmax.f32 %v3751, 0.0
    %v3874 = vmax.f32 %v3754, 0.0
    %v3875 = vmax.f32 %v3759, 0.0
    %v3876 = vmax.f32 %v3762, 0.0
    %v3877 = vmax.f32 %v3767, 0.0
    %v3878 = vmax.f32 %v3770, 0.0
    %v3879 = vmax.f32 %v3775, 0.0
    %v3880 = vmax.f32 %v3778, 0.0
    %v3881 = vmax.f32 %v3783, 0.0
    %v3882 = vmax.f32 %v3786, 0.0
    %v3883 = vmax.f32 %v3791, 0.0
    %v3884 = vmax.f32 %v3794, 0.0
    %v3885 = vmax.f32 %v3799, 0.0
    %v3886 = vmax.f32 %v3802, 0.0
    %v3887 = vmax.f32 %v3807, 0.0
    %v3888 = vmax.f32 %v3810, 0.0
    %v3889 = vmax.f32 %v3815, 0.0
    %v3890 = vmax.f32 %v3818, 0.0
    %v3891 = vmax.f32 %v3823, 0.0
    %v3892 = vmax.f32 %v3826, 0.0
    %v3893 = vpack.c.bf16 %v3830, %v3829
    %v3894 = vpack.c.bf16 %v3832, %v3831
    %v3895 = vpack.c.bf16 %v3834, %v3833
    %v3896 = vpack.c.bf16 %v3836, %v3835
    %v3897 = vpack.c.bf16 %v3838, %v3837
    %v3898 = vpack.c.bf16 %v3840, %v3839
    %v3899 = vpack.c.bf16 %v3842, %v3841
    %v3900 = vpack.c.bf16 %v3844, %v3843
    %v3901 = vpack.c.bf16 %v3846, %v3845
    %v3902 = vpack.c.bf16 %v3848, %v3847
    %v3903 = vpack.c.bf16 %v3850, %v3849
    %v3904 = vpack.c.bf16 %v3852, %v3851
    %v3905 = vpack.c.bf16 %v3854, %v3853
    %v3906 = vpack.c.bf16 %v3856, %v3855
    %v3907 = vpack.c.bf16 %v3858, %v3857
    %v3908 = vpack.c.bf16 %v3860, %v3859
    %v3909 = vpack.c.bf16 %v3862, %v3861
    %v3910 = vpack.c.bf16 %v3864, %v3863
    %v3911 = vpack.c.bf16 %v3866, %v3865
    %v3912 = vpack.c.bf16 %v3868, %v3867
    %v3913 = vpack.c.bf16 %v3870, %v3869
    %v3914 = vpack.c.bf16 %v3872, %v3871
    %v3915 = vpack.c.bf16 %v3874, %v3873
    %v3916 = vpack.c.bf16 %v3876, %v3875
    %v3917 = vpack.c.bf16 %v3878, %v3877
    %v3918 = vpack.c.bf16 %v3880, %v3879
    %v3919 = vpack.c.bf16 %v3882, %v3881
    %v3920 = vpack.c.bf16 %v3884, %v3883
    %v3921 = vpack.c.bf16 %v3886, %v3885
    %v3922 = vpack.c.bf16 %v3888, %v3887
    %v3923 = vpack.c.bf16 %v3890, %v3889
    %v3924 = vpack.c.bf16 %v3892, %v3891
    %v3925 = vld [vmem:[#allocation9] sm:$0xf]
    %v3926 = vld [vmem:[#allocation9 + $0x4] sm:$0xf]
    %v3927 = vld [vmem:[#allocation9 + $0x8] sm:$0xf]
    %v3928 = vld [vmem:[#allocation9 + $0xc] sm:$0xf]
    %v3929 = vld [vmem:[#allocation9 + $0x10] sm:$0xf]
    %v3930 = vld [vmem:[#allocation9 + $0x14] sm:$0xf]
    %v3931 = vld [vmem:[#allocation9 + $0x18] sm:$0xf]
    %v3932 = vld [vmem:[#allocation9 + $0x1c] sm:$0xf]
    %v3933 = vld [vmem:[#allocation9 + $0x20] sm:$0xf]
    %v3934 = vld [vmem:[#allocation9 + $0x24] sm:$0xf]
    %v3935 = vld [vmem:[#allocation9 + $0x28] sm:$0xf]
    %v3936 = vld [vmem:[#allocation9 + $0x2c] sm:$0xf]
    %v3937 = vld [vmem:[#allocation9 + $0x30] sm:$0xf]
    %v3938 = vld [vmem:[#allocation9 + $0x34] sm:$0xf]
    %v3939 = vld [vmem:[#allocation9 + $0x38] sm:$0xf]
    %v3940 = vld [vmem:[#allocation9 + $0x3c] sm:$0xf]
    %v3941 = vld [vmem:[#allocation9 + $0x40] sm:$0xf]
    %v3942 = vld [vmem:[#allocation9 + $0x44] sm:$0xf]
    %v3943 = vld [vmem:[#allocation9 + $0x48] sm:$0xf]
    %v3944 = vld [vmem:[#allocation9 + $0x4c] sm:$0xf]
    %v3945 = vld [vmem:[#allocation9 + $0x50] sm:$0xf]
    %v3946 = vld [vmem:[#allocation9 + $0x54] sm:$0xf]
    %v3947 = vld [vmem:[#allocation9 + $0x58] sm:$0xf]
    %v3948 = vld [vmem:[#allocation9 + $0x5c] sm:$0xf]
    %v3949 = vld [vmem:[#allocation9 + $0x60] sm:$0xf]
    %v3950 = vld [vmem:[#allocation9 + $0x64] sm:$0xf]
    %v3951 = vld [vmem:[#allocation9 + $0x68] sm:$0xf]
    %v3952 = vld [vmem:[#allocation9 + $0x6c] sm:$0xf]
    %v3953 = vld [vmem:[#allocation9 + $0x70] sm:$0xf]
    %v3954 = vld [vmem:[#allocation9 + $0x74] sm:$0xf]
    %v3955 = vld [vmem:[#allocation9 + $0x78] sm:$0xf]
    %v3956 = vld [vmem:[#allocation9 + $0x7c] sm:$0xf]
    %v3957 = vld [vmem:[%s6] sm:$0x1]
    %v3959 = vlaneseq
    %v3960 = vshrl.u32 %v3959, 7
    %v3961 = vsub.s32 0, %v3960
    %v3962 = vrot.slane %v3957, %v3961
    %v3996 = vunpack.c.l.b16 %v3925
    %v3997 = vunpack.c.l.b16 %v3926
    %v3998 = vunpack.c.l.b16 %v3927
    %v3999 = vunpack.c.l.b16 %v3928
    %v4000 = vunpack.c.l.b16 %v3929
    %v4001 = vunpack.c.l.b16 %v3930
    %v4002 = vunpack.c.l.b16 %v3931
    %v4003 = vunpack.c.l.b16 %v3932
    %v4004 = vunpack.c.l.b16 %v3933
    %v4005 = vunpack.c.l.b16 %v3934
    %v4006 = vunpack.c.l.b16 %v3935
    %v4007 = vunpack.c.l.b16 %v3936
    %v4008 = vunpack.c.l.b16 %v3937
    %v4009 = vunpack.c.l.b16 %v3938
    %v4010 = vunpack.c.l.b16 %v3939
    %v4011 = vunpack.c.l.b16 %v3940
    %v4012 = vunpack.c.l.b16 %v3941
    %v4013 = vunpack.c.l.b16 %v3942
    %v4014 = vunpack.c.l.b16 %v3943
    %v4015 = vunpack.c.l.b16 %v3944
    %v4016 = vunpack.c.l.b16 %v3945
    %v4017 = vunpack.c.l.b16 %v3946
    %v4018 = vunpack.c.l.b16 %v3947
    %v4019 = vunpack.c.l.b16 %v3948
    %v4020 = vunpack.c.l.b16 %v3949
    %v4021 = vunpack.c.l.b16 %v3950
    %v4022 = vunpack.c.l.b16 %v3951
    %v4023 = vunpack.c.l.b16 %v3952
    %v4024 = vunpack.c.l.b16 %v3953
    %v4025 = vunpack.c.l.b16 %v3954
    %v4026 = vunpack.c.l.b16 %v3955
    %v4027 = vunpack.c.l.b16 %v3956
    %v4028 = vpack.c.b16 %v3997, %v3996
    %v4029 = vpack.c.b16 %v3999, %v3998
    %v4030 = vpack.c.b16 %v4001, %v4000
    %v4031 = vpack.c.b16 %v4003, %v4002
    %v4032 = vpack.c.b16 %v4005, %v4004
    %v4033 = vpack.c.b16 %v4007, %v4006
    %v4034 = vpack.c.b16 %v4009, %v4008
    %v4035 = vpack.c.b16 %v4011, %v4010
    %v4036 = vpack.c.b16 %v4013, %v4012
    %v4037 = vpack.c.b16 %v4015, %v4014
    %v4038 = vpack.c.b16 %v4017, %v4016
    %v4039 = vpack.c.b16 %v4019, %v4018
    %v4040 = vpack.c.b16 %v4021, %v4020
    %v4041 = vpack.c.b16 %v4023, %v4022
    %v4042 = vpack.c.b16 %v4025, %v4024
    %v4043 = vpack.c.b16 %v4027, %v4026
    %4060 = vmatprep.subr.bf16.mxu0 0
    %4061 = vmatpush1.bf16.msra.mxu0 %v4028
    %4062 = vmatprep.subr.bf16.mxu0 0
    %4063 = vmatpush1.bf16.msra.mxu0 %v4029
    %4064 = vmatprep.subr.bf16.mxu0 0
    %4065 = vmatpush1.bf16.msra.mxu0 %v4030
    %4066 = vmatprep.subr.bf16.mxu0 0
    %4067 = vmatpush1.bf16.msra.mxu0 %v4031
    %4068 = vmatprep.subr.bf16.mxu0 0
    %4069 = vmatpush1.bf16.msra.mxu0 %v4032
    %4070 = vmatprep.subr.bf16.mxu0 0
    %4071 = vmatpush1.bf16.msra.mxu0 %v4033
    %4072 = vmatprep.subr.bf16.mxu0 0
    %4073 = vmatpush1.bf16.msra.mxu0 %v4034
    %4074 = vmatprep.subr.bf16.mxu0 0
    %4075 = vmatpush1.bf16.msra.mxu0 %v4035
    %4076 = vmatprep.subr.bf16.mxu0 0
    %4077 = vmatpush1.bf16.msra.mxu0 %v4036
    %4078 = vmatprep.subr.bf16.mxu0 0
    %4079 = vmatpush1.bf16.msra.mxu0 %v4037
    %4080 = vmatprep.subr.bf16.mxu0 0
    %4081 = vmatpush1.bf16.msra.mxu0 %v4038
    %4082 = vmatprep.subr.bf16.mxu0 0
    %4083 = vmatpush1.bf16.msra.mxu0 %v4039
    %4084 = vmatprep.subr.bf16.mxu0 0
    %4085 = vmatpush1.bf16.msra.mxu0 %v4040
    %4086 = vmatprep.subr.bf16.mxu0 0
    %4087 = vmatpush1.bf16.msra.mxu0 %v4041
    %4088 = vmatprep.subr.bf16.mxu0 0
    %4089 = vmatpush1.bf16.msra.mxu0 %v4042
    %4090 = vmatprep.subr.bf16.mxu0 0
    %4091 = vmatpush1.bf16.msra.mxu0 %v4043
    %4092 = vmatprep.mubr.bf16.mxu0 %v298
    %4093 = vmatmul.mubr.bf16.gmra.mrb[0].mxu0 %v3893
    %v4094 = vpop.f32.mrb[0].mxu0
    %v4095 = vadd.f32 %v3962, %v4094
    %v4096 = vpop.f32.mrb[0].mxu0
    %v4097 = vpop.f32.mrb[0].mxu0
    %v4098 = vadd.f32 %v3962, %v4097
    %v4099 = vpop.f32.mrb[0].mxu0
    %4100 = vmatprep.mubr.bf16.mxu0 %v299
    %4101 = vmatmul.mubr.bf16.gmra.mrb[0].mxu0 %v3894
    %v4102 = vpop.f32.mrb[0].mxu0
    %v4103 = vadd.f32 %v3962, %v4102
    %v4104 = vpop.f32.mrb[0].mxu0
    %v4105 = vpop.f32.mrb[0].mxu0
    %v4106 = vadd.f32 %v3962, %v4105
    %v4107 = vpop.f32.mrb[0].mxu0
    %4108 = vmatprep.mubr.bf16.mxu0 %v300
    %4109 = vmatmul.mubr.bf16.gmra.mrb[0].mxu0 %v3895
    %v4110 = vpop.f32.mrb[0].mxu0
    %v4111 = vadd.f32 %v3962, %v4110
    %v4112 = vpop.f32.mrb[0].mxu0
    %v4113 = vpop.f32.mrb[0].mxu0
    %v4114 = vadd.f32 %v3962, %v4113
    %v4115 = vpop.f32.mrb[0].mxu0
    %4116 = vmatprep.mubr.bf16.mxu0 %v301
    %4117 = vmatmul.mubr.bf16.gmra.mrb[0].mxu0 %v3896
    %v4118 = vpop.f32.mrb[0].mxu0
    %v4119 = vadd.f32 %v3962, %v4118
    %v4120 = vpop.f32.mrb[0].mxu0
    %v4121 = vpop.f32.mrb[0].mxu0
    %v4122 = vadd.f32 %v3962, %v4121
    %v4123 = vpop.f32.mrb[0].mxu0
    %4124 = vmatprep.mubr.bf16.mxu0 %v302
    %4125 = vmatmul.mubr.bf16.gmra.mrb[0].mxu0 %v3897
    %v4126 = vpop.f32.mrb[0].mxu0
    %v4127 = vadd.f32 %v3962, %v4126
    %v4128 = vpop.f32.mrb[0].mxu0
    %v4129 = vpop.f32.mrb[0].mxu0
    %v4130 = vadd.f32 %v3962, %v4129
    %v4131 = vpop.f32.mrb[0].mxu0
    %4132 = vmatprep.mubr.bf16.mxu0 %v303
    %4133 = vmatmul.mubr.bf16.gmra.mrb[0].mxu0 %v3898
    %v4134 = vpop.f32.mrb[0].mxu0
    %v4135 = vadd.f32 %v3962, %v4134
    %v4136 = vpop.f32.mrb[0].mxu0
    %v4137 = vpop.f32.mrb[0].mxu0
    %v4138 = vadd.f32 %v3962, %v4137
    %v4139 = vpop.f32.mrb[0].mxu0
    %4140 = vmatprep.mubr.bf16.mxu0 %v304
    %4141 = vmatmul.mubr.bf16.gmra.mrb[0].mxu0 %v3899
    %v4142 = vpop.f32.mrb[0].mxu0
    %v4143 = vadd.f32 %v3962, %v4142
    %v4144 = vpop.f32.mrb[0].mxu0
    %v4145 = vpop.f32.mrb[0].mxu0
    %v4146 = vadd.f32 %v3962, %v4145
    %v4147 = vpop.f32.mrb[0].mxu0
    %4148 = vmatprep.mubr.bf16.mxu0 %v305
    %4149 = vmatmul.mubr.bf16.gmra.mrb[0].mxu0 %v3900
    %v4150 = vpop.f32.mrb[0].mxu0
    %v4151 = vadd.f32 %v3962, %v4150
    %v4152 = vpop.f32.mrb[0].mxu0
    %v4153 = vpop.f32.mrb[0].mxu0
    %v4154 = vadd.f32 %v3962, %v4153
    %v4155 = vpop.f32.mrb[0].mxu0
    %4156 = vmatprep.mubr.bf16.mxu0 %v306
    %4157 = vmatmul.mubr.bf16.gmra.mrb[0].mxu0 %v3901
    %v4158 = vpop.f32.mrb[0].mxu0
    %v4159 = vadd.f32 %v3962, %v4158
    %v4160 = vpop.f32.mrb[0].mxu0
    %v4161 = vpop.f32.mrb[0].mxu0
    %v4162 = vadd.f32 %v3962, %v4161
    %v4163 = vpop.f32.mrb[0].mxu0
    %4164 = vmatprep.mubr.bf16.mxu0 %v307
    %4165 = vmatmul.mubr.bf16.gmra.mrb[0].mxu0 %v3902
    %v4166 = vpop.f32.mrb[0].mxu0
    %v4167 = vadd.f32 %v3962, %v4166
    %v4168 = vpop.f32.mrb[0].mxu0
    %v4169 = vpop.f32.mrb[0].mxu0
    %v4170 = vadd.f32 %v3962, %v4169
    %v4171 = vpop.f32.mrb[0].mxu0
    %4172 = vmatprep.mubr.bf16.mxu0 %v308
    %4173 = vmatmul.mubr.bf16.gmra.mrb[0].mxu0 %v3903
    %v4174 = vpop.f32.mrb[0].mxu0
    %v4175 = vadd.f32 %v3962, %v4174
    %v4176 = vpop.f32.mrb[0].mxu0
    %v4177 = vpop.f32.mrb[0].mxu0
    %v4178 = vadd.f32 %v3962, %v4177
    %v4179 = vpop.f32.mrb[0].mxu0
    %4180 = vmatprep.mubr.bf16.mxu0 %v309
    %4181 = vmatmul.mubr.bf16.gmra.mrb[0].mxu0 %v3904
    %v4182 = vpop.f32.mrb[0].mxu0
    %v4183 = vadd.f32 %v3962, %v4182
    %v4184 = vpop.f32.mrb[0].mxu0
    %v4185 = vpop.f32.mrb[0].mxu0
    %v4186 = vadd.f32 %v3962, %v4185
    %v4187 = vpop.f32.mrb[0].mxu0
    %4188 = vmatprep.mubr.bf16.mxu0 %v310
    %4189 = vmatmul.mubr.bf16.gmra.mrb[0].mxu0 %v3905
    %v4190 = vpop.f32.mrb[0].mxu0
    %v4191 = vadd.f32 %v3962, %v4190
    %v4192 = vpop.f32.mrb[0].mxu0
    %v4193 = vpop.f32.mrb[0].mxu0
    %v4194 = vadd.f32 %v3962, %v4193
    %v4195 = vpop.f32.mrb[0].mxu0
    %4196 = vmatprep.mubr.bf16.mxu0 %v311
    %4197 = vmatmul.mubr.bf16.gmra.mrb[0].mxu0 %v3906
    %v4198 = vpop.f32.mrb[0].mxu0
    %v4199 = vadd.f32 %v3962, %v4198
    %v4200 = vpop.f32.mrb[0].mxu0
    %v4201 = vpop.f32.mrb[0].mxu0
    %v4202 = vadd.f32 %v3962, %v4201
    %v4203 = vpop.f32.mrb[0].mxu0
    %4204 = vmatprep.mubr.bf16.mxu0 %v312
    %4205 = vmatmul.mubr.bf16.gmra.mrb[0].mxu0 %v3907
    %v4206 = vpop.f32.mrb[0].mxu0
    %v4207 = vadd.f32 %v3962, %v4206
    %v4208 = vpop.f32.mrb[0].mxu0
    %v4209 = vpop.f32.mrb[0].mxu0
    %v4210 = vadd.f32 %v3962, %v4209
    %v4211 = vpop.f32.mrb[0].mxu0
    %4212 = vmatprep.mubr.bf16.mxu0 %v313
    %4213 = vmatmul.mubr.bf16.gmra.mrb[0].mxu0 %v3908
    %v4214 = vpop.f32.mrb[0].mxu0
    %v4215 = vadd.f32 %v3962, %v4214
    %v4216 = vpop.f32.mrb[0].mxu0
    %v4217 = vpop.f32.mrb[0].mxu0
    %v4218 = vadd.f32 %v3962, %v4217
    %v4219 = vpop.f32.mrb[0].mxu0
    %4220 = vmatprep.mubr.bf16.mxu0 %v314
    %4221 = vmatmul.mubr.bf16.gmra.mrb[0].mxu0 %v3909
    %v4222 = vpop.f32.mrb[0].mxu0
    %v4223 = vadd.f32 %v3962, %v4222
    %v4224 = vpop.f32.mrb[0].mxu0
    %v4225 = vpop.f32.mrb[0].mxu0
    %v4226 = vadd.f32 %v3962, %v4225
    %v4227 = vpop.f32.mrb[0].mxu0
    %4228 = vmatprep.mubr.bf16.mxu0 %v315
    %4229 = vmatmul.mubr.bf16.gmra.mrb[0].mxu0 %v3910
    %v4230 = vpop.f32.mrb[0].mxu0
    %v4231 = vadd.f32 %v3962, %v4230
    %v4232 = vpop.f32.mrb[0].mxu0
    %v4233 = vpop.f32.mrb[0].mxu0
    %v4234 = vadd.f32 %v3962, %v4233
    %v4235 = vpop.f32.mrb[0].mxu0
    %4236 = vmatprep.mubr.bf16.mxu0 %v316
    %4237 = vmatmul.mubr.bf16.gmra.mrb[0].mxu0 %v3911
    %v4238 = vpop.f32.mrb[0].mxu0
    %v4239 = vadd.f32 %v3962, %v4238
    %v4240 = vpop.f32.mrb[0].mxu0
    %v4241 = vpop.f32.mrb[0].mxu0
    %v4242 = vadd.f32 %v3962, %v4241
    %v4243 = vpop.f32.mrb[0].mxu0
    %4244 = vmatprep.mubr.bf16.mxu0 %v317
    %4245 = vmatmul.mubr.bf16.gmra.mrb[0].mxu0 %v3912
    %v4246 = vpop.f32.mrb[0].mxu0
    %v4247 = vadd.f32 %v3962, %v4246
    %v4248 = vpop.f32.mrb[0].mxu0
    %v4249 = vpop.f32.mrb[0].mxu0
    %v4250 = vadd.f32 %v3962, %v4249
    %v4251 = vpop.f32.mrb[0].mxu0
    %4252 = vmatprep.mubr.bf16.mxu0 %v318
    %4253 = vmatmul.mubr.bf16.gmra.mrb[0].mxu0 %v3913
    %v4254 = vpop.f32.mrb[0].mxu0
    %v4255 = vadd.f32 %v3962, %v4254
    %v4256 = vpop.f32.mrb[0].mxu0
    %v4257 = vpop.f32.mrb[0].mxu0
    %v4258 = vadd.f32 %v3962, %v4257
    %v4259 = vpop.f32.mrb[0].mxu0
    %4260 = vmatprep.mubr.bf16.mxu0 %v319
    %4261 = vmatmul.mubr.bf16.gmra.mrb[0].mxu0 %v3914
    %v4262 = vpop.f32.mrb[0].mxu0
    %v4263 = vadd.f32 %v3962, %v4262
    %v4264 = vpop.f32.mrb[0].mxu0
    %v4265 = vpop.f32.mrb[0].mxu0
    %v4266 = vadd.f32 %v3962, %v4265
    %v4267 = vpop.f32.mrb[0].mxu0
    %4268 = vmatprep.mubr.bf16.mxu0 %v320
    %4269 = vmatmul.mubr.bf16.gmra.mrb[0].mxu0 %v3915
    %v4270 = vpop.f32.mrb[0].mxu0
    %v4271 = vadd.f32 %v3962, %v4270
    %v4272 = vpop.f32.mrb[0].mxu0
    %v4273 = vpop.f32.mrb[0].mxu0
    %v4274 = vadd.f32 %v3962, %v4273
    %v4275 = vpop.f32.mrb[0].mxu0
    %4276 = vmatprep.mubr.bf16.mxu0 %v321
    %4277 = vmatmul.mubr.bf16.gmra.mrb[0].mxu0 %v3916
    %v4278 = vpop.f32.mrb[0].mxu0
    %v4279 = vadd.f32 %v3962, %v4278
    %v4280 = vpop.f32.mrb[0].mxu0
    %v4281 = vpop.f32.mrb[0].mxu0
    %v4282 = vadd.f32 %v3962, %v4281
    %v4283 = vpop.f32.mrb[0].mxu0
    %4284 = vmatprep.mubr.bf16.mxu0 %v322
    %4285 = vmatmul.mubr.bf16.gmra.mrb[0].mxu0 %v3917
    %v4286 = vpop.f32.mrb[0].mxu0
    %v4287 = vadd.f32 %v3962, %v4286
    %v4288 = vpop.f32.mrb[0].mxu0
    %v4289 = vpop.f32.mrb[0].mxu0
    %v4290 = vadd.f32 %v3962, %v4289
    %v4291 = vpop.f32.mrb[0].mxu0
    %4292 = vmatprep.mubr.bf16.mxu0 %v323
    %4293 = vmatmul.mubr.bf16.gmra.mrb[0].mxu0 %v3918
    %v4294 = vpop.f32.mrb[0].mxu0
    %v4295 = vadd.f32 %v3962, %v4294
    %v4296 = vpop.f32.mrb[0].mxu0
    %v4297 = vpop.f32.mrb[0].mxu0
    %v4298 = vadd.f32 %v3962, %v4297
    %v4299 = vpop.f32.mrb[0].mxu0
    %4300 = vmatprep.mubr.bf16.mxu0 %v324
    %4301 = vmatmul.mubr.bf16.gmra.mrb[0].mxu0 %v3919
    %v4302 = vpop.f32.mrb[0].mxu0
    %v4303 = vadd.f32 %v3962, %v4302
    %v4304 = vpop.f32.mrb[0].mxu0
    %v4305 = vpop.f32.mrb[0].mxu0
    %v4306 = vadd.f32 %v3962, %v4305
    %v4307 = vpop.f32.mrb[0].mxu0
    %4308 = vmatprep.mubr.bf16.mxu0 %v325
    %4309 = vmatmul.mubr.bf16.gmra.mrb[0].mxu0 %v3920
    %v4310 = vpop.f32.mrb[0].mxu0
    %v4311 = vadd.f32 %v3962, %v4310
    %v4312 = vpop.f32.mrb[0].mxu0
    %v4313 = vpop.f32.mrb[0].mxu0
    %v4314 = vadd.f32 %v3962, %v4313
    %v4315 = vpop.f32.mrb[0].mxu0
    %4316 = vmatprep.mubr.bf16.mxu0 %v326
    %4317 = vmatmul.mubr.bf16.gmra.mrb[0].mxu0 %v3921
    %v4318 = vpop.f32.mrb[0].mxu0
    %v4319 = vadd.f32 %v3962, %v4318
    %v4320 = vpop.f32.mrb[0].mxu0
    %v4321 = vpop.f32.mrb[0].mxu0
    %v4322 = vadd.f32 %v3962, %v4321
    %v4323 = vpop.f32.mrb[0].mxu0
    %4324 = vmatprep.mubr.bf16.mxu0 %v327
    %4325 = vmatmul.mubr.bf16.gmra.mrb[0].mxu0 %v3922
    %v4326 = vpop.f32.mrb[0].mxu0
    %v4327 = vadd.f32 %v3962, %v4326
    %v4328 = vpop.f32.mrb[0].mxu0
    %v4329 = vpop.f32.mrb[0].mxu0
    %v4330 = vadd.f32 %v3962, %v4329
    %v4331 = vpop.f32.mrb[0].mxu0
    %4332 = vmatprep.mubr.bf16.mxu0 %v328
    %4333 = vmatmul.mubr.bf16.gmra.mrb[0].mxu0 %v3923
    %v4334 = vpop.f32.mrb[0].mxu0
    %v4335 = vadd.f32 %v3962, %v4334
    %v4336 = vpop.f32.mrb[0].mxu0
    %v4337 = vpop.f32.mrb[0].mxu0
    %v4338 = vadd.f32 %v3962, %v4337
    %v4339 = vpop.f32.mrb[0].mxu0
    %4340 = vmatprep.mubr.bf16.mxu0 %v329
    %4341 = vmatmul.mubr.bf16.gmra.mrb[0].mxu0 %v3924
    %v4342 = vpop.f32.mrb[0].mxu0
    %v4343 = vadd.f32 %v3962, %v4342
    %v4344 = vpop.f32.mrb[0].mxu0
    %v4345 = vpop.f32.mrb[0].mxu0
    %v4346 = vadd.f32 %v3962, %v4345
    %v4347 = vpop.f32.mrb[0].mxu0
    %4348 = vdwg.mxu0
    %v4349 = vmax.f32 %v4095, 0.0
    %v4350 = vmax.f32 %v4098, 0.0
    %v4351 = vmax.f32 %v4103, 0.0
    %v4352 = vmax.f32 %v4106, 0.0
    %v4353 = vmax.f32 %v4111, 0.0
    %v4354 = vmax.f32 %v4114, 0.0
    %v4355 = vmax.f32 %v4119, 0.0
    %v4356 = vmax.f32 %v4122, 0.0
    %v4357 = vmax.f32 %v4127, 0.0
    %v4358 = vmax.f32 %v4130, 0.0
    %v4359 = vmax.f32 %v4135, 0.0
    %v4360 = vmax.f32 %v4138, 0.0
    %v4361 = vmax.f32 %v4143, 0.0
    %v4362 = vmax.f32 %v4146, 0.0
    %v4363 = vmax.f32 %v4151, 0.0
    %v4364 = vmax.f32 %v4154, 0.0
    %v4365 = vmax.f32 %v4159, 0.0
    %v4366 = vmax.f32 %v4162, 0.0
    %v4367 = vmax.f32 %v4167, 0.0
    %v4368 = vmax.f32 %v4170, 0.0
    %v4369 = vmax.f32 %v4175, 0.0
    %v4370 = vmax.f32 %v4178, 0.0
    %v4371 = vmax.f32 %v4183, 0.0
    %v4372 = vmax.f32 %v4186, 0.0
    %v4373 = vmax.f32 %v4191, 0.0
    %v4374 = vmax.f32 %v4194, 0.0
    %v4375 = vmax.f32 %v4199, 0.0
    %v4376 = vmax.f32 %v4202, 0.0
    %v4377 = vmax.f32 %v4207, 0.0
    %v4378 = vmax.f32 %v4210, 0.0
    %v4379 = vmax.f32 %v4215, 0.0
    %v4380 = vmax.f32 %v4218, 0.0
    %v4381 = vmax.f32 %v4223, 0.0
    %v4382 = vmax.f32 %v4226, 0.0
    %v4383 = vmax.f32 %v4231, 0.0
    %v4384 = vmax.f32 %v4234, 0.0
    %v4385 = vmax.f32 %v4239, 0.0
    %v4386 = vmax.f32 %v4242, 0.0
    %v4387 = vmax.f32 %v4247, 0.0
    %v4388 = vmax.f32 %v4250, 0.0
    %v4389 = vmax.f32 %v4255, 0.0
    %v4390 = vmax.f32 %v4258, 0.0
    %v4391 = vmax.f32 %v4263, 0.0
    %v4392 = vmax.f32 %v4266, 0.0
    %v4393 = vmax.f32 %v4271, 0.0
    %v4394 = vmax.f32 %v4274, 0.0
    %v4395 = vmax.f32 %v4279, 0.0
    %v4396 = vmax.f32 %v4282, 0.0
    %v4397 = vmax.f32 %v4287, 0.0
    %v4398 = vmax.f32 %v4290, 0.0
    %v4399 = vmax.f32 %v4295, 0.0
    %v4400 = vmax.f32 %v4298, 0.0
    %v4401 = vmax.f32 %v4303, 0.0
    %v4402 = vmax.f32 %v4306, 0.0
    %v4403 = vmax.f32 %v4311, 0.0
    %v4404 = vmax.f32 %v4314, 0.0
    %v4405 = vmax.f32 %v4319, 0.0
    %v4406 = vmax.f32 %v4322, 0.0
    %v4407 = vmax.f32 %v4327, 0.0
    %v4408 = vmax.f32 %v4330, 0.0
    %v4409 = vmax.f32 %v4335, 0.0
    %v4410 = vmax.f32 %v4338, 0.0
    %v4411 = vmax.f32 %v4343, 0.0
    %v4412 = vmax.f32 %v4346, 0.0
    %4413 = vst [vmem:[#allocation11] sm:$0xff] %v4349
    %4414 = vst [vmem:[#allocation11 + $0x8] sm:$0xff] %v4350
    %4415 = vst [vmem:[#allocation11 + $0x10] sm:$0xff] %v4351
    %4416 = vst [vmem:[#allocation11 + $0x18] sm:$0xff] %v4352
    %4417 = vst [vmem:[#allocation11 + $0x20] sm:$0xff] %v4353
    %4418 = vst [vmem:[#allocation11 + $0x28] sm:$0xff] %v4354
    %4419 = vst [vmem:[#allocation11 + $0x30] sm:$0xff] %v4355
    %4420 = vst [vmem:[#allocation11 + $0x38] sm:$0xff] %v4356
    %4421 = vst [vmem:[#allocation11 + $0x40] sm:$0xff] %v4357
    %4422 = vst [vmem:[#allocation11 + $0x48] sm:$0xff] %v4358
    %4423 = vst [vmem:[#allocation11 + $0x50] sm:$0xff] %v4359
    %4424 = vst [vmem:[#allocation11 + $0x58] sm:$0xff] %v4360
    %4425 = vst [vmem:[#allocation11 + $0x60] sm:$0xff] %v4361
    %4426 = vst [vmem:[#allocation11 + $0x68] sm:$0xff] %v4362
    %4427 = vst [vmem:[#allocation11 + $0x70] sm:$0xff] %v4363
    %4428 = vst [vmem:[#allocation11 + $0x78] sm:$0xff] %v4364
    %4429 = vst [vmem:[#allocation11 + $0x80] sm:$0xff] %v4365
    %4430 = vst [vmem:[#allocation11 + $0x88] sm:$0xff] %v4366
    %4431 = vst [vmem:[#allocation11 + $0x90] sm:$0xff] %v4367
    %4432 = vst [vmem:[#allocation11 + $0x98] sm:$0xff] %v4368
    %4433 = vst [vmem:[#allocation11 + $0xa0] sm:$0xff] %v4369
    %4434 = vst [vmem:[#allocation11 + $0xa8] sm:$0xff] %v4370
    %4435 = vst [vmem:[#allocation11 + $0xb0] sm:$0xff] %v4371
    %4436 = vst [vmem:[#allocation11 + $0xb8] sm:$0xff] %v4372
    %4437 = vst [vmem:[#allocation11 + $0xc0] sm:$0xff] %v4373
    %4438 = vst [vmem:[#allocation11 + $0xc8] sm:$0xff] %v4374
    %4439 = vst [vmem:[#allocation11 + $0xd0] sm:$0xff] %v4375
    %4440 = vst [vmem:[#allocation11 + $0xd8] sm:$0xff] %v4376
    %4441 = vst [vmem:[#allocation11 + $0xe0] sm:$0xff] %v4377
    %4442 = vst [vmem:[#allocation11 + $0xe8] sm:$0xff] %v4378
    %4443 = vst [vmem:[#allocation11 + $0xf0] sm:$0xff] %v4379
    %4444 = vst [vmem:[#allocation11 + $0xf8] sm:$0xff] %v4380
    %4445 = vst [vmem:[#allocation11 + $0x100] sm:$0xff] %v4381
    %4446 = vst [vmem:[#allocation11 + $0x108] sm:$0xff] %v4382
    %4447 = vst [vmem:[#allocation11 + $0x110] sm:$0xff] %v4383
    %4448 = vst [vmem:[#allocation11 + $0x118] sm:$0xff] %v4384
    %4449 = vst [vmem:[#allocation11 + $0x120] sm:$0xff] %v4385
    %4450 = vst [vmem:[#allocation11 + $0x128] sm:$0xff] %v4386
    %4451 = vst [vmem:[#allocation11 + $0x130] sm:$0xff] %v4387
    %4452 = vst [vmem:[#allocation11 + $0x138] sm:$0xff] %v4388
    %4453 = vst [vmem:[#allocation11 + $0x140] sm:$0xff] %v4389
    %4454 = vst [vmem:[#allocation11 + $0x148] sm:$0xff] %v4390
    %4455 = vst [vmem:[#allocation11 + $0x150] sm:$0xff] %v4391
    %4456 = vst [vmem:[#allocation11 + $0x158] sm:$0xff] %v4392
    %4457 = vst [vmem:[#allocation11 + $0x160] sm:$0xff] %v4393
    %4458 = vst [vmem:[#allocation11 + $0x168] sm:$0xff] %v4394
    %4459 = vst [vmem:[#allocation11 + $0x170] sm:$0xff] %v4395
    %4460 = vst [vmem:[#allocation11 + $0x178] sm:$0xff] %v4396
    %4461 = vst [vmem:[#allocation11 + $0x180] sm:$0xff] %v4397
    %4462 = vst [vmem:[#allocation11 + $0x188] sm:$0xff] %v4398
    %4463 = vst [vmem:[#allocation11 + $0x190] sm:$0xff] %v4399
    %4464 = vst [vmem:[#allocation11 + $0x198] sm:$0xff] %v4400
    %4465 = vst [vmem:[#allocation11 + $0x1a0] sm:$0xff] %v4401
    %4466 = vst [vmem:[#allocation11 + $0x1a8] sm:$0xff] %v4402
    %4467 = vst [vmem:[#allocation11 + $0x1b0] sm:$0xff] %v4403
    %4468 = vst [vmem:[#allocation11 + $0x1b8] sm:$0xff] %v4404
    %4469 = vst [vmem:[#allocation11 + $0x1c0] sm:$0xff] %v4405
    %4470 = vst [vmem:[#allocation11 + $0x1c8] sm:$0xff] %v4406
    %4471 = vst [vmem:[#allocation11 + $0x1d0] sm:$0xff] %v4407
    %4472 = vst [vmem:[#allocation11 + $0x1d8] sm:$0xff] %v4408
    %4473 = vst [vmem:[#allocation11 + $0x1e0] sm:$0xff] %v4409
    %4474 = vst [vmem:[#allocation11 + $0x1e8] sm:$0xff] %v4410
    %4475 = vst [vmem:[#allocation11 + $0x1f0] sm:$0xff] %v4411
    %4476 = vst [vmem:[#allocation11 + $0x1f8] sm:$0xff] %v4412
    // Predicated region
    $region46: #{tpu_custom_call.1} parent=1 // pred_check
      _
    $region47: #{tpu_custom_call.1} parent=1 // pred_check_branch
      %4478 = sbr.rel (0) target = $region49
    $region48: #{tpu_custom_call.1} parent=1 // pred_region
      %s4480 = ssub.s32 8192, 8192
      %4481 = vsyncadd [#allocation5], %s4480
      %s4482 = sshll.u32 [#allocation11], 4
      %s4483 = int_to_ptr.vmem [resolvable:$true] %s4482
      %4488 = dma.vmem_to_hbm [thread:$0]  %s4483, 8192, %s7, [#allocation5], 128, 128, 8
    $region49: #{tpu_custom_call.1} parent=1 // pred_fallthru
      _
    // Predicated region
    $region50: #{tpu_custom_call.1} parent=1 // pred_check
      _
    $region51: #{tpu_custom_call.1} parent=1 // pred_check_branch
      %4490 = sbr.rel (0) target = $region53
    $region52: #{tpu_custom_call.1} parent=1 // pred_region
      %4491 = dma.done [#allocation5], 8192
    $region53: #{tpu_custom_call.1} parent=1 // pred_fallthru
      _
    %4492 = vsyncpa [#allocation4], 1
    %4493 = vsyncpa [#allocation7], 1
    %4494 = vsyncpa [#allocation10], 1
    %4495 = vsyncpa [#allocation5], 1

</llo_original>
